<compile_context>
chip_gen: v6e
topology: v6e:2x2x1
jax: 0.10.0
libtpu: 0.0.40
codegen_flags: <defaults>
</compile_context>

<pallas_src>
import functools
import math

import jax
import jax.numpy as jnp
from jax import lax
from jax.experimental import pallas as pl
from jax.experimental.pallas import tpu as pltpu

F32 = jnp.float32
BF16 = jnp.bfloat16


@functools.lru_cache(maxsize=None)
def _vmem_limit_bytes():
    # ~3/4 of physical VMEM: ≈48 MiB on v7x (64 MiB), 96 MiB on v5e/v6e (128 MiB).
    try:
        cap = int(pltpu.get_tpu_info().vmem_capacity_bytes)
    except Exception:
        cap = 64 * 1024 * 1024
    return int(min(cap * 3 // 4, 96 * 1024 * 1024))


def _cparams(num_parallel_axes=0):
    kw = dict(vmem_limit_bytes=_vmem_limit_bytes())
    if num_parallel_axes:
        kw["dimension_semantics"] = ("parallel",) * num_parallel_axes
    return pltpu.CompilerParams(**kw)


def _row_block(m, cap=1024):
    # Full block for small inputs; 1024-row tiles (multiple of 8) for big ones
    # (measured: 256-row tiles ~63% of HBM roofline, 1024 ~86%).
    return m if m <= cap else cap


def _mm(x, w):
    """bf16 x bf16 -> f32 MXU matmul; w is pre-transposed (K, N)."""
    return lax.dot_general(x.astype(BF16), w.astype(BF16),
                           (((1,), (0,)), ((), ())),
                           preferred_element_type=F32)


def _mm_f32(x, w):
    """f32 matmul (classifier tail only; tiny M, keeps torch f32 fidelity)."""
    return lax.dot_general(x.astype(F32), w.astype(F32),
                           (((1,), (0,)), ((), ())),
                           preferred_element_type=F32)


# ----------------------------------------------------------------------------
# Pallas kernels
# ----------------------------------------------------------------------------
def _emb_ln_kernel(we_ref, pe_ref, te_ref, g_ref, b_ref, o_ref, *, eps):
    # Fused word+pos+type embedding add + BERT LayerNorm (population variance).
    x = we_ref[...].astype(F32) + pe_ref[...].astype(F32) + te_ref[...].astype(F32)
    mean = jnp.mean(x, axis=-1, keepdims=True)
    d = x - mean
    var = jnp.mean(d * d, axis=-1, keepdims=True)
    o_ref[...] = (d * lax.rsqrt(var + eps) * g_ref[...] + b_ref[...]).astype(o_ref.dtype)


def _attn_layer_kernel(x_ref, m_ref, wqkv_ref, bqkv_ref, wo_ref, bo_ref,
                       g_ref, b_ref, o_ref, *, nh, eps):
    # Whole BERT self-attention block for one batch item, lane-dense throughout:
    #   qkv proj -> per-head softmax(QK^T + mask)V -> concat -> out proj
    #   -> residual add -> LayerNorm.
    # 1/sqrt(head_dim) is folded into the Q weights at pack time.
    x = x_ref[0]                                  # (S, H) bf16
    s_len, h = x.shape
    dh = h // nh
    addm = m_ref[0]                               # (1, S) additive mask

    qkv = _mm(x, wqkv_ref[...]) + bqkv_ref[...]   # (S, 3H) f32
    q = qkv[:, :h]
    k = qkv[:, h:2 * h]
    v = qkv[:, 2 * h:]

    ctx_parts = []
    for hh in range(nh):                          # static unroll over heads
        lo, hi = hh * dh, (hh + 1) * dh
        qh = q[:, lo:hi]
        kh = k[:, lo:hi]
        vh = v[:, lo:hi]
        sc = lax.dot_general(qh.astype(BF16), kh.astype(BF16),
                             (((1,), (1,)), ((), ())),        # Q @ K^T
                             preferred_element_type=F32)      # (S, S)
        sc = sc + addm
        sc = sc - jnp.max(sc, axis=-1, keepdims=True)
        p = jnp.exp(sc)
        p = p * pl.reciprocal(jnp.sum(p, axis=-1, keepdims=True), approx=True)
        ctx_parts.append(_mm(p, vh))                          # (S, dh) f32
    ctx = jnp.concatenate(ctx_parts, axis=-1)                 # (S, H) f32

    y = _mm(ctx, wo_ref[...]) + bo_ref[...] + x.astype(F32)
    mean = jnp.mean(y, axis=-1, keepdims=True)
    d = y - mean
    var = jnp.mean(d * d, axis=-1, keepdims=True)
    o_ref[0] = (d * lax.rsqrt(var + eps) * g_ref[...] + b_ref[...]).astype(o_ref.dtype)


def _ffn_kernel(x_ref, w1_ref, b1_ref, w2_ref, b2_ref, g_ref, bb_ref, o_ref, *, eps):
    # Whole BERT FFN block: LN(x + W2 @ gelu(W1 @ x + b1) + b2), one kernel.
    x = x_ref[...]
    hmid = jax.nn.gelu(_mm(x, w1_ref[...]) + b1_ref[...], approximate=True)
    y = _mm(hmid, w2_ref[...]) + b2_ref[...] + x.astype(F32)
    mean = jnp.mean(y, axis=-1, keepdims=True)
    d = y - mean
    var = jnp.mean(d * d, axis=-1, keepdims=True)
    o_ref[...] = (d * lax.rsqrt(var + eps) * g_ref[...] + bb_ref[...]).astype(o_ref.dtype)


def _tail_kernel(seq_ref, am_ref, e1_ref, e2_ref,
                 wc_ref, bc_ref, we_ref, be_ref,
                 g_ref, gb_ref, wl_ref, bl_ref, o_ref, *, eps):
    # Entire BioBERTLayer head for a batch tile, fully fused, f32 throughout.
    seq = seq_ref[...].astype(F32)                       # (tb, S, H)
    am = am_ref[...]                                     # (tb, S, 1)
    tb = seq.shape[0]

    # masked_avgpool: softmax over the masked attention-mask, weighted sum.
    mf = jnp.where(am == 0.0, -1e9, am)
    mf = mf - jnp.max(mf, axis=1, keepdims=True)
    sc = jnp.exp(mf)
    sc = sc * pl.reciprocal(jnp.sum(sc, axis=1, keepdims=True), approx=True)
    pooled = jnp.sum(sc * seq, axis=1)                   # (tb, H)

    def ent_avg(m):                                      # entity_average
        cnt = jnp.maximum(jnp.sum((m != 0.0).astype(F32), axis=1), 1.0)  # (tb,1)
        return jnp.sum(m * seq, axis=1) * pl.reciprocal(cnt, approx=True)

    e1h = ent_avg(e1_ref[...])
    e2h = ent_avg(e2_ref[...])

    # FCLayer: dropout(eval)->tanh->linear.  e1/e2 share weights -> stack them
    # into one (2*tb, H) matmul.
    cls_o = _mm_f32(jnp.tanh(pooled), wc_ref[...]) + bc_ref[...]
    ents = jnp.concatenate([e1h, e2h], axis=0)
    ents_o = _mm_f32(jnp.tanh(ents), we_ref[...]) + be_ref[...]
    feat = jnp.concatenate([cls_o, ents_o[:tb], ents_o[tb:]], axis=-1)   # (tb, 3H)

    # SublayerConnection: x + LN(x) with torch.std (unbiased) and eps on std.
    d3 = feat.shape[-1]
    mean = jnp.mean(feat, axis=-1, keepdims=True)
    diff = feat - mean
    std = jnp.sqrt(jnp.sum(diff * diff, axis=-1, keepdims=True) / (d3 - 1))
    feat = feat + (g_ref[...] * diff * pl.reciprocal(std + eps, approx=True) + gb_ref[...])

    out = _mm_f32(feat, wl_ref[...]) + bl_ref[...]       # final nn.Linear(3H, 3H)
    o_ref[...] = out[:, None, :]                          # (tb, 1, 3H)


# ----------------------------------------------------------------------------
# pallas_call wrappers
# ----------------------------------------------------------------------------
def pallas_emb_layernorm(we2, pe2, te2, g, b, eps, out_dtype=BF16):
    m, n = we2.shape
    tm = _row_block(m)
    return pl.pallas_call(
        functools.partial(_emb_ln_kernel, eps=eps),
        grid=(pl.cdiv(m, tm),),
        in_specs=[pl.BlockSpec((tm, n), lambda i: (i, 0)),
                  pl.BlockSpec((tm, n), lambda i: (i, 0)),
                  pl.BlockSpec((tm, n), lambda i: (i, 0)),
                  pl.BlockSpec((1, n), lambda i: (0, 0)),
                  pl.BlockSpec((1, n), lambda i: (0, 0))],
        out_specs=pl.BlockSpec((tm, n), lambda i: (i, 0)),
        out_shape=jax.ShapeDtypeStruct((m, n), out_dtype),
        compiler_params=_cparams(1),
    )(we2, pe2, te2, g, b)


def pallas_attention_block(x, add_mask, lp, nh, eps=1e-12, out_dtype=BF16):
    # Grid over batch; each step consumes one (S, H) slab and produces the
    # fully post-LN attention output, lane-dense (last dim = H).
    # NOTE: constant-index weight specs could use pipeline_mode=pl.Buffered(1)
    # on v7x when hidden grows (irrelevant at H=128), kept default here.
    b, s, h = x.shape
    return pl.pallas_call(
        functools.partial(_attn_layer_kernel, nh=nh, eps=eps),
        grid=(b,),
        in_specs=[pl.BlockSpec((1, s, h), lambda i: (i, 0, 0)),
                  pl.BlockSpec((1, 1, s), lambda i: (i, 0, 0)),
                  pl.BlockSpec((h, 3 * h), lambda i: (0, 0)),
                  pl.BlockSpec((1, 3 * h), lambda i: (0, 0)),
                  pl.BlockSpec((h, h), lambda i: (0, 0)),
                  pl.BlockSpec((1, h), lambda i: (0, 0)),
                  pl.BlockSpec((1, h), lambda i: (0, 0)),
                  pl.BlockSpec((1, h), lambda i: (0, 0))],
        out_specs=pl.BlockSpec((1, s, h), lambda i: (i, 0, 0)),
        out_shape=jax.ShapeDtypeStruct((b, s, h), out_dtype),
        compiler_params=_cparams(1),
    )(x, add_mask, lp["wqkv"], lp["bqkv"], lp["wo"], lp["bo"],
      lp["ln1_g"], lp["ln1_b"])


def pallas_ffn(x2, w1, b1, w2, b2, g, bb, eps, out_dtype=BF16):
    m, h = x2.shape
    inter = w1.shape[1]
    tm = _row_block(m)
    return pl.pallas_call(
        functools.partial(_ffn_kernel, eps=eps),
        grid=(pl.cdiv(m, tm),),
        in_specs=[pl.BlockSpec((tm, h), lambda i: (i, 0)),
                  pl.BlockSpec((h, inter), lambda i: (0, 0)),
                  pl.BlockSpec((1, inter), lambda i: (0, 0)),
                  pl.BlockSpec((inter, h), lambda i: (0, 0)),
                  pl.BlockSpec((1, h), lambda i: (0, 0)),
                  pl.BlockSpec((1, h), lambda i: (0, 0)),
                  pl.BlockSpec((1, h), lambda i: (0, 0))],
        out_specs=pl.BlockSpec((tm, h), lambda i: (i, 0)),
        out_shape=jax.ShapeDtypeStruct((m, h), out_dtype),
        compiler_params=_cparams(1),
    )(x2, w1, b1, w2, b2, g, bb)


def pallas_biobert_tail(seq, am3, e13, e23, p):
    b, s, h = seq.shape
    # >= 2 grid steps whenever B >= 2 so both v7x TensorCores get work.
    tb = max(1, min(8, pl.cdiv(b, 2)))
    out = pl.pallas_call(
        functools.partial(_tail_kernel, eps=1e-6),
        grid=(pl.cdiv(b, tb),),
        in_specs=[pl.BlockSpec((tb, s, h), lambda i: (i, 0, 0)),
                  pl.BlockSpec((tb, s, 1), lambda i: (i, 0, 0)),
                  pl.BlockSpec((tb, s, 1), lambda i: (i, 0, 0)),
                  pl.BlockSpec((tb, s, 1), lambda i: (i, 0, 0)),
                  pl.BlockSpec((h, h), lambda i: (0, 0)),
                  pl.BlockSpec((1, h), lambda i: (0, 0)),
                  pl.BlockSpec((h, h), lambda i: (0, 0)),
                  pl.BlockSpec((1, h), lambda i: (0, 0)),
                  pl.BlockSpec((1, 3 * h), lambda i: (0, 0)),
                  pl.BlockSpec((1, 3 * h), lambda i: (0, 0)),
                  pl.BlockSpec((3 * h, 3 * h), lambda i: (0, 0)),
                  pl.BlockSpec((1, 3 * h), lambda i: (0, 0))],
        out_specs=pl.BlockSpec((tb, 1, 3 * h), lambda i: (i, 0, 0)),
        out_shape=jax.ShapeDtypeStruct((b, 1, 3 * h), F32),
        compiler_params=_cparams(1),
    )(seq, am3, e13, e23,
      p["w_cls"], p["b_cls"], p["w_ent"], p["b_ent"],
      p["sub_g"], p["sub_b"], p["w_lin"], p["b_lin"])
    return out.reshape(b, 3 * h)


# ----------------------------------------------------------------------------
# Model forward (XLA glue only for embedding gathers / flat reshapes)
# ----------------------------------------------------------------------------
def bert_forward(bp, cfg, input_ids, attention_mask, token_type_ids):
    b, s = input_ids.shape
    h, nh = cfg["hidden_size"], cfg["num_heads"]

    # TODO(synk): embedding gathers remain XLA ops; only the add+LN is fused.
    we = bp["word_emb"][input_ids].reshape(b * s, h)
    pe = jnp.broadcast_to(bp["pos_emb"][jnp.arange(s)][None, :, :],
                          (b, s, h)).reshape(b * s, h)
    te = bp["type_emb"][token_type_ids].reshape(b * s, h)
    x2 = pallas_emb_layernorm(we, pe, te, bp["emb_ln_g"], bp["emb_ln_b"], 1e-12)

    add = ((1.0 - attention_mask.astype(F32)) * -10000.0)[:, None, :]   # (B,1,S)
    x = x2.reshape(b, s, h)
    for lp in bp["layers"]:
        x = pallas_attention_block(x, add, lp, nh)                      # (B,S,H)
        x2 = pallas_ffn(x.reshape(b * s, h), lp["w1"], lp["b1"],
                        lp["w2"], lp["b2"], lp["ln2_g"], lp["ln2_b"], 1e-12)
        x = x2.reshape(b, s, h)
    return x                                                            # bf16


def biobert_layer_forward(p, cfg, input_ids, attention_mask, token_type_ids,
                          e1_mask, e2_mask):
    seq = bert_forward(p["bert"], cfg, input_ids, attention_mask, token_type_ids)
    am3 = attention_mask.astype(F32)[:, :, None]
    e13 = e1_mask.astype(F32)[:, :, None]
    e23 = e2_mask.astype(F32)[:, :, None]
    return pallas_biobert_tail(seq, am3, e13, e23, p)    # (B, 3H) f32


# ----------------------------------------------------------------------------
# Deterministic parameter init (synthetic weights, packed for the kernels)
# ----------------------------------------------------------------------------
class KeyGen:
    def __init__(self, seed):
        self._key = jax.random.PRNGKey(seed)

    def __call__(self):
        self._key, sub = jax.random.split(self._key)
        return sub


def _rand(kg, shape, scale=0.05):
    return jax.random.normal(kg(), shape, F32) * scale


def _packed_dense(kg, in_dim, out_dim, scale=0.05, w_scale=1.0, w_dtype=BF16):
    """nn.Linear(in,out) packed: weight pre-transposed (in,out), bias (1,out) f32."""
    w = _rand(kg, (out_dim, in_dim), scale)               # torch layout (out, in)
    b = _rand(kg, (out_dim,), 0.01)
    return (w.T * w_scale).astype(w_dtype), (b * w_scale).reshape(1, out_dim).astype(F32)


def init_bert(kg, cfg):
    h, inter = cfg["hidden_size"], cfg["intermediate_size"]
    inv = 1.0 / math.sqrt(h // cfg["num_heads"])           # folded into Q projection
    p = {"word_emb": _rand(kg, (cfg["vocab_size"], h), 0.02),
         "pos_emb": _rand(kg, (cfg["max_position"], h), 0.02),
         "type_emb": _rand(kg, (cfg["type_vocab_size"], h), 0.02),
         "emb_ln_g": jnp.ones((1, h), F32), "emb_ln_b": jnp.zeros((1, h), F32),
         "layers": []}
    for _ in range(cfg["num_layers"]):
        wq, bq = _packed_dense(kg, h, h, w_scale=inv)
        wk, bk = _packed_dense(kg, h, h)
        wv, bv = _packed_dense(kg, h, h)
        wo, bo = _packed_dense(kg, h, h)
        w1, b1 = _packed_dense(kg, h, inter)
        w2, b2 = _packed_dense(kg, inter, h)
        p["layers"].append({
            "wqkv": jnp.concatenate([wq, wk, wv], axis=1),   # (H, 3H) bf16 fused QKV
            "bqkv": jnp.concatenate([bq, bk, bv], axis=1),   # (1, 3H) f32
            "wo": wo, "bo": bo,
            "ln1_g": jnp.ones((1, h), F32), "ln1_b": jnp.zeros((1, h), F32),
            "w1": w1, "b1": b1, "w2": w2, "b2": b2,
            "ln2_g": jnp.ones((1, h), F32), "ln2_b": jnp.zeros((1, h), F32)})
    return p


def init_biobert_layer(seed, cfg):
    kg = KeyGen(seed)
    h = cfg["hidden_size"]
    # Classifier-tail weights stay f32 (tiny; matches torch f32 head precision).
    w_cls, b_cls = _packed_dense(kg, h, h, w_dtype=F32)
    w_ent, b_ent = _packed_dense(kg, h, h, w_dtype=F32)
    w_lin, b_lin = _packed_dense(kg, 3 * h, 3 * h, w_dtype=F32)
    return {"bert": init_bert(kg, cfg),
            "w_cls": w_cls, "b_cls": b_cls,
            "w_ent": w_ent, "b_ent": b_ent,
            "sub_g": jnp.ones((1, 3 * h), F32), "sub_b": jnp.zeros((1, 3 * h), F32),
            "w_lin": w_lin, "b_lin": b_lin}


# ----------------------------------------------------------------------------
# Main
# ----------------------------------------------------------------------------
if __name__ == "__main__":
    cfg = dict(hidden_size=128, num_heads=4, num_layers=2, intermediate_size=512,
               vocab_size=128, max_position=64, type_vocab_size=2)
    B, S = 2, 8

    ks = jax.random.split(jax.random.PRNGKey(0), 2)
    input_ids = jax.random.randint(ks[0], (B, S), 0, cfg["vocab_size"], dtype=jnp.int32)
    token_type_ids = jnp.zeros((B, S), jnp.int32)
    attention_mask = jnp.ones((B, S), jnp.int32).at[1, 6:].set(0)
    e1_mask = jnp.zeros((B, S), F32).at[:, 1:3].set(1.0)
    e2_mask = jnp.zeros((B, S), F32).at[:, 4:6].set(1.0)

    params = init_biobert_layer(42, cfg)

    @jax.jit
    def run(params, input_ids, attention_mask, token_type_ids, e1_mask, e2_mask):
        return biobert_layer_forward(params, cfg, input_ids, attention_mask,
                                     token_type_ids, e1_mask, e2_mask)

    out = run(params, input_ids, attention_mask, token_type_ids, e1_mask, e2_mask)
    jax.block_until_ready(out)
    assert out.shape == (B, 3 * cfg["hidden_size"])
    assert bool(jnp.all(jnp.isfinite(out)))
    print("KERNEL_OK")
</pallas_src>

<mosaic_0001>
module attributes {stable_mosaic.version = 11 : i64} {
  func.func @_ffn_kernel(%arg0: i32, %arg1: memref<16x128xbf16, #tpu.memory_space<vmem>>, %arg2: memref<128x512xbf16, #tpu.memory_space<vmem>>, %arg3: memref<1x512xf32, #tpu.memory_space<vmem>>, %arg4: memref<512x128xbf16, #tpu.memory_space<vmem>>, %arg5: memref<1x128xf32, #tpu.memory_space<vmem>>, %arg6: memref<1x128xf32, #tpu.memory_space<vmem>>, %arg7: memref<1x128xf32, #tpu.memory_space<vmem>>, %arg8: memref<16x128xbf16, #tpu.memory_space<vmem>>) attributes {dimension_semantics = [#tpu.dimension_semantics<parallel>], iteration_bounds = array<i64: 1>, scalar_prefetch = 0 : i64, scratch_operands = 0 : i64, tpu.core_type = #tpu.core_type<tc>, window_params = [{transform_indices = @transform_0, window_bounds = array<i64: 16, 128>}, {pipeline_mode = #tpu.pipeline_mode<synchronous>, transform_indices = @transform_1, window_bounds = array<i64: 128, 512>}, {pipeline_mode = #tpu.pipeline_mode<synchronous>, transform_indices = @transform_2, window_bounds = array<i64: 1, 512>}, {pipeline_mode = #tpu.pipeline_mode<synchronous>, transform_indices = @transform_3, window_bounds = array<i64: 512, 128>}, {pipeline_mode = #tpu.pipeline_mode<synchronous>, transform_indices = @transform_4, window_bounds = array<i64: 1, 128>}, {pipeline_mode = #tpu.pipeline_mode<synchronous>, transform_indices = @transform_5, window_bounds = array<i64: 1, 128>}, {pipeline_mode = #tpu.pipeline_mode<synchronous>, transform_indices = @transform_6, window_bounds = array<i64: 1, 128>}, {transform_indices = @transform_7, window_bounds = array<i64: 16, 128>}]} {
    %c0 = arith.constant 0 : index
    %c0_0 = arith.constant 0 : index
    %0 = vector.load %arg1[%c0, %c0_0] : memref<16x128xbf16, #tpu.memory_space<vmem>>, vector<16x128xbf16>
    %c0_1 = arith.constant 0 : index
    %c0_2 = arith.constant 0 : index
    %1 = vector.load %arg2[%c0_1, %c0_2] : memref<128x512xbf16, #tpu.memory_space<vmem>>, vector<128x512xbf16>
    %cst = arith.constant dense<0.000000e+00> : vector<16x512xf32>
    %2 = tpu.matmul %0, %1, %cst {dimension_numbers = #tpu.dot_dimension_numbers<[1], [0], [0], [1], [0, 0, 1, 1], [], []>} : vector<16x128xbf16>, vector<128x512xbf16>, vector<16x512xf32> -> vector<16x512xf32>
    %c0_3 = arith.constant 0 : index
    %c0_4 = arith.constant 0 : index
    %3 = vector.load %arg3[%c0_3, %c0_4] : memref<1x512xf32, #tpu.memory_space<vmem>>, vector<1x512xf32>
    %4 = vector.broadcast %3 : vector<1x512xf32> to vector<16x512xf32>
    %5 = arith.addf %2, %4 : vector<16x512xf32>
    %6 = arith.mulf %5, %5 : vector<16x512xf32>
    %7 = arith.mulf %5, %6 : vector<16x512xf32>
    %cst_5 = arith.constant 4.471500e-02 : f32
    %8 = vector.broadcast %cst_5 : f32 to vector<16x512xf32>
    %9 = arith.mulf %8, %7 : vector<16x512xf32>
    %10 = arith.addf %5, %9 : vector<16x512xf32>
    %cst_6 = arith.constant 0.797884583 : f32
    %11 = vector.broadcast %cst_6 : f32 to vector<16x512xf32>
    %12 = arith.mulf %11, %10 : vector<16x512xf32>
    %13 = math.tanh %12 : vector<16x512xf32>
    %cst_7 = arith.constant 1.000000e+00 : f32
    %14 = vector.broadcast %cst_7 : f32 to vector<16x512xf32>
    %15 = arith.addf %14, %13 : vector<16x512xf32>
    %cst_8 = arith.constant 5.000000e-01 : f32
    %16 = vector.broadcast %cst_8 : f32 to vector<16x512xf32>
    %17 = arith.mulf %16, %15 : vector<16x512xf32>
    %18 = arith.mulf %5, %17 : vector<16x512xf32>
    %c0_9 = arith.constant 0 : index
    %c0_10 = arith.constant 0 : index
    %19 = vector.load %arg4[%c0_9, %c0_10] : memref<512x128xbf16, #tpu.memory_space<vmem>>, vector<512x128xbf16>
    %20 = arith.truncf %18 : vector<16x512xf32> to vector<16x512xbf16>
    %cst_11 = arith.constant dense<0.000000e+00> : vector<16x128xf32>
    %21 = tpu.matmul %20, %19, %cst_11 {dimension_numbers = #tpu.dot_dimension_numbers<[1], [0], [0], [1], [0, 0, 1, 1], [], []>} : vector<16x512xbf16>, vector<512x128xbf16>, vector<16x128xf32> -> vector<16x128xf32>
    %c0_12 = arith.constant 0 : index
    %c0_13 = arith.constant 0 : index
    %22 = vector.load %arg5[%c0_12, %c0_13] : memref<1x128xf32, #tpu.memory_space<vmem>>, vector<1x128xf32>
    %23 = vector.broadcast %22 : vector<1x128xf32> to vector<16x128xf32>
    %24 = arith.addf %21, %23 : vector<16x128xf32>
    %25 = arith.extf %0 : vector<16x128xbf16> to vector<16x128xf32>
    %26 = arith.addf %24, %25 : vector<16x128xf32>
    %cst_14 = arith.constant dense<0.000000e+00> : vector<16xf32>
    %27 = vector.multi_reduction <add>, %26, %cst_14 [1] : vector<16x128xf32> to vector<16xf32>
    %28 = vector.shape_cast %27 : vector<16xf32> to vector<16x1xf32>
    %cst_15 = arith.constant 1.280000e+02 : f32
    %29 = vector.broadcast %cst_15 : f32 to vector<16x1xf32>
    %30 = arith.divf %28, %29 : vector<16x1xf32>
    %31 = vector.broadcast %30 : vector<16x1xf32> to vector<16x128xf32>
    %32 = arith.subf %26, %31 : vector<16x128xf32>
    %33 = arith.mulf %32, %32 : vector<16x128xf32>
    %cst_16 = arith.constant dense<0.000000e+00> : vector<16xf32>
    %34 = vector.multi_reduction <add>, %33, %cst_16 [1] : vector<16x128xf32> to vector<16xf32>
    %35 = vector.shape_cast %34 : vector<16xf32> to vector<16x1xf32>
    %cst_17 = arith.constant 1.280000e+02 : f32
    %36 = vector.broadcast %cst_17 : f32 to vector<16x1xf32>
    %37 = arith.divf %35, %36 : vector<16x1xf32>
    %cst_18 = arith.constant 9.99999996E-13 : f32
    %38 = vector.broadcast %cst_18 : f32 to vector<16x1xf32>
    %39 = arith.addf %37, %38 : vector<16x1xf32>
    %40 = math.rsqrt %39 : vector<16x1xf32>
    %41 = vector.broadcast %40 : vector<16x1xf32> to vector<16x128xf32>
    %42 = arith.mulf %32, %41 : vector<16x128xf32>
    %c0_19 = arith.constant 0 : index
    %c0_20 = arith.constant 0 : index
    %43 = vector.load %arg6[%c0_19, %c0_20] : memref<1x128xf32, #tpu.memory_space<vmem>>, vector<1x128xf32>
    %44 = vector.broadcast %43 : vector<1x128xf32> to vector<16x128xf32>
    %45 = arith.mulf %42, %44 : vector<16x128xf32>
    %c0_21 = arith.constant 0 : index
    %c0_22 = arith.constant 0 : index
    %46 = vector.load %arg7[%c0_21, %c0_22] : memref<1x128xf32, #tpu.memory_space<vmem>>, vector<1x128xf32>
    %47 = vector.broadcast %46 : vector<1x128xf32> to vector<16x128xf32>
    %48 = arith.addf %45, %47 : vector<16x128xf32>
    %49 = arith.truncf %48 : vector<16x128xf32> to vector<16x128xbf16>
    %c0_23 = arith.constant 0 : index
    %c0_24 = arith.constant 0 : index
    %50 = vector.load %arg8[%c0_23, %c0_24] : memref<16x128xbf16, #tpu.memory_space<vmem>>, vector<16x128xbf16>
    tpu.vector_store %arg8[%c0_23, %c0_24], %49 {strides = array<i32>} : memref<16x128xbf16, #tpu.memory_space<vmem>>, vector<16x128xbf16>,
    return
  }
  func.func @transform_0(%arg0: i32) -> (i32, i32) {
    %c0_i32 = arith.constant 0 : i32
    %c0_i32_0 = arith.constant 0 : i32
    return %arg0, %c0_i32 : i32, i32
  }
  func.func @transform_1(%arg0: i32) -> (i32, i32) {
    %c0_i32 = arith.constant 0 : i32
    %c0_i32_0 = arith.constant 0 : i32
    %c0_i32_1 = arith.constant 0 : i32
    return %c0_i32, %c0_i32_0 : i32, i32
  }
  func.func @transform_2(%arg0: i32) -> (i32, i32) {
    %c0_i32 = arith.constant 0 : i32
    %c0_i32_0 = arith.constant 0 : i32
    %c0_i32_1 = arith.constant 0 : i32
    return %c0_i32, %c0_i32_0 : i32, i32
  }
  func.func @transform_3(%arg0: i32) -> (i32, i32) {
    %c0_i32 = arith.constant 0 : i32
    %c0_i32_0 = arith.constant 0 : i32
    %c0_i32_1 = arith.constant 0 : i32
    return %c0_i32, %c0_i32_0 : i32, i32
  }
  func.func @transform_4(%arg0: i32) -> (i32, i32) {
    %c0_i32 = arith.constant 0 : i32
    %c0_i32_0 = arith.constant 0 : i32
    %c0_i32_1 = arith.constant 0 : i32
    return %c0_i32, %c0_i32_0 : i32, i32
  }
  func.func @transform_5(%arg0: i32) -> (i32, i32) {
    %c0_i32 = arith.constant 0 : i32
    %c0_i32_0 = arith.constant 0 : i32
    %c0_i32_1 = arith.constant 0 : i32
    return %c0_i32, %c0_i32_0 : i32, i32
  }
  func.func @transform_6(%arg0: i32) -> (i32, i32) {
    %c0_i32 = arith.constant 0 : i32
    %c0_i32_0 = arith.constant 0 : i32
    %c0_i32_1 = arith.constant 0 : i32
    return %c0_i32, %c0_i32_0 : i32, i32
  }
  func.func @transform_7(%arg0: i32) -> (i32, i32) {
    %c0_i32 = arith.constant 0 : i32
    %c0_i32_0 = arith.constant 0 : i32
    return %arg0, %c0_i32 : i32, i32
  }
}

module attributes {stable_mosaic.version = 11 : i64} {
  func.func @_emb_ln_kernel(%arg0: i32, %arg1: memref<16x128xf32, #tpu.memory_space<vmem>>, %arg2: memref<16x128xf32, #tpu.memory_space<vmem>>, %arg3: memref<16x128xf32, #tpu.memory_space<vmem>>, %arg4: memref<1x128xf32, #tpu.memory_space<vmem>>, %arg5: memref<1x128xf32, #tpu.memory_space<vmem>>, %arg6: memref<16x128xbf16, #tpu.memory_space<vmem>>) attributes {dimension_semantics = [#tpu.dimension_semantics<parallel>], iteration_bounds = array<i64: 1>, scalar_prefetch = 0 : i64, scratch_operands = 0 : i64, tpu.core_type = #tpu.core_type<tc>, window_params = [{transform_indices = @transform_0, window_bounds = array<i64: 16, 128>}, {transform_indices = @transform_1, window_bounds = array<i64: 16, 128>}, {transform_indices = @transform_2, window_bounds = array<i64: 16, 128>}, {pipeline_mode = #tpu.pipeline_mode<synchronous>, transform_indices = @transform_3, window_bounds = array<i64: 1, 128>}, {pipeline_mode = #tpu.pipeline_mode<synchronous>, transform_indices = @transform_4, window_bounds = array<i64: 1, 128>}, {transform_indices = @transform_5, window_bounds = array<i64: 16, 128>}]} {
    %c0 = arith.constant 0 : index
    %c0_0 = arith.constant 0 : index
    %0 = vector.load %arg1[%c0, %c0_0] : memref<16x128xf32, #tpu.memory_space<vmem>>, vector<16x128xf32>
    %c0_1 = arith.constant 0 : index
    %c0_2 = arith.constant 0 : index
    %1 = vector.load %arg2[%c0_1, %c0_2] : memref<16x128xf32, #tpu.memory_space<vmem>>, vector<16x128xf32>
    %2 = arith.addf %0, %1 : vector<16x128xf32>
    %c0_3 = arith.constant 0 : index
    %c0_4 = arith.constant 0 : index
    %3 = vector.load %arg3[%c0_3, %c0_4] : memref<16x128xf32, #tpu.memory_space<vmem>>, vector<16x128xf32>
    %4 = arith.addf %2, %3 : vector<16x128xf32>
    %cst = arith.constant dense<0.000000e+00> : vector<16xf32>
    %5 = vector.multi_reduction <add>, %4, %cst [1] : vector<16x128xf32> to vector<16xf32>
    %6 = vector.shape_cast %5 : vector<16xf32> to vector<16x1xf32>
    %cst_5 = arith.constant 1.280000e+02 : f32
    %7 = vector.broadcast %cst_5 : f32 to vector<16x1xf32>
    %8 = arith.divf %6, %7 : vector<16x1xf32>
    %9 = vector.broadcast %8 : vector<16x1xf32> to vector<16x128xf32>
    %10 = arith.subf %4, %9 : vector<16x128xf32>
    %11 = arith.mulf %10, %10 : vector<16x128xf32>
    %cst_6 = arith.constant dense<0.000000e+00> : vector<16xf32>
    %12 = vector.multi_reduction <add>, %11, %cst_6 [1] : vector<16x128xf32> to vector<16xf32>
    %13 = vector.shape_cast %12 : vector<16xf32> to vector<16x1xf32>
    %cst_7 = arith.constant 1.280000e+02 : f32
    %14 = vector.broadcast %cst_7 : f32 to vector<16x1xf32>
    %15 = arith.divf %13, %14 : vector<16x1xf32>
    %cst_8 = arith.constant 9.99999996E-13 : f32
    %16 = vector.broadcast %cst_8 : f32 to vector<16x1xf32>
    %17 = arith.addf %15, %16 : vector<16x1xf32>
    %18 = math.rsqrt %17 : vector<16x1xf32>
    %19 = vector.broadcast %18 : vector<16x1xf32> to vector<16x128xf32>
    %20 = arith.mulf %10, %19 : vector<16x128xf32>
    %c0_9 = arith.constant 0 : index
    %c0_10 = arith.constant 0 : index
    %21 = vector.load %arg4[%c0_9, %c0_10] : memref<1x128xf32, #tpu.memory_space<vmem>>, vector<1x128xf32>
    %22 = vector.broadcast %21 : vector<1x128xf32> to vector<16x128xf32>
    %23 = arith.mulf %20, %22 : vector<16x128xf32>
    %c0_11 = arith.constant 0 : index
    %c0_12 = arith.constant 0 : index
    %24 = vector.load %arg5[%c0_11, %c0_12] : memref<1x128xf32, #tpu.memory_space<vmem>>, vector<1x128xf32>
    %25 = vector.broadcast %24 : vector<1x128xf32> to vector<16x128xf32>
    %26 = arith.addf %23, %25 : vector<16x128xf32>
    %27 = arith.truncf %26 : vector<16x128xf32> to vector<16x128xbf16>
    %c0_13 = arith.constant 0 : index
    %c0_14 = arith.constant 0 : index
    %28 = vector.load %arg6[%c0_13, %c0_14] : memref<16x128xbf16, #tpu.memory_space<vmem>>, vector<16x128xbf16>
    tpu.vector_store %arg6[%c0_13, %c0_14], %27 {strides = array<i32>} : memref<16x128xbf16, #tpu.memory_space<vmem>>, vector<16x128xbf16>,
    return
  }
  func.func @transform_0(%arg0: i32) -> (i32, i32) {
    %c0_i32 = arith.constant 0 : i32
    %c0_i32_0 = arith.constant 0 : i32
    return %arg0, %c0_i32 : i32, i32
  }
  func.func @transform_1(%arg0: i32) -> (i32, i32) {
    %c0_i32 = arith.constant 0 : i32
    %c0_i32_0 = arith.constant 0 : i32
    return %arg0, %c0_i32 : i32, i32
  }
  func.func @transform_2(%arg0: i32) -> (i32, i32) {
    %c0_i32 = arith.constant 0 : i32
    %c0_i32_0 = arith.constant 0 : i32
    return %arg0, %c0_i32 : i32, i32
  }
  func.func @transform_3(%arg0: i32) -> (i32, i32) {
    %c0_i32 = arith.constant 0 : i32
    %c0_i32_0 = arith.constant 0 : i32
    %c0_i32_1 = arith.constant 0 : i32
    return %c0_i32, %c0_i32_0 : i32, i32
  }
  func.func @transform_4(%arg0: i32) -> (i32, i32) {
    %c0_i32 = arith.constant 0 : i32
    %c0_i32_0 = arith.constant 0 : i32
    %c0_i32_1 = arith.constant 0 : i32
    return %c0_i32, %c0_i32_0 : i32, i32
  }
  func.func @transform_5(%arg0: i32) -> (i32, i32) {
    %c0_i32 = arith.constant 0 : i32
    %c0_i32_0 = arith.constant 0 : i32
    return %arg0, %c0_i32 : i32, i32
  }
}

module attributes {stable_mosaic.version = 11 : i64} {
  func.func @_attn_layer_kernel(%arg0: i32, %arg1: memref<1x8x128xbf16, #tpu.memory_space<vmem>>, %arg2: memref<1x1x8xf32, #tpu.memory_space<vmem>>, %arg3: memref<128x384xbf16, #tpu.memory_space<vmem>>, %arg4: memref<1x384xf32, #tpu.memory_space<vmem>>, %arg5: memref<128x128xbf16, #tpu.memory_space<vmem>>, %arg6: memref<1x128xf32, #tpu.memory_space<vmem>>, %arg7: memref<1x128xf32, #tpu.memory_space<vmem>>, %arg8: memref<1x128xf32, #tpu.memory_space<vmem>>, %arg9: memref<1x8x128xbf16, #tpu.memory_space<vmem>>) attributes {dimension_semantics = [#tpu.dimension_semantics<parallel>], iteration_bounds = array<i64: 2>, scalar_prefetch = 0 : i64, scratch_operands = 0 : i64, tpu.core_type = #tpu.core_type<tc>, window_params = [{transform_indices = @transform_0, window_bounds = array<i64: 1, 8, 128>}, {transform_indices = @transform_1, window_bounds = array<i64: 1, 1, 8>}, {pipeline_mode = #tpu.pipeline_mode<synchronous>, transform_indices = @transform_2, window_bounds = array<i64: 128, 384>}, {pipeline_mode = #tpu.pipeline_mode<synchronous>, transform_indices = @transform_3, window_bounds = array<i64: 1, 384>}, {pipeline_mode = #tpu.pipeline_mode<synchronous>, transform_indices = @transform_4, window_bounds = array<i64: 128, 128>}, {pipeline_mode = #tpu.pipeline_mode<synchronous>, transform_indices = @transform_5, window_bounds = array<i64: 1, 128>}, {pipeline_mode = #tpu.pipeline_mode<synchronous>, transform_indices = @transform_6, window_bounds = array<i64: 1, 128>}, {pipeline_mode = #tpu.pipeline_mode<synchronous>, transform_indices = @transform_7, window_bounds = array<i64: 1, 128>}, {transform_indices = @transform_8, window_bounds = array<i64: 1, 8, 128>}]} {
    %c0 = arith.constant 0 : index
    %c0_0 = arith.constant 0 : index
    %c0_1 = arith.constant 0 : index
    %0 = vector.load %arg1[%c0, %c0_0, %c0_1] : memref<1x8x128xbf16, #tpu.memory_space<vmem>>, vector<1x8x128xbf16>
    %1 = vector.shape_cast %0 : vector<1x8x128xbf16> to vector<8x128xbf16>
    %c0_2 = arith.constant 0 : index
    %c0_3 = arith.constant 0 : index
    %c0_4 = arith.constant 0 : index
    %2 = vector.load %arg2[%c0_2, %c0_3, %c0_4] : memref<1x1x8xf32, #tpu.memory_space<vmem>>, vector<1x1x8xf32>
    %3 = vector.shape_cast %2 : vector<1x1x8xf32> to vector<1x8xf32>
    %c0_5 = arith.constant 0 : index
    %c0_6 = arith.constant 0 : index
    %4 = vector.load %arg3[%c0_5, %c0_6] : memref<128x384xbf16, #tpu.memory_space<vmem>>, vector<128x384xbf16>
    %cst = arith.constant dense<0.000000e+00> : vector<8x384xf32>
    %5 = tpu.matmul %1, %4, %cst {dimension_numbers = #tpu.dot_dimension_numbers<[1], [0], [0], [1], [0, 0, 1, 1], [], []>} : vector<8x128xbf16>, vector<128x384xbf16>, vector<8x384xf32> -> vector<8x384xf32>
    %c0_7 = arith.constant 0 : index
    %c0_8 = arith.constant 0 : index
    %6 = vector.load %arg4[%c0_7, %c0_8] : memref<1x384xf32, #tpu.memory_space<vmem>>, vector<1x384xf32>
    %7 = vector.broadcast %6 : vector<1x384xf32> to vector<8x384xf32>
    %8 = arith.addf %5, %7 : vector<8x384xf32>
    %9 = vector.extract_strided_slice %8 {offsets = [0, 0], sizes = [8, 128], strides = [1, 1]} : vector<8x384xf32> to vector<8x128xf32>
    %10 = vector.extract_strided_slice %8 {offsets = [0, 128], sizes = [8, 128], strides = [1, 1]} : vector<8x384xf32> to vector<8x128xf32>
    %11 = vector.extract_strided_slice %8 {offsets = [0, 256], sizes = [8, 128], strides = [1, 1]} : vector<8x384xf32> to vector<8x128xf32>
    %12 = vector.extract_strided_slice %9 {offsets = [0, 0], sizes = [8, 32], strides = [1, 1]} : vector<8x128xf32> to vector<8x32xf32>
    %13 = vector.extract_strided_slice %10 {offsets = [0, 0], sizes = [8, 32], strides = [1, 1]} : vector<8x128xf32> to vector<8x32xf32>
    %14 = vector.extract_strided_slice %11 {offsets = [0, 0], sizes = [8, 32], strides = [1, 1]} : vector<8x128xf32> to vector<8x32xf32>
    %15 = arith.truncf %12 : vector<8x32xf32> to vector<8x32xbf16>
    %16 = arith.truncf %13 : vector<8x32xf32> to vector<8x32xbf16>
    %cst_9 = arith.constant dense<0.000000e+00> : vector<8x8xf32>
    %17 = tpu.matmul %15, %16, %cst_9 {dimension_numbers = #tpu.dot_dimension_numbers<[1], [1], [0], [0], [0, 0, 1, 0], [], []>} : vector<8x32xbf16>, vector<8x32xbf16>, vector<8x8xf32> -> vector<8x8xf32>
    %18 = vector.broadcast %3 : vector<1x8xf32> to vector<8x8xf32>
    %19 = arith.addf %17, %18 : vector<8x8xf32>
    %cst_10 = arith.constant dense<0xFF800000> : vector<8xf32>
    %20 = vector.multi_reduction <maximumf>, %19, %cst_10 [1] : vector<8x8xf32> to vector<8xf32>
    %21 = vector.shape_cast %20 : vector<8xf32> to vector<8x1xf32>
    %22 = vector.broadcast %21 : vector<8x1xf32> to vector<8x8xf32>
    %23 = arith.subf %19, %22 : vector<8x8xf32>
    %24 = math.exp %23 : vector<8x8xf32>
    %cst_11 = arith.constant dense<0.000000e+00> : vector<8xf32>
    %25 = vector.multi_reduction <add>, %24, %cst_11 [1] : vector<8x8xf32> to vector<8xf32>
    %26 = vector.shape_cast %25 : vector<8xf32> to vector<8x1xf32>
    %27 = tpu.reciprocal %26 {approx = true} : vector<8x1xf32> -> vector<8x1xf32>
    %28 = vector.broadcast %27 : vector<8x1xf32> to vector<8x8xf32>
    %29 = arith.mulf %24, %28 : vector<8x8xf32>
    %30 = arith.truncf %29 : vector<8x8xf32> to vector<8x8xbf16>
    %31 = arith.truncf %14 : vector<8x32xf32> to vector<8x32xbf16>
    %cst_12 = arith.constant dense<0.000000e+00> : vector<8x32xf32>
    %32 = tpu.matmul %30, %31, %cst_12 {dimension_numbers = #tpu.dot_dimension_numbers<[1], [0], [0], [1], [0, 0, 1, 1], [], []>} : vector<8x8xbf16>, vector<8x32xbf16>, vector<8x32xf32> -> vector<8x32xf32>
    %33 = vector.extract_strided_slice %9 {offsets = [0, 32], sizes = [8, 32], strides = [1, 1]} : vector<8x128xf32> to vector<8x32xf32>
    %34 = vector.extract_strided_slice %10 {offsets = [0, 32], sizes = [8, 32], strides = [1, 1]} : vector<8x128xf32> to vector<8x32xf32>
    %35 = vector.extract_strided_slice %11 {offsets = [0, 32], sizes = [8, 32], strides = [1, 1]} : vector<8x128xf32> to vector<8x32xf32>
    %36 = arith.truncf %33 : vector<8x32xf32> to vector<8x32xbf16>
    %37 = arith.truncf %34 : vector<8x32xf32> to vector<8x32xbf16>
    %cst_13 = arith.constant dense<0.000000e+00> : vector<8x8xf32>
    %38 = tpu.matmul %36, %37, %cst_13 {dimension_numbers = #tpu.dot_dimension_numbers<[1], [1], [0], [0], [0, 0, 1, 0], [], []>} : vector<8x32xbf16>, vector<8x32xbf16>, vector<8x8xf32> -> vector<8x8xf32>
    %39 = vector.broadcast %3 : vector<1x8xf32> to vector<8x8xf32>
    %40 = arith.addf %38, %39 : vector<8x8xf32>
    %cst_14 = arith.constant dense<0xFF800000> : vector<8xf32>
    %41 = vector.multi_reduction <maximumf>, %40, %cst_14 [1] : vector<8x8xf32> to vector<8xf32>
    %42 = vector.shape_cast %41 : vector<8xf32> to vector<8x1xf32>
    %43 = vector.broadcast %42 : vector<8x1xf32> to vector<8x8xf32>
    %44 = arith.subf %40, %43 : vector<8x8xf32>
    %45 = math.exp %44 : vector<8x8xf32>
    %cst_15 = arith.constant dense<0.000000e+00> : vector<8xf32>
    %46 = vector.multi_reduction <add>, %45, %cst_15 [1] : vector<8x8xf32> to vector<8xf32>
    %47 = vector.shape_cast %46 : vector<8xf32> to vector<8x1xf32>
    %48 = tpu.reciprocal %47 {approx = true} : vector<8x1xf32> -> vector<8x1xf32>
    %49 = vector.broadcast %48 : vector<8x1xf32> to vector<8x8xf32>
    %50 = arith.mulf %45, %49 : vector<8x8xf32>
    %51 = arith.truncf %50 : vector<8x8xf32> to vector<8x8xbf16>
    %52 = arith.truncf %35 : vector<8x32xf32> to vector<8x32xbf16>
    %cst_16 = arith.constant dense<0.000000e+00> : vector<8x32xf32>
    %53 = tpu.matmul %51, %52, %cst_16 {dimension_numbers = #tpu.dot_dimension_numbers<[1], [0], [0], [1], [0, 0, 1, 1], [], []>} : vector<8x8xbf16>, vector<8x32xbf16>, vector<8x32xf32> -> vector<8x32xf32>
    %54 = vector.extract_strided_slice %9 {offsets = [0, 64], sizes = [8, 32], strides = [1, 1]} : vector<8x128xf32> to vector<8x32xf32>
    %55 = vector.extract_strided_slice %10 {offsets = [0, 64], sizes = [8, 32], strides = [1, 1]} : vector<8x128xf32> to vector<8x32xf32>
    %56 = vector.extract_strided_slice %11 {offsets = [0, 64], sizes = [8, 32], strides = [1, 1]} : vector<8x128xf32> to vector<8x32xf32>
    %57 = arith.truncf %54 : vector<8x32xf32> to vector<8x32xbf16>
    %58 = arith.truncf %55 : vector<8x32xf32> to vector<8x32xbf16>
    %cst_17 = arith.constant dense<0.000000e+00> : vector<8x8xf32>
    %59 = tpu.matmul %57, %58, %cst_17 {dimension_numbers = #tpu.dot_dimension_numbers<[1], [1], [0], [0], [0, 0, 1, 0], [], []>} : vector<8x32xbf16>, vector<8x32xbf16>, vector<8x8xf32> -> vector<8x8xf32>
    %60 = vector.broadcast %3 : vector<1x8xf32> to vector<8x8xf32>
    %61 = arith.addf %59, %60 : vector<8x8xf32>
    %cst_18 = arith.constant dense<0xFF800000> : vector<8xf32>
    %62 = vector.multi_reduction <maximumf>, %61, %cst_18 [1] : vector<8x8xf32> to vector<8xf32>
    %63 = vector.shape_cast %62 : vector<8xf32> to vector<8x1xf32>
    %64 = vector.broadcast %63 : vector<8x1xf32> to vector<8x8xf32>
    %65 = arith.subf %61, %64 : vector<8x8xf32>
    %66 = math.exp %65 : vector<8x8xf32>
    %cst_19 = arith.constant dense<0.000000e+00> : vector<8xf32>
    %67 = vector.multi_reduction <add>, %66, %cst_19 [1] : vector<8x8xf32> to vector<8xf32>
    %68 = vector.shape_cast %67 : vector<8xf32> to vector<8x1xf32>
    %69 = tpu.reciprocal %68 {approx = true} : vector<8x1xf32> -> vector<8x1xf32>
    %70 = vector.broadcast %69 : vector<8x1xf32> to vector<8x8xf32>
    %71 = arith.mulf %66, %70 : vector<8x8xf32>
    %72 = arith.truncf %71 : vector<8x8xf32> to vector<8x8xbf16>
    %73 = arith.truncf %56 : vector<8x32xf32> to vector<8x32xbf16>
    %cst_20 = arith.constant dense<0.000000e+00> : vector<8x32xf32>
    %74 = tpu.matmul %72, %73, %cst_20 {dimension_numbers = #tpu.dot_dimension_numbers<[1], [0], [0], [1], [0, 0, 1, 1], [], []>} : vector<8x8xbf16>, vector<8x32xbf16>, vector<8x32xf32> -> vector<8x32xf32>
    %75 = vector.extract_strided_slice %9 {offsets = [0, 96], sizes = [8, 32], strides = [1, 1]} : vector<8x128xf32> to vector<8x32xf32>
    %76 = vector.extract_strided_slice %10 {offsets = [0, 96], sizes = [8, 32], strides = [1, 1]} : vector<8x128xf32> to vector<8x32xf32>
    %77 = vector.extract_strided_slice %11 {offsets = [0, 96], sizes = [8, 32], strides = [1, 1]} : vector<8x128xf32> to vector<8x32xf32>
    %78 = arith.truncf %75 : vector<8x32xf32> to vector<8x32xbf16>
    %79 = arith.truncf %76 : vector<8x32xf32> to vector<8x32xbf16>
    %cst_21 = arith.constant dense<0.000000e+00> : vector<8x8xf32>
    %80 = tpu.matmul %78, %79, %cst_21 {dimension_numbers = #tpu.dot_dimension_numbers<[1], [1], [0], [0], [0, 0, 1, 0], [], []>} : vector<8x32xbf16>, vector<8x32xbf16>, vector<8x8xf32> -> vector<8x8xf32>
    %81 = vector.broadcast %3 : vector<1x8xf32> to vector<8x8xf32>
    %82 = arith.addf %80, %81 : vector<8x8xf32>
    %cst_22 = arith.constant dense<0xFF800000> : vector<8xf32>
    %83 = vector.multi_reduction <maximumf>, %82, %cst_22 [1] : vector<8x8xf32> to vector<8xf32>
    %84 = vector.shape_cast %83 : vector<8xf32> to vector<8x1xf32>
    %85 = vector.broadcast %84 : vector<8x1xf32> to vector<8x8xf32>
    %86 = arith.subf %82, %85 : vector<8x8xf32>
    %87 = math.exp %86 : vector<8x8xf32>
    %cst_23 = arith.constant dense<0.000000e+00> : vector<8xf32>
    %88 = vector.multi_reduction <add>, %87, %cst_23 [1] : vector<8x8xf32> to vector<8xf32>
    %89 = vector.shape_cast %88 : vector<8xf32> to vector<8x1xf32>
    %90 = tpu.reciprocal %89 {approx = true} : vector<8x1xf32> -> vector<8x1xf32>
    %91 = vector.broadcast %90 : vector<8x1xf32> to vector<8x8xf32>
    %92 = arith.mulf %87, %91 : vector<8x8xf32>
    %93 = arith.truncf %92 : vector<8x8xf32> to vector<8x8xbf16>
    %94 = arith.truncf %77 : vector<8x32xf32> to vector<8x32xbf16>
    %cst_24 = arith.constant dense<0.000000e+00> : vector<8x32xf32>
    %95 = tpu.matmul %93, %94, %cst_24 {dimension_numbers = #tpu.dot_dimension_numbers<[1], [0], [0], [1], [0, 0, 1, 1], [], []>} : vector<8x8xbf16>, vector<8x32xbf16>, vector<8x32xf32> -> vector<8x32xf32>
    %96 = tpu.concatenate %32, %53, %74, %95 in 1 : vector<8x32xf32>, vector<8x32xf32>, vector<8x32xf32>, vector<8x32xf32> -> vector<8x128xf32>
    %c0_25 = arith.constant 0 : index
    %c0_26 = arith.constant 0 : index
    %97 = vector.load %arg5[%c0_25, %c0_26] : memref<128x128xbf16, #tpu.memory_space<vmem>>, vector<128x128xbf16>
    %98 = arith.truncf %96 : vector<8x128xf32> to vector<8x128xbf16>
    %cst_27 = arith.constant dense<0.000000e+00> : vector<8x128xf32>
    %99 = tpu.matmul %98, %97, %cst_27 {dimension_numbers = #tpu.dot_dimension_numbers<[1], [0], [0], [1], [0, 0, 1, 1], [], []>} : vector<8x128xbf16>, vector<128x128xbf16>, vector<8x128xf32> -> vector<8x128xf32>
    %c0_28 = arith.constant 0 : index
    %c0_29 = arith.constant 0 : index
    %100 = vector.load %arg6[%c0_28, %c0_29] : memref<1x128xf32, #tpu.memory_space<vmem>>, vector<1x128xf32>
    %101 = vector.broadcast %100 : vector<1x128xf32> to vector<8x128xf32>
    %102 = arith.addf %99, %101 : vector<8x128xf32>
    %103 = arith.extf %1 : vector<8x128xbf16> to vector<8x128xf32>
    %104 = arith.addf %102, %103 : vector<8x128xf32>
    %cst_30 = arith.constant dense<0.000000e+00> : vector<8xf32>
    %105 = vector.multi_reduction <add>, %104, %cst_30 [1] : vector<8x128xf32> to vector<8xf32>
    %106 = vector.shape_cast %105 : vector<8xf32> to vector<8x1xf32>
    %cst_31 = arith.constant 1.280000e+02 : f32
    %107 = vector.broadcast %cst_31 : f32 to vector<8x1xf32>
    %108 = arith.divf %106, %107 : vector<8x1xf32>
    %109 = vector.broadcast %108 : vector<8x1xf32> to vector<8x128xf32>
    %110 = arith.subf %104, %109 : vector<8x128xf32>
    %111 = arith.mulf %110, %110 : vector<8x128xf32>
    %cst_32 = arith.constant dense<0.000000e+00> : vector<8xf32>
    %112 = vector.multi_reduction <add>, %111, %cst_32 [1] : vector<8x128xf32> to vector<8xf32>
    %113 = vector.shape_cast %112 : vector<8xf32> to vector<8x1xf32>
    %cst_33 = arith.constant 1.280000e+02 : f32
    %114 = vector.broadcast %cst_33 : f32 to vector<8x1xf32>
    %115 = arith.divf %113, %114 : vector<8x1xf32>
    %cst_34 = arith.constant 9.99999996E-13 : f32
    %116 = vector.broadcast %cst_34 : f32 to vector<8x1xf32>
    %117 = arith.addf %115, %116 : vector<8x1xf32>
    %118 = math.rsqrt %117 : vector<8x1xf32>
    %119 = vector.broadcast %118 : vector<8x1xf32> to vector<8x128xf32>
    %120 = arith.mulf %110, %119 : vector<8x128xf32>
    %c0_35 = arith.constant 0 : index
    %c0_36 = arith.constant 0 : index
    %121 = vector.load %arg7[%c0_35, %c0_36] : memref<1x128xf32, #tpu.memory_space<vmem>>, vector<1x128xf32>
    %122 = vector.broadcast %121 : vector<1x128xf32> to vector<8x128xf32>
    %123 = arith.mulf %120, %122 : vector<8x128xf32>
    %c0_37 = arith.constant 0 : index
    %c0_38 = arith.constant 0 : index
    %124 = vector.load %arg8[%c0_37, %c0_38] : memref<1x128xf32, #tpu.memory_space<vmem>>, vector<1x128xf32>
    %125 = vector.broadcast %124 : vector<1x128xf32> to vector<8x128xf32>
    %126 = arith.addf %123, %125 : vector<8x128xf32>
    %127 = arith.truncf %126 : vector<8x128xf32> to vector<8x128xbf16>
    %c0_39 = arith.constant 0 : index
    %c0_40 = arith.constant 0 : index
    %c0_41 = arith.constant 0 : index
    %128 = vector.load %arg9[%c0_39, %c0_40, %c0_41] : memref<1x8x128xbf16, #tpu.memory_space<vmem>>, vector<1x8x128xbf16>
    %129 = vector.shape_cast %128 : vector<1x8x128xbf16> to vector<8x128xbf16>
    %130 = vector.shape_cast %127 : vector<8x128xbf16> to vector<1x8x128xbf16>
    tpu.vector_store %arg9[%c0_39, %c0_40, %c0_41], %130 {strides = array<i32>} : memref<1x8x128xbf16, #tpu.memory_space<vmem>>, vector<1x8x128xbf16>,
    return
  }
  func.func @transform_0(%arg0: i32) -> (i32, i32, i32) {
    %c0_i32 = arith.constant 0 : i32
    %c0_i32_0 = arith.constant 0 : i32
    %c0_i32_1 = arith.constant 0 : i32
    return %arg0, %c0_i32, %c0_i32_0 : i32, i32, i32
  }
  func.func @transform_1(%arg0: i32) -> (i32, i32, i32) {
    %c0_i32 = arith.constant 0 : i32
    %c0_i32_0 = arith.constant 0 : i32
    %c0_i32_1 = arith.constant 0 : i32
    return %arg0, %c0_i32, %c0_i32_0 : i32, i32, i32
  }
  func.func @transform_2(%arg0: i32) -> (i32, i32) {
    %c0_i32 = arith.constant 0 : i32
    %c0_i32_0 = arith.constant 0 : i32
    %c0_i32_1 = arith.constant 0 : i32
    return %c0_i32, %c0_i32_0 : i32, i32
  }
  func.func @transform_3(%arg0: i32) -> (i32, i32) {
    %c0_i32 = arith.constant 0 : i32
    %c0_i32_0 = arith.constant 0 : i32
    %c0_i32_1 = arith.constant 0 : i32
    return %c0_i32, %c0_i32_0 : i32, i32
  }
  func.func @transform_4(%arg0: i32) -> (i32, i32) {
    %c0_i32 = arith.constant 0 : i32
    %c0_i32_0 = arith.constant 0 : i32
    %c0_i32_1 = arith.constant 0 : i32
    return %c0_i32, %c0_i32_0 : i32, i32
  }
  func.func @transform_5(%arg0: i32) -> (i32, i32) {
    %c0_i32 = arith.constant 0 : i32
    %c0_i32_0 = arith.constant 0 : i32
    %c0_i32_1 = arith.constant 0 : i32
    return %c0_i32, %c0_i32_0 : i32, i32
  }
  func.func @transform_6(%arg0: i32) -> (i32, i32) {
    %c0_i32 = arith.constant 0 : i32
    %c0_i32_0 = arith.constant 0 : i32
    %c0_i32_1 = arith.constant 0 : i32
    return %c0_i32, %c0_i32_0 : i32, i32
  }
  func.func @transform_7(%arg0: i32) -> (i32, i32) {
    %c0_i32 = arith.constant 0 : i32
    %c0_i32_0 = arith.constant 0 : i32
    %c0_i32_1 = arith.constant 0 : i32
    return %c0_i32, %c0_i32_0 : i32, i32
  }
  func.func @transform_8(%arg0: i32) -> (i32, i32, i32) {
    %c0_i32 = arith.constant 0 : i32
    %c0_i32_0 = arith.constant 0 : i32
    %c0_i32_1 = arith.constant 0 : i32
    return %arg0, %c0_i32, %c0_i32_0 : i32, i32, i32
  }
}

module attributes {stable_mosaic.version = 11 : i64} {
  func.func @_ffn_kernel(%arg0: i32, %arg1: memref<16x128xbf16, #tpu.memory_space<vmem>>, %arg2: memref<128x512xbf16, #tpu.memory_space<vmem>>, %arg3: memref<1x512xf32, #tpu.memory_space<vmem>>, %arg4: memref<512x128xbf16, #tpu.memory_space<vmem>>, %arg5: memref<1x128xf32, #tpu.memory_space<vmem>>, %arg6: memref<1x128xf32, #tpu.memory_space<vmem>>, %arg7: memref<1x128xf32, #tpu.memory_space<vmem>>, %arg8: memref<16x128xbf16, #tpu.memory_space<vmem>>) attributes {dimension_semantics = [#tpu.dimension_semantics<parallel>], iteration_bounds = array<i64: 1>, scalar_prefetch = 0 : i64, scratch_operands = 0 : i64, tpu.core_type = #tpu.core_type<tc>, window_params = [{transform_indices = @transform_0, window_bounds = array<i64: 16, 128>}, {pipeline_mode = #tpu.pipeline_mode<synchronous>, transform_indices = @transform_1, window_bounds = array<i64: 128, 512>}, {pipeline_mode = #tpu.pipeline_mode<synchronous>, transform_indices = @transform_2, window_bounds = array<i64: 1, 512>}, {pipeline_mode = #tpu.pipeline_mode<synchronous>, transform_indices = @transform_3, window_bounds = array<i64: 512, 128>}, {pipeline_mode = #tpu.pipeline_mode<synchronous>, transform_indices = @transform_4, window_bounds = array<i64: 1, 128>}, {pipeline_mode = #tpu.pipeline_mode<synchronous>, transform_indices = @transform_5, window_bounds = array<i64: 1, 128>}, {pipeline_mode = #tpu.pipeline_mode<synchronous>, transform_indices = @transform_6, window_bounds = array<i64: 1, 128>}, {transform_indices = @transform_7, window_bounds = array<i64: 16, 128>}]} {
    %c0 = arith.constant 0 : index
    %c0_0 = arith.constant 0 : index
    %0 = vector.load %arg1[%c0, %c0_0] : memref<16x128xbf16, #tpu.memory_space<vmem>>, vector<16x128xbf16>
    %c0_1 = arith.constant 0 : index
    %c0_2 = arith.constant 0 : index
    %1 = vector.load %arg2[%c0_1, %c0_2] : memref<128x512xbf16, #tpu.memory_space<vmem>>, vector<128x512xbf16>
    %cst = arith.constant dense<0.000000e+00> : vector<16x512xf32>
    %2 = tpu.matmul %0, %1, %cst {dimension_numbers = #tpu.dot_dimension_numbers<[1], [0], [0], [1], [0, 0, 1, 1], [], []>} : vector<16x128xbf16>, vector<128x512xbf16>, vector<16x512xf32> -> vector<16x512xf32>
    %c0_3 = arith.constant 0 : index
    %c0_4 = arith.constant 0 : index
    %3 = vector.load %arg3[%c0_3, %c0_4] : memref<1x512xf32, #tpu.memory_space<vmem>>, vector<1x512xf32>
    %4 = vector.broadcast %3 : vector<1x512xf32> to vector<16x512xf32>
    %5 = arith.addf %2, %4 : vector<16x512xf32>
    %6 = arith.mulf %5, %5 : vector<16x512xf32>
    %7 = arith.mulf %5, %6 : vector<16x512xf32>
    %cst_5 = arith.constant 4.471500e-02 : f32
    %8 = vector.broadcast %cst_5 : f32 to vector<16x512xf32>
    %9 = arith.mulf %8, %7 : vector<16x512xf32>
    %10 = arith.addf %5, %9 : vector<16x512xf32>
    %cst_6 = arith.constant 0.797884583 : f32
    %11 = vector.broadcast %cst_6 : f32 to vector<16x512xf32>
    %12 = arith.mulf %11, %10 : vector<16x512xf32>
    %13 = math.tanh %12 : vector<16x512xf32>
    %cst_7 = arith.constant 1.000000e+00 : f32
    %14 = vector.broadcast %cst_7 : f32 to vector<16x512xf32>
    %15 = arith.addf %14, %13 : vector<16x512xf32>
    %cst_8 = arith.constant 5.000000e-01 : f32
    %16 = vector.broadcast %cst_8 : f32 to vector<16x512xf32>
    %17 = arith.mulf %16, %15 : vector<16x512xf32>
    %18 = arith.mulf %5, %17 : vector<16x512xf32>
    %c0_9 = arith.constant 0 : index
    %c0_10 = arith.constant 0 : index
    %19 = vector.load %arg4[%c0_9, %c0_10] : memref<512x128xbf16, #tpu.memory_space<vmem>>, vector<512x128xbf16>
    %20 = arith.truncf %18 : vector<16x512xf32> to vector<16x512xbf16>
    %cst_11 = arith.constant dense<0.000000e+00> : vector<16x128xf32>
    %21 = tpu.matmul %20, %19, %cst_11 {dimension_numbers = #tpu.dot_dimension_numbers<[1], [0], [0], [1], [0, 0, 1, 1], [], []>} : vector<16x512xbf16>, vector<512x128xbf16>, vector<16x128xf32> -> vector<16x128xf32>
    %c0_12 = arith.constant 0 : index
    %c0_13 = arith.constant 0 : index
    %22 = vector.load %arg5[%c0_12, %c0_13] : memref<1x128xf32, #tpu.memory_space<vmem>>, vector<1x128xf32>
    %23 = vector.broadcast %22 : vector<1x128xf32> to vector<16x128xf32>
    %24 = arith.addf %21, %23 : vector<16x128xf32>
    %25 = arith.extf %0 : vector<16x128xbf16> to vector<16x128xf32>
    %26 = arith.addf %24, %25 : vector<16x128xf32>
    %cst_14 = arith.constant dense<0.000000e+00> : vector<16xf32>
    %27 = vector.multi_reduction <add>, %26, %cst_14 [1] : vector<16x128xf32> to vector<16xf32>
    %28 = vector.shape_cast %27 : vector<16xf32> to vector<16x1xf32>
    %cst_15 = arith.constant 1.280000e+02 : f32
    %29 = vector.broadcast %cst_15 : f32 to vector<16x1xf32>
    %30 = arith.divf %28, %29 : vector<16x1xf32>
    %31 = vector.broadcast %30 : vector<16x1xf32> to vector<16x128xf32>
    %32 = arith.subf %26, %31 : vector<16x128xf32>
    %33 = arith.mulf %32, %32 : vector<16x128xf32>
    %cst_16 = arith.constant dense<0.000000e+00> : vector<16xf32>
    %34 = vector.multi_reduction <add>, %33, %cst_16 [1] : vector<16x128xf32> to vector<16xf32>
    %35 = vector.shape_cast %34 : vector<16xf32> to vector<16x1xf32>
    %cst_17 = arith.constant 1.280000e+02 : f32
    %36 = vector.broadcast %cst_17 : f32 to vector<16x1xf32>
    %37 = arith.divf %35, %36 : vector<16x1xf32>
    %cst_18 = arith.constant 9.99999996E-13 : f32
    %38 = vector.broadcast %cst_18 : f32 to vector<16x1xf32>
    %39 = arith.addf %37, %38 : vector<16x1xf32>
    %40 = math.rsqrt %39 : vector<16x1xf32>
    %41 = vector.broadcast %40 : vector<16x1xf32> to vector<16x128xf32>
    %42 = arith.mulf %32, %41 : vector<16x128xf32>
    %c0_19 = arith.constant 0 : index
    %c0_20 = arith.constant 0 : index
    %43 = vector.load %arg6[%c0_19, %c0_20] : memref<1x128xf32, #tpu.memory_space<vmem>>, vector<1x128xf32>
    %44 = vector.broadcast %43 : vector<1x128xf32> to vector<16x128xf32>
    %45 = arith.mulf %42, %44 : vector<16x128xf32>
    %c0_21 = arith.constant 0 : index
    %c0_22 = arith.constant 0 : index
    %46 = vector.load %arg7[%c0_21, %c0_22] : memref<1x128xf32, #tpu.memory_space<vmem>>, vector<1x128xf32>
    %47 = vector.broadcast %46 : vector<1x128xf32> to vector<16x128xf32>
    %48 = arith.addf %45, %47 : vector<16x128xf32>
    %49 = arith.truncf %48 : vector<16x128xf32> to vector<16x128xbf16>
    %c0_23 = arith.constant 0 : index
    %c0_24 = arith.constant 0 : index
    %50 = vector.load %arg8[%c0_23, %c0_24] : memref<16x128xbf16, #tpu.memory_space<vmem>>, vector<16x128xbf16>
    tpu.vector_store %arg8[%c0_23, %c0_24], %49 {strides = array<i32>} : memref<16x128xbf16, #tpu.memory_space<vmem>>, vector<16x128xbf16>,
    return
  }
  func.func @transform_0(%arg0: i32) -> (i32, i32) {
    %c0_i32 = arith.constant 0 : i32
    %c0_i32_0 = arith.constant 0 : i32
    return %arg0, %c0_i32 : i32, i32
  }
  func.func @transform_1(%arg0: i32) -> (i32, i32) {
    %c0_i32 = arith.constant 0 : i32
    %c0_i32_0 = arith.constant 0 : i32
    %c0_i32_1 = arith.constant 0 : i32
    return %c0_i32, %c0_i32_0 : i32, i32
  }
  func.func @transform_2(%arg0: i32) -> (i32, i32) {
    %c0_i32 = arith.constant 0 : i32
    %c0_i32_0 = arith.constant 0 : i32
    %c0_i32_1 = arith.constant 0 : i32
    return %c0_i32, %c0_i32_0 : i32, i32
  }
  func.func @transform_3(%arg0: i32) -> (i32, i32) {
    %c0_i32 = arith.constant 0 : i32
    %c0_i32_0 = arith.constant 0 : i32
    %c0_i32_1 = arith.constant 0 : i32
    return %c0_i32, %c0_i32_0 : i32, i32
  }
  func.func @transform_4(%arg0: i32) -> (i32, i32) {
    %c0_i32 = arith.constant 0 : i32
    %c0_i32_0 = arith.constant 0 : i32
    %c0_i32_1 = arith.constant 0 : i32
    return %c0_i32, %c0_i32_0 : i32, i32
  }
  func.func @transform_5(%arg0: i32) -> (i32, i32) {
    %c0_i32 = arith.constant 0 : i32
    %c0_i32_0 = arith.constant 0 : i32
    %c0_i32_1 = arith.constant 0 : i32
    return %c0_i32, %c0_i32_0 : i32, i32
  }
  func.func @transform_6(%arg0: i32) -> (i32, i32) {
    %c0_i32 = arith.constant 0 : i32
    %c0_i32_0 = arith.constant 0 : i32
    %c0_i32_1 = arith.constant 0 : i32
    return %c0_i32, %c0_i32_0 : i32, i32
  }
  func.func @transform_7(%arg0: i32) -> (i32, i32) {
    %c0_i32 = arith.constant 0 : i32
    %c0_i32_0 = arith.constant 0 : i32
    return %arg0, %c0_i32 : i32, i32
  }
}

module attributes {stable_mosaic.version = 11 : i64} {
  func.func @_tail_kernel(%arg0: i32, %arg1: memref<1x8x128xbf16, #tpu.memory_space<vmem>>, %arg2: memref<1x8x1xf32, #tpu.memory_space<vmem>>, %arg3: memref<1x8x1xf32, #tpu.memory_space<vmem>>, %arg4: memref<1x8x1xf32, #tpu.memory_space<vmem>>, %arg5: memref<128x128xf32, #tpu.memory_space<vmem>>, %arg6: memref<1x128xf32, #tpu.memory_space<vmem>>, %arg7: memref<128x128xf32, #tpu.memory_space<vmem>>, %arg8: memref<1x128xf32, #tpu.memory_space<vmem>>, %arg9: memref<1x384xf32, #tpu.memory_space<vmem>>, %arg10: memref<1x384xf32, #tpu.memory_space<vmem>>, %arg11: memref<384x384xf32, #tpu.memory_space<vmem>>, %arg12: memref<1x384xf32, #tpu.memory_space<vmem>>, %arg13: memref<1x1x384xf32, #tpu.memory_space<vmem>>) attributes {dimension_semantics = [#tpu.dimension_semantics<parallel>], iteration_bounds = array<i64: 2>, scalar_prefetch = 0 : i64, scratch_operands = 0 : i64, tpu.core_type = #tpu.core_type<tc>, window_params = [{transform_indices = @transform_0, window_bounds = array<i64: 1, 8, 128>}, {transform_indices = @transform_1, window_bounds = array<i64: 1, 8, 1>}, {transform_indices = @transform_2, window_bounds = array<i64: 1, 8, 1>}, {transform_indices = @transform_3, window_bounds = array<i64: 1, 8, 1>}, {pipeline_mode = #tpu.pipeline_mode<synchronous>, transform_indices = @transform_4, window_bounds = array<i64: 128, 128>}, {pipeline_mode = #tpu.pipeline_mode<synchronous>, transform_indices = @transform_5, window_bounds = array<i64: 1, 128>}, {pipeline_mode = #tpu.pipeline_mode<synchronous>, transform_indices = @transform_6, window_bounds = array<i64: 128, 128>}, {pipeline_mode = #tpu.pipeline_mode<synchronous>, transform_indices = @transform_7, window_bounds = array<i64: 1, 128>}, {pipeline_mode = #tpu.pipeline_mode<synchronous>, transform_indices = @transform_8, window_bounds = array<i64: 1, 384>}, {pipeline_mode = #tpu.pipeline_mode<synchronous>, transform_indices = @transform_9, window_bounds = array<i64: 1, 384>}, {pipeline_mode = #tpu.pipeline_mode<synchronous>, transform_indices = @transform_10, window_bounds = array<i64: 384, 384>}, {pipeline_mode = #tpu.pipeline_mode<synchronous>, transform_indices = @transform_11, window_bounds = array<i64: 1, 384>}, {transform_indices = @transform_12, window_bounds = array<i64: 1, 1, 384>}]} {
    %c0 = arith.constant 0 : index
    %c0_0 = arith.constant 0 : index
    %c0_1 = arith.constant 0 : index
    %0 = vector.load %arg1[%c0, %c0_0, %c0_1] : memref<1x8x128xbf16, #tpu.memory_space<vmem>>, vector<1x8x128xbf16>
    %1 = arith.extf %0 : vector<1x8x128xbf16> to vector<1x8x128xf32>
    %c0_2 = arith.constant 0 : index
    %c0_3 = arith.constant 0 : index
    %c0_4 = arith.constant 0 : index
    %2 = vector.load %arg2[%c0_2, %c0_3, %c0_4] : memref<1x8x1xf32, #tpu.memory_space<vmem>>, vector<1x8x1xf32>
    %cst = arith.constant 0.000000e+00 : f32
    %3 = vector.broadcast %cst : f32 to vector<1x8x1xf32>
    %4 = arith.cmpf oeq, %2, %3 : vector<1x8x1xf32>
    %cst_5 = arith.constant -1.000000e+09 : f32
    %5 = vector.broadcast %cst_5 : f32 to vector<1x8x1xf32>
    %6 = arith.select %4, %5, %2 : vector<1x8x1xi1>, vector<1x8x1xf32>
    %cst_6 = arith.constant dense<0xFF800000> : vector<1x1xf32>
    %7 = vector.multi_reduction <maximumf>, %6, %cst_6 [1] : vector<1x8x1xf32> to vector<1x1xf32>
    %8 = vector.shape_cast %7 : vector<1x1xf32> to vector<1x1x1xf32>
    %9 = vector.broadcast %8 : vector<1x1x1xf32> to vector<1x8x1xf32>
    %10 = arith.subf %6, %9 : vector<1x8x1xf32>
    %11 = math.exp %10 : vector<1x8x1xf32>
    %cst_7 = arith.constant dense<0.000000e+00> : vector<1x1xf32>
    %12 = vector.multi_reduction <add>, %11, %cst_7 [1] : vector<1x8x1xf32> to vector<1x1xf32>
    %13 = vector.shape_cast %12 : vector<1x1xf32> to vector<1x1x1xf32>
    %14 = tpu.reciprocal %13 {approx = true} : vector<1x1x1xf32> -> vector<1x1x1xf32>
    %15 = vector.broadcast %14 : vector<1x1x1xf32> to vector<1x8x1xf32>
    %16 = arith.mulf %11, %15 : vector<1x8x1xf32>
    %17 = vector.broadcast %16 : vector<1x8x1xf32> to vector<1x8x128xf32>
    %18 = arith.mulf %17, %1 : vector<1x8x128xf32>
    %cst_8 = arith.constant dense<0.000000e+00> : vector<1x128xf32>
    %19 = vector.multi_reduction <add>, %18, %cst_8 [1] : vector<1x8x128xf32> to vector<1x128xf32>
    %c0_9 = arith.constant 0 : index
    %c0_10 = arith.constant 0 : index
    %c0_11 = arith.constant 0 : index
    %20 = vector.load %arg3[%c0_9, %c0_10, %c0_11] : memref<1x8x1xf32, #tpu.memory_space<vmem>>, vector<1x8x1xf32>
    %cst_12 = arith.constant 0.000000e+00 : f32
    %21 = vector.broadcast %cst_12 : f32 to vector<1x8x1xf32>
    %22 = arith.cmpf one, %20, %21 : vector<1x8x1xf32>
    %23 = arith.extui %22 : vector<1x8x1xi1> to vector<1x8x1xi32>
    %24 = arith.sitofp %23 : vector<1x8x1xi32> to vector<1x8x1xf32>
    %cst_13 = arith.constant dense<0.000000e+00> : vector<1x1xf32>
    %25 = vector.multi_reduction <add>, %24, %cst_13 [1] : vector<1x8x1xf32> to vector<1x1xf32>
    %cst_14 = arith.constant 1.000000e+00 : f32
    %26 = vector.broadcast %cst_14 : f32 to vector<1x1xf32>
    %27 = arith.maximumf %25, %26 : vector<1x1xf32>
    %28 = vector.broadcast %20 : vector<1x8x1xf32> to vector<1x8x128xf32>
    %29 = arith.mulf %28, %1 : vector<1x8x128xf32>
    %cst_15 = arith.constant dense<0.000000e+00> : vector<1x128xf32>
    %30 = vector.multi_reduction <add>, %29, %cst_15 [1] : vector<1x8x128xf32> to vector<1x128xf32>
    %31 = tpu.reciprocal %27 {approx = true} : vector<1x1xf32> -> vector<1x1xf32>
    %32 = vector.broadcast %31 : vector<1x1xf32> to vector<1x128xf32>
    %33 = arith.mulf %30, %32 : vector<1x128xf32>
    %c0_16 = arith.constant 0 : index
    %c0_17 = arith.constant 0 : index
    %c0_18 = arith.constant 0 : index
    %34 = vector.load %arg4[%c0_16, %c0_17, %c0_18] : memref<1x8x1xf32, #tpu.memory_space<vmem>>, vector<1x8x1xf32>
    %cst_19 = arith.constant 0.000000e+00 : f32
    %35 = vector.broadcast %cst_19 : f32 to vector<1x8x1xf32>
    %36 = arith.cmpf one, %34, %35 : vector<1x8x1xf32>
    %37 = arith.extui %36 : vector<1x8x1xi1> to vector<1x8x1xi32>
    %38 = arith.sitofp %37 : vector<1x8x1xi32> to vector<1x8x1xf32>
    %cst_20 = arith.constant dense<0.000000e+00> : vector<1x1xf32>
    %39 = vector.multi_reduction <add>, %38, %cst_20 [1] : vector<1x8x1xf32> to vector<1x1xf32>
    %cst_21 = arith.constant 1.000000e+00 : f32
    %40 = vector.broadcast %cst_21 : f32 to vector<1x1xf32>
    %41 = arith.maximumf %39, %40 : vector<1x1xf32>
    %42 = vector.broadcast %34 : vector<1x8x1xf32> to vector<1x8x128xf32>
    %43 = arith.mulf %42, %1 : vector<1x8x128xf32>
    %cst_22 = arith.constant dense<0.000000e+00> : vector<1x128xf32>
    %44 = vector.multi_reduction <add>, %43, %cst_22 [1] : vector<1x8x128xf32> to vector<1x128xf32>
    %45 = tpu.reciprocal %41 {approx = true} : vector<1x1xf32> -> vector<1x1xf32>
    %46 = vector.broadcast %45 : vector<1x1xf32> to vector<1x128xf32>
    %47 = arith.mulf %44, %46 : vector<1x128xf32>
    %48 = math.tanh %19 : vector<1x128xf32>
    %c0_23 = arith.constant 0 : index
    %c0_24 = arith.constant 0 : index
    %49 = vector.load %arg5[%c0_23, %c0_24] : memref<128x128xf32, #tpu.memory_space<vmem>>, vector<128x128xf32>
    %cst_25 = arith.constant dense<0.000000e+00> : vector<1x128xf32>
    %50 = tpu.matmul %48, %49, %cst_25 {dimension_numbers = #tpu.dot_dimension_numbers<[1], [0], [0], [1], [0, 0, 1, 1], [], []>} : vector<1x128xf32>, vector<128x128xf32>, vector<1x128xf32> -> vector<1x128xf32>
    %c0_26 = arith.constant 0 : index
    %c0_27 = arith.constant 0 : index
    %51 = vector.load %arg6[%c0_26, %c0_27] : memref<1x128xf32, #tpu.memory_space<vmem>>, vector<1x128xf32>
    %52 = arith.addf %50, %51 : vector<1x128xf32>
    %53 = tpu.concatenate %33, %47 in 0 : vector<1x128xf32>, vector<1x128xf32> -> vector<2x128xf32>
    %54 = math.tanh %53 : vector<2x128xf32>
    %c0_28 = arith.constant 0 : index
    %c0_29 = arith.constant 0 : index
    %55 = vector.load %arg7[%c0_28, %c0_29] : memref<128x128xf32, #tpu.memory_space<vmem>>, vector<128x128xf32>
    %cst_30 = arith.constant dense<0.000000e+00> : vector<2x128xf32>
    %56 = tpu.matmul %54, %55, %cst_30 {dimension_numbers = #tpu.dot_dimension_numbers<[1], [0], [0], [1], [0, 0, 1, 1], [], []>} : vector<2x128xf32>, vector<128x128xf32>, vector<2x128xf32> -> vector<2x128xf32>
    %c0_31 = arith.constant 0 : index
    %c0_32 = arith.constant 0 : index
    %57 = vector.load %arg8[%c0_31, %c0_32] : memref<1x128xf32, #tpu.memory_space<vmem>>, vector<1x128xf32>
    %58 = vector.broadcast %57 : vector<1x128xf32> to vector<2x128xf32>
    %59 = arith.addf %56, %58 : vector<2x128xf32>
    %60 = vector.extract_strided_slice %59 {offsets = [0, 0], sizes = [1, 128], strides = [1, 1]} : vector<2x128xf32> to vector<1x128xf32>
    %61 = vector.extract_strided_slice %59 {offsets = [1, 0], sizes = [1, 128], strides = [1, 1]} : vector<2x128xf32> to vector<1x128xf32>
    %62 = tpu.concatenate %52, %60, %61 in 1 : vector<1x128xf32>, vector<1x128xf32>, vector<1x128xf32> -> vector<1x384xf32>
    %cst_33 = arith.constant dense<0.000000e+00> : vector<1xf32>
    %63 = vector.multi_reduction <add>, %62, %cst_33 [1] : vector<1x384xf32> to vector<1xf32>
    %64 = vector.shape_cast %63 : vector<1xf32> to vector<1x1xf32>
    %cst_34 = arith.constant 3.840000e+02 : f32
    %65 = vector.broadcast %cst_34 : f32 to vector<1x1xf32>
    %66 = arith.divf %64, %65 : vector<1x1xf32>
    %67 = vector.broadcast %66 : vector<1x1xf32> to vector<1x384xf32>
    %68 = arith.subf %62, %67 : vector<1x384xf32>
    %69 = arith.mulf %68, %68 : vector<1x384xf32>
    %cst_35 = arith.constant dense<0.000000e+00> : vector<1xf32>
    %70 = vector.multi_reduction <add>, %69, %cst_35 [1] : vector<1x384xf32> to vector<1xf32>
    %71 = vector.shape_cast %70 : vector<1xf32> to vector<1x1xf32>
    %cst_36 = arith.constant 3.830000e+02 : f32
    %72 = vector.broadcast %cst_36 : f32 to vector<1x1xf32>
    %73 = arith.divf %71, %72 : vector<1x1xf32>
    %74 = math.sqrt %73 : vector<1x1xf32>
    %c0_37 = arith.constant 0 : index
    %c0_38 = arith.constant 0 : index
    %75 = vector.load %arg9[%c0_37, %c0_38] : memref<1x384xf32, #tpu.memory_space<vmem>>, vector<1x384xf32>
    %76 = arith.mulf %75, %68 : vector<1x384xf32>
    %cst_39 = arith.constant 9.99999997E-7 : f32
    %77 = vector.broadcast %cst_39 : f32 to vector<1x1xf32>
    %78 = arith.addf %74, %77 : vector<1x1xf32>
    %79 = tpu.reciprocal %78 {approx = true} : vector<1x1xf32> -> vector<1x1xf32>
    %80 = vector.broadcast %79 : vector<1x1xf32> to vector<1x384xf32>
    %81 = arith.mulf %76, %80 : vector<1x384xf32>
    %c0_40 = arith.constant 0 : index
    %c0_41 = arith.constant 0 : index
    %82 = vector.load %arg10[%c0_40, %c0_41] : memref<1x384xf32, #tpu.memory_space<vmem>>, vector<1x384xf32>
    %83 = arith.addf %81, %82 : vector<1x384xf32>
    %84 = arith.addf %62, %83 : vector<1x384xf32>
    %c0_42 = arith.constant 0 : index
    %c0_43 = arith.constant 0 : index
    %85 = vector.load %arg11[%c0_42, %c0_43] : memref<384x384xf32, #tpu.memory_space<vmem>>, vector<384x384xf32>
    %cst_44 = arith.constant dense<0.000000e+00> : vector<1x384xf32>
    %86 = tpu.matmul %84, %85, %cst_44 {dimension_numbers = #tpu.dot_dimension_numbers<[1], [0], [0], [1], [0, 0, 1, 1], [], []>} : vector<1x384xf32>, vector<384x384xf32>, vector<1x384xf32> -> vector<1x384xf32>
    %c0_45 = arith.constant 0 : index
    %c0_46 = arith.constant 0 : index
    %87 = vector.load %arg12[%c0_45, %c0_46] : memref<1x384xf32, #tpu.memory_space<vmem>>, vector<1x384xf32>
    %88 = arith.addf %86, %87 : vector<1x384xf32>
    %89 = vector.shape_cast %88 : vector<1x384xf32> to vector<1x1x384xf32>
    %c0_47 = arith.constant 0 : index
    %c0_48 = arith.constant 0 : index
    %c0_49 = arith.constant 0 : index
    %90 = vector.load %arg13[%c0_47, %c0_48, %c0_49] : memref<1x1x384xf32, #tpu.memory_space<vmem>>, vector<1x1x384xf32>
    tpu.vector_store %arg13[%c0_47, %c0_48, %c0_49], %89 {strides = array<i32>} : memref<1x1x384xf32, #tpu.memory_space<vmem>>, vector<1x1x384xf32>,
    return
  }
  func.func @transform_0(%arg0: i32) -> (i32, i32, i32) {
    %c0_i32 = arith.constant 0 : i32
    %c0_i32_0 = arith.constant 0 : i32
    %c0_i32_1 = arith.constant 0 : i32
    return %arg0, %c0_i32, %c0_i32_0 : i32, i32, i32
  }
  func.func @transform_1(%arg0: i32) -> (i32, i32, i32) {
    %c0_i32 = arith.constant 0 : i32
    %c0_i32_0 = arith.constant 0 : i32
    %c0_i32_1 = arith.constant 0 : i32
    return %arg0, %c0_i32, %c0_i32_0 : i32, i32, i32
  }
  func.func @transform_2(%arg0: i32) -> (i32, i32, i32) {
    %c0_i32 = arith.constant 0 : i32
    %c0_i32_0 = arith.constant 0 : i32
    %c0_i32_1 = arith.constant 0 : i32
    return %arg0, %c0_i32, %c0_i32_0 : i32, i32, i32
  }
  func.func @transform_3(%arg0: i32) -> (i32, i32, i32) {
    %c0_i32 = arith.constant 0 : i32
    %c0_i32_0 = arith.constant 0 : i32
    %c0_i32_1 = arith.constant 0 : i32
    return %arg0, %c0_i32, %c0_i32_0 : i32, i32, i32
  }
  func.func @transform_4(%arg0: i32) -> (i32, i32) {
    %c0_i32 = arith.constant 0 : i32
    %c0_i32_0 = arith.constant 0 : i32
    %c0_i32_1 = arith.constant 0 : i32
    return %c0_i32, %c0_i32_0 : i32, i32
  }
  func.func @transform_5(%arg0: i32) -> (i32, i32) {
    %c0_i32 = arith.constant 0 : i32
    %c0_i32_0 = arith.constant 0 : i32
    %c0_i32_1 = arith.constant 0 : i32
    return %c0_i32, %c0_i32_0 : i32, i32
  }
  func.func @transform_6(%arg0: i32) -> (i32, i32) {
    %c0_i32 = arith.constant 0 : i32
    %c0_i32_0 = arith.constant 0 : i32
    %c0_i32_1 = arith.constant 0 : i32
    return %c0_i32, %c0_i32_0 : i32, i32
  }
  func.func @transform_7(%arg0: i32) -> (i32, i32) {
    %c0_i32 = arith.constant 0 : i32
    %c0_i32_0 = arith.constant 0 : i32
    %c0_i32_1 = arith.constant 0 : i32
    return %c0_i32, %c0_i32_0 : i32, i32
  }
  func.func @transform_8(%arg0: i32) -> (i32, i32) {
    %c0_i32 = arith.constant 0 : i32
    %c0_i32_0 = arith.constant 0 : i32
    %c0_i32_1 = arith.constant 0 : i32
    return %c0_i32, %c0_i32_0 : i32, i32
  }
  func.func @transform_9(%arg0: i32) -> (i32, i32) {
    %c0_i32 = arith.constant 0 : i32
    %c0_i32_0 = arith.constant 0 : i32
    %c0_i32_1 = arith.constant 0 : i32
    return %c0_i32, %c0_i32_0 : i32, i32
  }
  func.func @transform_10(%arg0: i32) -> (i32, i32) {
    %c0_i32 = arith.constant 0 : i32
    %c0_i32_0 = arith.constant 0 : i32
    %c0_i32_1 = arith.constant 0 : i32
    return %c0_i32, %c0_i32_0 : i32, i32
  }
  func.func @transform_11(%arg0: i32) -> (i32, i32) {
    %c0_i32 = arith.constant 0 : i32
    %c0_i32_0 = arith.constant 0 : i32
    %c0_i32_1 = arith.constant 0 : i32
    return %c0_i32, %c0_i32_0 : i32, i32
  }
  func.func @transform_12(%arg0: i32) -> (i32, i32, i32) {
    %c0_i32 = arith.constant 0 : i32
    %c0_i32_0 = arith.constant 0 : i32
    %c0_i32_1 = arith.constant 0 : i32
    return %arg0, %c0_i32, %c0_i32_0 : i32, i32, i32
  }
}

</mosaic_0001>

<llo_original>
// kernel: run.6
$region0: #{run.6}
  #allocation0 [shape = 'u32[]', space=smem, size = 0x4, offset = 0x4, fixed_abs, tag = 'smem constant byte address 0x4 - core index']
  #allocation1 [shape = 'u32[144,128]{1,0:T(1,128)}', space=vmem, size = 0x12000, scoped, tag = 'internal scratch']
  %s0 = inlined_call_operand.vmem [shape: f32[16,128], index: 0, kind: input, shape index: {}]
  %s1 = inlined_call_operand.vmem [shape: f32[16,128], index: 1, kind: input, shape index: {}]
  %s2 = inlined_call_operand.vmem [shape: f32[16,128], index: 2, kind: input, shape index: {}]
  %s3 = inlined_call_operand.vmem [shape: f32[1,128], index: 3, kind: input, shape index: {}]
  %s4 = inlined_call_operand.vmem [shape: f32[1,128], index: 4, kind: input, shape index: {}]
  %s5 = inlined_call_operand.vmem [shape: bf16[16,128], index: 5, kind: output, shape index: {}]
  %s6 = sld [smem:[#allocation0]]
  $region30: #{run.6} parent=0
    _
  %s8 = ssub.s32 1, %s6
  %s9 = scalar_select 0, %s8, %s6
  // Predicated region
  $region2: #{run.6} parent=0 // pred_check
    _
  $region3: #{run.6} parent=0 // pred_check_branch
    %11 = sbr.rel (0) target = $region5
  $region4: #{run.6} parent=0 // pred_region
    _
  $region5: #{run.6} parent=0 // pred_fallthru
    _
  // Predicated region
  $region6: #{run.6} parent=0 // pred_check
    _
  $region7: #{run.6} parent=0 // pred_check_branch
    %13 = sbr.rel (0) target = $region9
  $region8: #{run.6} parent=0 // pred_region
    _
  $region9: #{run.6} parent=0 // pred_fallthru
    _
  // Predicated region
  $region10: #{run.6} parent=0 // pred_check
    _
  $region11: #{run.6} parent=0 // pred_check_branch
    %15 = sbr.rel (0) target = $region13
  $region12: #{run.6} parent=0 // pred_region
    _
  $region13: #{run.6} parent=0 // pred_fallthru
    _
  // Predicated region
  $region14: #{run.6} parent=0 // pred_check
    _
  $region15: #{run.6} parent=0 // pred_check_branch
    %17 = sbr.rel (0) target = $region17
  $region16: #{run.6} parent=0 // pred_region
    _
  $region17: #{run.6} parent=0 // pred_fallthru
    _
  // Predicated region
  $region18: #{run.6} parent=0 // pred_check
    _
  $region19: #{run.6} parent=0 // pred_check_branch
    %19 = sbr.rel (0) target = $region21
  $region20: #{run.6} parent=0 // pred_region
    _
  $region21: #{run.6} parent=0 // pred_fallthru
    _
  %v20 = vld [vmem:[%s0] sm:$0xff]
  %v21 = vld [vmem:[%s0 + $0x8] sm:$0xff]
  %v22 = vld [vmem:[%s1] sm:$0xff]
  %v23 = vld [vmem:[%s1 + $0x8] sm:$0xff]
  %v24 = vadd.f32 %v20, %v22
  %v25 = vadd.f32 %v21, %v23
  %v26 = vld [vmem:[%s2] sm:$0xff]
  %v27 = vld [vmem:[%s2 + $0x8] sm:$0xff]
  %v28 = vadd.f32 %v24, %v26
  %v29 = vadd.f32 %v25, %v27
  %30 = vadd.xlane.f32.xlu0 %v28
  %v31 = vpop.xlane.xlu0 %30
  %32 = vadd.xlane.f32.xlu0 %v29
  %v33 = vpop.xlane.xlu0 %32
  %v34 = vrcp.pop 128.0
  %v35 = vmul.f32 %v31, %v34
  %v36 = vmul.f32 %v33, %v34
  %v37 = vsub.f32 %v28, %v35
  %v38 = vsub.f32 %v29, %v36
  %v39 = vmul.f32 %v37, %v37
  %v40 = vmul.f32 %v38, %v38
  %41 = vadd.xlane.f32.xlu0 %v39
  %v42 = vpop.xlane.xlu0 %41
  %43 = vadd.xlane.f32.xlu0 %v40
  %v44 = vpop.xlane.xlu0 %43
  %v45 = vmul.f32 %v42, %v34
  %v46 = vmul.f32 %v44, %v34
  %v47 = vadd.f32 %v45, 1e-12
  %v48 = vadd.f32 %v46, 1e-12
  %v49 = vrsqrt.pop %v47
  %v50 = vrsqrt.pop %v48
  %v51 = vmul.f32 %v37, %v49
  %v52 = vmul.f32 %v38, %v50
  %v53 = vld [vmem:[%s3] sm:$0x1]
  %v55 = vlaneseq
  %v56 = vshrl.u32 %v55, 7
  %v57 = vsub.s32 0, %v56
  %v58 = vrot.slane %v53, %v57
  %v60 = vmul.f32 %v51, %v58
  %v61 = vmul.f32 %v52, %v58
  %v62 = vld [vmem:[%s4] sm:$0x1]
  %v64 = vlaneseq
  %v65 = vshrl.u32 %v64, 7
  %v66 = vsub.s32 0, %v65
  %v67 = vrot.slane %v62, %v66
  %v69 = vadd.f32 %v60, %v67
  %v70 = vadd.f32 %v61, %v67
  %v71 = vpack.c.bf16 %v70, %v69
  %v73 = vunpack.c.l.b16 %v71
  %v74 = vunpack.c.h.b16 %v71
  %v75 = vpack.c.b16 %v73, %v73
  %v76 = vpack.c.b16 %v74, %v74
  %79 = vst [vmem:[%s5] sm:$0xf] %v75
  %80 = vst [vmem:[%s5 + $0x4] sm:$0xf] %v76
  // Predicated region
  $region22: #{run.6} parent=0 // pred_check
    _
  $region23: #{run.6} parent=0 // pred_check_branch
    %82 = sbr.rel (0) target = $region25
  $region24: #{run.6} parent=0 // pred_region
    _
  $region25: #{run.6} parent=0 // pred_fallthru
    _
  // Predicated region
  $region26: #{run.6} parent=0 // pred_check
    _
  $region27: #{run.6} parent=0 // pred_check_branch
    %84 = sbr.rel (0) target = $region29
  $region28: #{run.6} parent=0 // pred_region
    _
  $region29: #{run.6} parent=0 // pred_fallthru
    _

// kernel: run.10
$region0: #{run.10}
  #allocation0 [shape = 'u32[]', space=smem, size = 0x4, offset = 0x4, fixed_abs, tag = 'smem constant byte address 0x4 - core index']
  #allocation1 [shape = 'u32[144,128]{1,0:T(1,128)}', space=vmem, size = 0x12000, scoped, tag = 'internal scratch']
  %s0 = inlined_call_operand.vmem [shape: bf16[16,128], index: 0, kind: input, shape index: {}]
  %s1 = inlined_call_operand.hbm [shape: bf16[128,512], index: 1, kind: input, shape index: {}]
  %s2 = inlined_call_operand.vmem [shape: f32[1,512], index: 2, kind: input, shape index: {}]
  %s3 = inlined_call_operand.hbm [shape: bf16[512,128], index: 3, kind: input, shape index: {}]
  %s4 = inlined_call_operand.vmem [shape: f32[1,128], index: 4, kind: input, shape index: {}]
  %s5 = inlined_call_operand.vmem [shape: f32[1,128], index: 5, kind: input, shape index: {}]
  %s6 = inlined_call_operand.vmem [shape: f32[1,128], index: 6, kind: input, shape index: {}]
  %s7 = inlined_call_operand.vmem [shape: bf16[16,128], index: 7, kind: output, shape index: {}]
  %s8 = sld [smem:[#allocation0]]
  $region46: #{run.10} parent=0
    _
  %s10 = ssub.s32 1, %s8
  %s11 = scalar_select 0, %s10, %s8
  $region1: #{run.10} parent=0
    #allocation2 [shape = 'u8[131072]{0}', space=vmem, size = 0x20000, scoped, tag = 'input window, operand 1, single buffered']
    #allocation3 [shape = 's32[1]{0}', space=sflag, size = 0x4, scoped, tag = 'scoped memory for run.10']
    #allocation4 [shape = 'u8[131072]{0}', space=vmem, size = 0x20000, scoped, tag = 'input window, operand 3, single buffered']
    #allocation5 [shape = 's32[1]{0}', space=sflag, size = 0x4, scoped, tag = 'scoped memory for run.10']
    %12 = vsyncpa [#allocation3], 0
    %13 = vsyncpa [#allocation5], 0
    // Predicated region
    $region2: #{run.10} parent=1 // pred_check
      _
    $region3: #{run.10} parent=1 // pred_check_branch
      %15 = sbr.rel (0) target = $region5
    $region4: #{run.10} parent=1 // pred_region
      _
    $region5: #{run.10} parent=1 // pred_fallthru
      _
    // Predicated region
    $region6: #{run.10} parent=1 // pred_check
      _
    $region7: #{run.10} parent=1 // pred_check_branch
      %17 = sbr.rel (0) target = $region9
    $region8: #{run.10} parent=1 // pred_region
      %s19 = ssub.s32 4096, 4096
      %20 = vsyncadd [#allocation3], %s19
      %s21 = sshll.u32 [#allocation2], 4
      %s22 = int_to_ptr.vmem [resolvable:$true] %s21
      %27 = dma.hbm_to_vmem [thread:$0]  %s1, 4096, %s22, [#allocation3], 256, 256, 16
    $region9: #{run.10} parent=1 // pred_fallthru
      _
    // Predicated region
    $region10: #{run.10} parent=1 // pred_check
      _
    $region11: #{run.10} parent=1 // pred_check_branch
      %29 = sbr.rel (0) target = $region13
    $region12: #{run.10} parent=1 // pred_region
      _
    $region13: #{run.10} parent=1 // pred_fallthru
      _
    // Predicated region
    $region14: #{run.10} parent=1 // pred_check
      _
    $region15: #{run.10} parent=1 // pred_check_branch
      %31 = sbr.rel (0) target = $region17
    $region16: #{run.10} parent=1 // pred_region
      %s33 = ssub.s32 4096, 4096
      %34 = vsyncadd [#allocation5], %s33
      %s35 = sshll.u32 [#allocation4], 4
      %s36 = int_to_ptr.vmem [resolvable:$true] %s35
      %41 = dma.hbm_to_vmem [thread:$0]  %s3, 4096, %s36, [#allocation5], 64, 64, 4
    $region17: #{run.10} parent=1 // pred_fallthru
      _
    // Predicated region
    $region18: #{run.10} parent=1 // pred_check
      _
    $region19: #{run.10} parent=1 // pred_check_branch
      %43 = sbr.rel (0) target = $region21
    $region20: #{run.10} parent=1 // pred_region
      _
    $region21: #{run.10} parent=1 // pred_fallthru
      _
    // Predicated region
    $region22: #{run.10} parent=1 // pred_check
      _
    $region23: #{run.10} parent=1 // pred_check_branch
      %45 = sbr.rel (0) target = $region25
    $region24: #{run.10} parent=1 // pred_region
      _
    $region25: #{run.10} parent=1 // pred_fallthru
      _
    // Predicated region
    $region26: #{run.10} parent=1 // pred_check
      _
    $region27: #{run.10} parent=1 // pred_check_branch
      %47 = sbr.rel (0) target = $region29
    $region28: #{run.10} parent=1 // pred_region
      _
    $region29: #{run.10} parent=1 // pred_fallthru
      _
    // Predicated region
    $region30: #{run.10} parent=1 // pred_check
      _
    $region31: #{run.10} parent=1 // pred_check_branch
      %49 = sbr.rel (0) target = $region33
    $region32: #{run.10} parent=1 // pred_region
      %50 = dma.done [#allocation3], 4096
    $region33: #{run.10} parent=1 // pred_fallthru
      _
    // Predicated region
    $region34: #{run.10} parent=1 // pred_check
      _
    $region35: #{run.10} parent=1 // pred_check_branch
      %52 = sbr.rel (0) target = $region37
    $region36: #{run.10} parent=1 // pred_region
      %53 = dma.done [#allocation5], 4096
    $region37: #{run.10} parent=1 // pred_fallthru
      _
    %v55 = vld [vmem:[%s0] sm:$0xf]
    %v56 = vld [vmem:[%s0 + $0x4] sm:$0xf]
    %v57 = vld [vmem:[#allocation2] sm:$0xff]
    %v58 = vld [vmem:[#allocation2 + $0x8] sm:$0xff]
    %v59 = vld [vmem:[#allocation2 + $0x10] sm:$0xff]
    %v60 = vld [vmem:[#allocation2 + $0x18] sm:$0xff]
    %v61 = vld [vmem:[#allocation2 + $0x20] sm:$0xff]
    %v62 = vld [vmem:[#allocation2 + $0x28] sm:$0xff]
    %v63 = vld [vmem:[#allocation2 + $0x30] sm:$0xff]
    %v64 = vld [vmem:[#allocation2 + $0x38] sm:$0xff]
    %v65 = vld [vmem:[#allocation2 + $0x40] sm:$0xff]
    %v66 = vld [vmem:[#allocation2 + $0x48] sm:$0xff]
    %v67 = vld [vmem:[#allocation2 + $0x50] sm:$0xff]
    %v68 = vld [vmem:[#allocation2 + $0x58] sm:$0xff]
    %v69 = vld [vmem:[#allocation2 + $0x60] sm:$0xff]
    %v70 = vld [vmem:[#allocation2 + $0x68] sm:$0xff]
    %v71 = vld [vmem:[#allocation2 + $0x70] sm:$0xff]
    %v72 = vld [vmem:[#allocation2 + $0x78] sm:$0xff]
    %v73 = vld [vmem:[#allocation2 + $0x80] sm:$0xff]
    %v74 = vld [vmem:[#allocation2 + $0x88] sm:$0xff]
    %v75 = vld [vmem:[#allocation2 + $0x90] sm:$0xff]
    %v76 = vld [vmem:[#allocation2 + $0x98] sm:$0xff]
    %v77 = vld [vmem:[#allocation2 + $0xa0] sm:$0xff]
    %v78 = vld [vmem:[#allocation2 + $0xa8] sm:$0xff]
    %v79 = vld [vmem:[#allocation2 + $0xb0] sm:$0xff]
    %v80 = vld [vmem:[#allocation2 + $0xb8] sm:$0xff]
    %v81 = vld [vmem:[#allocation2 + $0xc0] sm:$0xff]
    %v82 = vld [vmem:[#allocation2 + $0xc8] sm:$0xff]
    %v83 = vld [vmem:[#allocation2 + $0xd0] sm:$0xff]
    %v84 = vld [vmem:[#allocation2 + $0xd8] sm:$0xff]
    %v85 = vld [vmem:[#allocation2 + $0xe0] sm:$0xff]
    %v86 = vld [vmem:[#allocation2 + $0xe8] sm:$0xff]
    %v87 = vld [vmem:[#allocation2 + $0xf0] sm:$0xff]
    %v88 = vld [vmem:[#allocation2 + $0xf8] sm:$0xff]
    %v89 = vld [vmem:[%s2] sm:$0xf]
    %v91 = vlaneseq
    %v92 = vshrl.u32 %v91, 7
    %v93 = vsub.s32 0, %v92
    %v94 = vrot.slane %v89, %v93
    %v95 = vlaneseq
    %v96 = vshrl.u32 %v95, 7
    %v97 = vsub.s32 1, %v96
    %v98 = vrot.slane %v89, %v97
    %v99 = vlaneseq
    %v100 = vshrl.u32 %v99, 7
    %v101 = vsub.s32 2, %v100
    %v102 = vrot.slane %v89, %v101
    %v103 = vlaneseq
    %v104 = vshrl.u32 %v103, 7
    %v105 = vsub.s32 3, %v104
    %v106 = vrot.slane %v89, %v105
    %v113 = vunpack.c.l.b16 %v55
    %v114 = vunpack.c.l.b16 %v56
    %v115 = vpack.c.b16 %v114, %v113
    %v149 = vunpack.c.l.b16 %v57
    %v150 = vunpack.c.h.b16 %v57
    %v151 = vunpack.c.l.b16 %v58
    %v152 = vunpack.c.h.b16 %v58
    %v153 = vunpack.c.l.b16 %v59
    %v154 = vunpack.c.h.b16 %v59
    %v155 = vunpack.c.l.b16 %v60
    %v156 = vunpack.c.h.b16 %v60
    %v157 = vunpack.c.l.b16 %v61
    %v158 = vunpack.c.h.b16 %v61
    %v159 = vunpack.c.l.b16 %v62
    %v160 = vunpack.c.h.b16 %v62
    %v161 = vunpack.c.l.b16 %v63
    %v162 = vunpack.c.h.b16 %v63
    %v163 = vunpack.c.l.b16 %v64
    %v164 = vunpack.c.h.b16 %v64
    %v165 = vunpack.c.l.b16 %v65
    %v166 = vunpack.c.h.b16 %v65
    %v167 = vunpack.c.l.b16 %v66
    %v168 = vunpack.c.h.b16 %v66
    %v169 = vunpack.c.l.b16 %v67
    %v170 = vunpack.c.h.b16 %v67
    %v171 = vunpack.c.l.b16 %v68
    %v172 = vunpack.c.h.b16 %v68
    %v173 = vunpack.c.l.b16 %v69
    %v174 = vunpack.c.h.b16 %v69
    %v175 = vunpack.c.l.b16 %v70
    %v176 = vunpack.c.h.b16 %v70
    %v177 = vunpack.c.l.b16 %v71
    %v178 = vunpack.c.h.b16 %v71
    %v179 = vunpack.c.l.b16 %v72
    %v180 = vunpack.c.h.b16 %v72
    %v181 = vunpack.c.l.b16 %v73
    %v182 = vunpack.c.h.b16 %v73
    %v183 = vunpack.c.l.b16 %v74
    %v184 = vunpack.c.h.b16 %v74
    %v185 = vunpack.c.l.b16 %v75
    %v186 = vunpack.c.h.b16 %v75
    %v187 = vunpack.c.l.b16 %v76
    %v188 = vunpack.c.h.b16 %v76
    %v189 = vunpack.c.l.b16 %v77
    %v190 = vunpack.c.h.b16 %v77
    %v191 = vunpack.c.l.b16 %v78
    %v192 = vunpack.c.h.b16 %v78
    %v193 = vunpack.c.l.b16 %v79
    %v194 = vunpack.c.h.b16 %v79
    %v195 = vunpack.c.l.b16 %v80
    %v196 = vunpack.c.h.b16 %v80
    %v197 = vunpack.c.l.b16 %v81
    %v198 = vunpack.c.h.b16 %v81
    %v199 = vunpack.c.l.b16 %v82
    %v200 = vunpack.c.h.b16 %v82
    %v201 = vunpack.c.l.b16 %v83
    %v202 = vunpack.c.h.b16 %v83
    %v203 = vunpack.c.l.b16 %v84
    %v204 = vunpack.c.h.b16 %v84
    %v205 = vunpack.c.l.b16 %v85
    %v206 = vunpack.c.h.b16 %v85
    %v207 = vunpack.c.l.b16 %v86
    %v208 = vunpack.c.h.b16 %v86
    %v209 = vunpack.c.l.b16 %v87
    %v210 = vunpack.c.h.b16 %v87
    %v211 = vunpack.c.l.b16 %v88
    %v212 = vunpack.c.h.b16 %v88
    %v213 = vpack.c.b16 %v153, %v149
    %v214 = vpack.c.b16 %v154, %v150
    %v215 = vpack.c.b16 %v155, %v151
    %v216 = vpack.c.b16 %v156, %v152
    %v217 = vpack.c.b16 %v161, %v157
    %v218 = vpack.c.b16 %v162, %v158
    %v219 = vpack.c.b16 %v163, %v159
    %v220 = vpack.c.b16 %v164, %v160
    %v221 = vpack.c.b16 %v169, %v165
    %v222 = vpack.c.b16 %v170, %v166
    %v223 = vpack.c.b16 %v171, %v167
    %v224 = vpack.c.b16 %v172, %v168
    %v225 = vpack.c.b16 %v177, %v173
    %v226 = vpack.c.b16 %v178, %v174
    %v227 = vpack.c.b16 %v179, %v175
    %v228 = vpack.c.b16 %v180, %v176
    %v229 = vpack.c.b16 %v185, %v181
    %v230 = vpack.c.b16 %v186, %v182
    %v231 = vpack.c.b16 %v187, %v183
    %v232 = vpack.c.b16 %v188, %v184
    %v233 = vpack.c.b16 %v193, %v189
    %v234 = vpack.c.b16 %v194, %v190
    %v235 = vpack.c.b16 %v195, %v191
    %v236 = vpack.c.b16 %v196, %v192
    %v237 = vpack.c.b16 %v201, %v197
    %v238 = vpack.c.b16 %v202, %v198
    %v239 = vpack.c.b16 %v203, %v199
    %v240 = vpack.c.b16 %v204, %v200
    %v241 = vpack.c.b16 %v209, %v205
    %v242 = vpack.c.b16 %v210, %v206
    %v243 = vpack.c.b16 %v211, %v207
    %v244 = vpack.c.b16 %v212, %v208
    %277 = vmatprep.subr.bf16.mxu0 %v242
    %278 = vmatpush1.bf16.msra.mxu0 %v241
    %279 = vmatprep.subr.bf16.mxu0 %v238
    %280 = vmatpush1.bf16.msra.mxu0 %v237
    %281 = vmatprep.subr.bf16.mxu0 %v234
    %282 = vmatpush1.bf16.msra.mxu0 %v233
    %283 = vmatprep.subr.bf16.mxu0 %v230
    %284 = vmatpush1.bf16.msra.mxu0 %v229
    %285 = vmatprep.subr.bf16.mxu0 %v226
    %286 = vmatpush1.bf16.msra.mxu0 %v225
    %287 = vmatprep.subr.bf16.mxu0 %v222
    %288 = vmatpush1.bf16.msra.mxu0 %v221
    %289 = vmatprep.subr.bf16.mxu0 %v218
    %290 = vmatpush1.bf16.msra.mxu0 %v217
    %291 = vmatprep.subr.bf16.mxu0 %v214
    %292 = vmatpush1.bf16.msra.mxu0 %v213
    %293 = vmatprep.subr.bf16.mxu0 0
    %294 = vmatpush2.bf16.msra.mxu0 0
    %295 = vmatprep.subr.bf16.mxu0 0
    %296 = vmatpush2.bf16.msra.mxu0 0
    %297 = vmatprep.subr.bf16.mxu0 0
    %298 = vmatpush2.bf16.msra.mxu0 0
    %299 = vmatprep.subr.bf16.mxu0 0
    %300 = vmatpush2.bf16.msra.mxu0 0
    %301 = vmatprep.subr.bf16.mxu0 0
    %302 = vmatpush2.bf16.msra.mxu0 0
    %303 = vmatprep.subr.bf16.mxu0 0
    %304 = vmatpush2.bf16.msra.mxu0 0
    %305 = vmatprep.subr.bf16.mxu0 0
    %306 = vmatpush2.bf16.msra.mxu0 0
    %307 = vmatprep.subr.bf16.mxu0 0
    %308 = vmatpush2.bf16.msra.mxu0 0
    %309 = vmatprep.mubr.bf16.mxu0 0
    %310 = vmatmul.mubr.bf16.gmra.mxu0 %v115
    %v311 = vpop.f32.mrf.mxu0
    %v312 = vadd.f32 %v94, %v311
    %v313 = vpop.f32.mrf.mxu0
    %v314 = vadd.f32 %v98, %v313
    %v315 = vpop.f32.mrf.mxu0
    %v316 = vadd.f32 %v94, %v315
    %v317 = vpop.f32.mrf.mxu0
    %v318 = vadd.f32 %v98, %v317
    %319 = vdwg.mxu0
    %320 = vmatprep.subr.bf16.mxu0 %v244
    %321 = vmatpush1.bf16.msra.mxu0 %v243
    %322 = vmatprep.subr.bf16.mxu0 %v240
    %323 = vmatpush1.bf16.msra.mxu0 %v239
    %324 = vmatprep.subr.bf16.mxu0 %v236
    %325 = vmatpush1.bf16.msra.mxu0 %v235
    %326 = vmatprep.subr.bf16.mxu0 %v232
    %327 = vmatpush1.bf16.msra.mxu0 %v231
    %328 = vmatprep.subr.bf16.mxu0 %v228
    %329 = vmatpush1.bf16.msra.mxu0 %v227
    %330 = vmatprep.subr.bf16.mxu0 %v224
    %331 = vmatpush1.bf16.msra.mxu0 %v223
    %332 = vmatprep.subr.bf16.mxu0 %v220
    %333 = vmatpush1.bf16.msra.mxu0 %v219
    %334 = vmatprep.subr.bf16.mxu0 %v216
    %335 = vmatpush1.bf16.msra.mxu0 %v215
    %336 = vmatprep.subr.bf16.mxu0 0
    %337 = vmatpush2.bf16.msra.mxu0 0
    %338 = vmatprep.subr.bf16.mxu0 0
    %339 = vmatpush2.bf16.msra.mxu0 0
    %340 = vmatprep.subr.bf16.mxu0 0
    %341 = vmatpush2.bf16.msra.mxu0 0
    %342 = vmatprep.subr.bf16.mxu0 0
    %343 = vmatpush2.bf16.msra.mxu0 0
    %344 = vmatprep.subr.bf16.mxu0 0
    %345 = vmatpush2.bf16.msra.mxu0 0
    %346 = vmatprep.subr.bf16.mxu0 0
    %347 = vmatpush2.bf16.msra.mxu0 0
    %348 = vmatprep.subr.bf16.mxu0 0
    %349 = vmatpush2.bf16.msra.mxu0 0
    %350 = vmatprep.subr.bf16.mxu0 0
    %351 = vmatpush2.bf16.msra.mxu0 0
    %352 = vmatprep.mubr.bf16.mxu0 0
    %353 = vmatmul.mubr.bf16.gmra.mxu0 %v115
    %v354 = vpop.f32.mrf.mxu0
    %v355 = vadd.f32 %v102, %v354
    %v356 = vpop.f32.mrf.mxu0
    %v357 = vadd.f32 %v106, %v356
    %v358 = vpop.f32.mrf.mxu0
    %v359 = vadd.f32 %v102, %v358
    %v360 = vpop.f32.mrf.mxu0
    %v361 = vadd.f32 %v106, %v360
    %362 = vdwg.mxu0
    %v363 = vmul.f32 %v312, %v312
    %v364 = vmul.f32 %v314, %v314
    %v365 = vmul.f32 %v355, %v355
    %v366 = vmul.f32 %v357, %v357
    %v367 = vmul.f32 %v316, %v316
    %v368 = vmul.f32 %v318, %v318
    %v369 = vmul.f32 %v359, %v359
    %v370 = vmul.f32 %v361, %v361
    %v371 = vmul.f32 %v312, %v363
    %v372 = vmul.f32 %v314, %v364
    %v373 = vmul.f32 %v355, %v365
    %v374 = vmul.f32 %v357, %v366
    %v375 = vmul.f32 %v316, %v367
    %v376 = vmul.f32 %v318, %v368
    %v377 = vmul.f32 %v359, %v369
    %v378 = vmul.f32 %v361, %v370
    %v379 = vmul.f32 %v371, 0.044715
    %v380 = vmul.f32 %v372, 0.044715
    %v381 = vmul.f32 %v373, 0.044715
    %v382 = vmul.f32 %v374, 0.044715
    %v383 = vmul.f32 %v375, 0.044715
    %v384 = vmul.f32 %v376, 0.044715
    %v385 = vmul.f32 %v377, 0.044715
    %v386 = vmul.f32 %v378, 0.044715
    %v387 = vadd.f32 %v312, %v379
    %v388 = vadd.f32 %v314, %v380
    %v389 = vadd.f32 %v355, %v381
    %v390 = vadd.f32 %v357, %v382
    %v391 = vadd.f32 %v316, %v383
    %v392 = vadd.f32 %v318, %v384
    %v393 = vadd.f32 %v359, %v385
    %v394 = vadd.f32 %v361, %v386
    %v395 = vmul.f32 %v387, 0.7978846
    %v396 = vmul.f32 %v388, 0.7978846
    %v397 = vmul.f32 %v389, 0.7978846
    %v398 = vmul.f32 %v390, 0.7978846
    %v399 = vmul.f32 %v391, 0.7978846
    %v400 = vmul.f32 %v392, 0.7978846
    %v401 = vmul.f32 %v393, 0.7978846
    %v402 = vmul.f32 %v394, 0.7978846
    %v403 = vtanh.pop %v395
    %v404 = vtanh.pop %v396
    %v405 = vtanh.pop %v397
    %v406 = vtanh.pop %v398
    %v407 = vtanh.pop %v399
    %v408 = vtanh.pop %v400
    %v409 = vtanh.pop %v401
    %v410 = vtanh.pop %v402
    %v411 = vadd.f32 %v403, 1.0
    %v412 = vadd.f32 %v404, 1.0
    %v413 = vadd.f32 %v405, 1.0
    %v414 = vadd.f32 %v406, 1.0
    %v415 = vadd.f32 %v407, 1.0
    %v416 = vadd.f32 %v408, 1.0
    %v417 = vadd.f32 %v409, 1.0
    %v418 = vadd.f32 %v410, 1.0
    %v419 = vmul.f32 %v411, 0.5
    %v420 = vmul.f32 %v412, 0.5
    %v421 = vmul.f32 %v413, 0.5
    %v422 = vmul.f32 %v414, 0.5
    %v423 = vmul.f32 %v415, 0.5
    %v424 = vmul.f32 %v416, 0.5
    %v425 = vmul.f32 %v417, 0.5
    %v426 = vmul.f32 %v418, 0.5
    %v427 = vmul.f32 %v312, %v419
    %v428 = vmul.f32 %v314, %v420
    %v429 = vmul.f32 %v355, %v421
    %v430 = vmul.f32 %v357, %v422
    %v431 = vmul.f32 %v316, %v423
    %v432 = vmul.f32 %v318, %v424
    %v433 = vmul.f32 %v359, %v425
    %v434 = vmul.f32 %v361, %v426
    %v435 = vld [vmem:[#allocation4] sm:$0xf]
    %v436 = vld [vmem:[#allocation4 + $0x4] sm:$0xf]
    %v437 = vld [vmem:[#allocation4 + $0x8] sm:$0xf]
    %v438 = vld [vmem:[#allocation4 + $0xc] sm:$0xf]
    %v439 = vld [vmem:[#allocation4 + $0x10] sm:$0xf]
    %v440 = vld [vmem:[#allocation4 + $0x14] sm:$0xf]
    %v441 = vld [vmem:[#allocation4 + $0x18] sm:$0xf]
    %v442 = vld [vmem:[#allocation4 + $0x1c] sm:$0xf]
    %v443 = vld [vmem:[#allocation4 + $0x20] sm:$0xf]
    %v444 = vld [vmem:[#allocation4 + $0x24] sm:$0xf]
    %v445 = vld [vmem:[#allocation4 + $0x28] sm:$0xf]
    %v446 = vld [vmem:[#allocation4 + $0x2c] sm:$0xf]
    %v447 = vld [vmem:[#allocation4 + $0x30] sm:$0xf]
    %v448 = vld [vmem:[#allocation4 + $0x34] sm:$0xf]
    %v449 = vld [vmem:[#allocation4 + $0x38] sm:$0xf]
    %v450 = vld [vmem:[#allocation4 + $0x3c] sm:$0xf]
    %v451 = vld [vmem:[#allocation4 + $0x40] sm:$0xf]
    %v452 = vld [vmem:[#allocation4 + $0x44] sm:$0xf]
    %v453 = vld [vmem:[#allocation4 + $0x48] sm:$0xf]
    %v454 = vld [vmem:[#allocation4 + $0x4c] sm:$0xf]
    %v455 = vld [vmem:[#allocation4 + $0x50] sm:$0xf]
    %v456 = vld [vmem:[#allocation4 + $0x54] sm:$0xf]
    %v457 = vld [vmem:[#allocation4 + $0x58] sm:$0xf]
    %v458 = vld [vmem:[#allocation4 + $0x5c] sm:$0xf]
    %v459 = vld [vmem:[#allocation4 + $0x60] sm:$0xf]
    %v460 = vld [vmem:[#allocation4 + $0x64] sm:$0xf]
    %v461 = vld [vmem:[#allocation4 + $0x68] sm:$0xf]
    %v462 = vld [vmem:[#allocation4 + $0x6c] sm:$0xf]
    %v463 = vld [vmem:[#allocation4 + $0x70] sm:$0xf]
    %v464 = vld [vmem:[#allocation4 + $0x74] sm:$0xf]
    %v465 = vld [vmem:[#allocation4 + $0x78] sm:$0xf]
    %v466 = vld [vmem:[#allocation4 + $0x7c] sm:$0xf]
    %v467 = vld [vmem:[#allocation4 + $0x80] sm:$0xf]
    %v468 = vld [vmem:[#allocation4 + $0x84] sm:$0xf]
    %v469 = vld [vmem:[#allocation4 + $0x88] sm:$0xf]
    %v470 = vld [vmem:[#allocation4 + $0x8c] sm:$0xf]
    %v471 = vld [vmem:[#allocation4 + $0x90] sm:$0xf]
    %v472 = vld [vmem:[#allocation4 + $0x94] sm:$0xf]
    %v473 = vld [vmem:[#allocation4 + $0x98] sm:$0xf]
    %v474 = vld [vmem:[#allocation4 + $0x9c] sm:$0xf]
    %v475 = vld [vmem:[#allocation4 + $0xa0] sm:$0xf]
    %v476 = vld [vmem:[#allocation4 + $0xa4] sm:$0xf]
    %v477 = vld [vmem:[#allocation4 + $0xa8] sm:$0xf]
    %v478 = vld [vmem:[#allocation4 + $0xac] sm:$0xf]
    %v479 = vld [vmem:[#allocation4 + $0xb0] sm:$0xf]
    %v480 = vld [vmem:[#allocation4 + $0xb4] sm:$0xf]
    %v481 = vld [vmem:[#allocation4 + $0xb8] sm:$0xf]
    %v482 = vld [vmem:[#allocation4 + $0xbc] sm:$0xf]
    %v483 = vld [vmem:[#allocation4 + $0xc0] sm:$0xf]
    %v484 = vld [vmem:[#allocation4 + $0xc4] sm:$0xf]
    %v485 = vld [vmem:[#allocation4 + $0xc8] sm:$0xf]
    %v486 = vld [vmem:[#allocation4 + $0xcc] sm:$0xf]
    %v487 = vld [vmem:[#allocation4 + $0xd0] sm:$0xf]
    %v488 = vld [vmem:[#allocation4 + $0xd4] sm:$0xf]
    %v489 = vld [vmem:[#allocation4 + $0xd8] sm:$0xf]
    %v490 = vld [vmem:[#allocation4 + $0xdc] sm:$0xf]
    %v491 = vld [vmem:[#allocation4 + $0xe0] sm:$0xf]
    %v492 = vld [vmem:[#allocation4 + $0xe4] sm:$0xf]
    %v493 = vld [vmem:[#allocation4 + $0xe8] sm:$0xf]
    %v494 = vld [vmem:[#allocation4 + $0xec] sm:$0xf]
    %v495 = vld [vmem:[#allocation4 + $0xf0] sm:$0xf]
    %v496 = vld [vmem:[#allocation4 + $0xf4] sm:$0xf]
    %v497 = vld [vmem:[#allocation4 + $0xf8] sm:$0xf]
    %v498 = vld [vmem:[#allocation4 + $0xfc] sm:$0xf]
    %v499 = vpack.c.bf16 %v431, %v427
    %v500 = vpack.c.bf16 %v432, %v428
    %v501 = vpack.c.bf16 %v433, %v429
    %v502 = vpack.c.bf16 %v434, %v430
    %v503 = vld [vmem:[%s4] sm:$0x1]
    %v505 = vlaneseq
    %v506 = vshrl.u32 %v505, 7
    %v507 = vsub.s32 0, %v506
    %v508 = vrot.slane %v503, %v507
    %v574 = vunpack.c.l.b16 %v435
    %v575 = vunpack.c.l.b16 %v436
    %v576 = vunpack.c.l.b16 %v437
    %v577 = vunpack.c.l.b16 %v438
    %v578 = vunpack.c.l.b16 %v439
    %v579 = vunpack.c.l.b16 %v440
    %v580 = vunpack.c.l.b16 %v441
    %v581 = vunpack.c.l.b16 %v442
    %v582 = vunpack.c.l.b16 %v443
    %v583 = vunpack.c.l.b16 %v444
    %v584 = vunpack.c.l.b16 %v445
    %v585 = vunpack.c.l.b16 %v446
    %v586 = vunpack.c.l.b16 %v447
    %v587 = vunpack.c.l.b16 %v448
    %v588 = vunpack.c.l.b16 %v449
    %v589 = vunpack.c.l.b16 %v450
    %v590 = vunpack.c.l.b16 %v451
    %v591 = vunpack.c.l.b16 %v452
    %v592 = vunpack.c.l.b16 %v453
    %v593 = vunpack.c.l.b16 %v454
    %v594 = vunpack.c.l.b16 %v455
    %v595 = vunpack.c.l.b16 %v456
    %v596 = vunpack.c.l.b16 %v457
    %v597 = vunpack.c.l.b16 %v458
    %v598 = vunpack.c.l.b16 %v459
    %v599 = vunpack.c.l.b16 %v460
    %v600 = vunpack.c.l.b16 %v461
    %v601 = vunpack.c.l.b16 %v462
    %v602 = vunpack.c.l.b16 %v463
    %v603 = vunpack.c.l.b16 %v464
    %v604 = vunpack.c.l.b16 %v465
    %v605 = vunpack.c.l.b16 %v466
    %v606 = vunpack.c.l.b16 %v467
    %v607 = vunpack.c.l.b16 %v468
    %v608 = vunpack.c.l.b16 %v469
    %v609 = vunpack.c.l.b16 %v470
    %v610 = vunpack.c.l.b16 %v471
    %v611 = vunpack.c.l.b16 %v472
    %v612 = vunpack.c.l.b16 %v473
    %v613 = vunpack.c.l.b16 %v474
    %v614 = vunpack.c.l.b16 %v475
    %v615 = vunpack.c.l.b16 %v476
    %v616 = vunpack.c.l.b16 %v477
    %v617 = vunpack.c.l.b16 %v478
    %v618 = vunpack.c.l.b16 %v479
    %v619 = vunpack.c.l.b16 %v480
    %v620 = vunpack.c.l.b16 %v481
    %v621 = vunpack.c.l.b16 %v482
    %v622 = vunpack.c.l.b16 %v483
    %v623 = vunpack.c.l.b16 %v484
    %v624 = vunpack.c.l.b16 %v485
    %v625 = vunpack.c.l.b16 %v486
    %v626 = vunpack.c.l.b16 %v487
    %v627 = vunpack.c.l.b16 %v488
    %v628 = vunpack.c.l.b16 %v489
    %v629 = vunpack.c.l.b16 %v490
    %v630 = vunpack.c.l.b16 %v491
    %v631 = vunpack.c.l.b16 %v492
    %v632 = vunpack.c.l.b16 %v493
    %v633 = vunpack.c.l.b16 %v494
    %v634 = vunpack.c.l.b16 %v495
    %v635 = vunpack.c.l.b16 %v496
    %v636 = vunpack.c.l.b16 %v497
    %v637 = vunpack.c.l.b16 %v498
    %v638 = vpack.c.b16 %v575, %v574
    %v639 = vpack.c.b16 %v577, %v576
    %v640 = vpack.c.b16 %v579, %v578
    %v641 = vpack.c.b16 %v581, %v580
    %v642 = vpack.c.b16 %v583, %v582
    %v643 = vpack.c.b16 %v585, %v584
    %v644 = vpack.c.b16 %v587, %v586
    %v645 = vpack.c.b16 %v589, %v588
    %v646 = vpack.c.b16 %v591, %v590
    %v647 = vpack.c.b16 %v593, %v592
    %v648 = vpack.c.b16 %v595, %v594
    %v649 = vpack.c.b16 %v597, %v596
    %v650 = vpack.c.b16 %v599, %v598
    %v651 = vpack.c.b16 %v601, %v600
    %v652 = vpack.c.b16 %v603, %v602
    %v653 = vpack.c.b16 %v605, %v604
    %v654 = vpack.c.b16 %v607, %v606
    %v655 = vpack.c.b16 %v609, %v608
    %v656 = vpack.c.b16 %v611, %v610
    %v657 = vpack.c.b16 %v613, %v612
    %v658 = vpack.c.b16 %v615, %v614
    %v659 = vpack.c.b16 %v617, %v616
    %v660 = vpack.c.b16 %v619, %v618
    %v661 = vpack.c.b16 %v621, %v620
    %v662 = vpack.c.b16 %v623, %v622
    %v663 = vpack.c.b16 %v625, %v624
    %v664 = vpack.c.b16 %v627, %v626
    %v665 = vpack.c.b16 %v629, %v628
    %v666 = vpack.c.b16 %v631, %v630
    %v667 = vpack.c.b16 %v633, %v632
    %v668 = vpack.c.b16 %v635, %v634
    %v669 = vpack.c.b16 %v637, %v636
    %702 = vmatprep.subr.bf16.mxu0 0
    %703 = vmatpush1.bf16.msra.mxu0 %v645
    %704 = vmatprep.subr.bf16.mxu0 0
    %705 = vmatpush1.bf16.msra.mxu0 %v644
    %706 = vmatprep.subr.bf16.mxu0 0
    %707 = vmatpush1.bf16.msra.mxu0 %v643
    %708 = vmatprep.subr.bf16.mxu0 0
    %709 = vmatpush1.bf16.msra.mxu0 %v642
    %710 = vmatprep.subr.bf16.mxu0 0
    %711 = vmatpush1.bf16.msra.mxu0 %v641
    %712 = vmatprep.subr.bf16.mxu0 0
    %713 = vmatpush1.bf16.msra.mxu0 %v640
    %714 = vmatprep.subr.bf16.mxu0 0
    %715 = vmatpush1.bf16.msra.mxu0 %v639
    %716 = vmatprep.subr.bf16.mxu0 0
    %717 = vmatpush1.bf16.msra.mxu0 %v638
    %718 = vmatprep.subr.bf16.mxu0 0
    %719 = vmatpush2.bf16.msra.mxu0 %v653
    %720 = vmatprep.subr.bf16.mxu0 0
    %721 = vmatpush2.bf16.msra.mxu0 %v652
    %722 = vmatprep.subr.bf16.mxu0 0
    %723 = vmatpush2.bf16.msra.mxu0 %v651
    %724 = vmatprep.subr.bf16.mxu0 0
    %725 = vmatpush2.bf16.msra.mxu0 %v650
    %726 = vmatprep.subr.bf16.mxu0 0
    %727 = vmatpush2.bf16.msra.mxu0 %v649
    %728 = vmatprep.subr.bf16.mxu0 0
    %729 = vmatpush2.bf16.msra.mxu0 %v648
    %730 = vmatprep.subr.bf16.mxu0 0
    %731 = vmatpush2.bf16.msra.mxu0 %v647
    %732 = vmatprep.subr.bf16.mxu0 0
    %733 = vmatpush2.bf16.msra.mxu0 %v646
    %734 = vmatprep.mubr.bf16.mxu0 %v500
    %735 = vmatmul.mubr.bf16.gmra.mxu0 %v499
    %v736 = vpop.f32.mrf.mxu0
    %v737 = vadd.f32 %v508, %v736
    %v738 = vpop.f32.mrf.mxu0
    %v739 = vpop.f32.mrf.mxu0
    %v740 = vadd.f32 %v508, %v739
    %v741 = vpop.f32.mrf.mxu0
    %742 = vdwg.mxu0
    %743 = vmatprep.subr.bf16.mxu0 0
    %744 = vmatpush1.bf16.msra.mxu0 %v661
    %745 = vmatprep.subr.bf16.mxu0 0
    %746 = vmatpush1.bf16.msra.mxu0 %v660
    %747 = vmatprep.subr.bf16.mxu0 0
    %748 = vmatpush1.bf16.msra.mxu0 %v659
    %749 = vmatprep.subr.bf16.mxu0 0
    %750 = vmatpush1.bf16.msra.mxu0 %v658
    %751 = vmatprep.subr.bf16.mxu0 0
    %752 = vmatpush1.bf16.msra.mxu0 %v657
    %753 = vmatprep.subr.bf16.mxu0 0
    %754 = vmatpush1.bf16.msra.mxu0 %v656
    %755 = vmatprep.subr.bf16.mxu0 0
    %756 = vmatpush1.bf16.msra.mxu0 %v655
    %757 = vmatprep.subr.bf16.mxu0 0
    %758 = vmatpush1.bf16.msra.mxu0 %v654
    %759 = vmatprep.subr.bf16.mxu0 0
    %760 = vmatpush2.bf16.msra.mxu0 %v669
    %761 = vmatprep.subr.bf16.mxu0 0
    %762 = vmatpush2.bf16.msra.mxu0 %v668
    %763 = vmatprep.subr.bf16.mxu0 0
    %764 = vmatpush2.bf16.msra.mxu0 %v667
    %765 = vmatprep.subr.bf16.mxu0 0
    %766 = vmatpush2.bf16.msra.mxu0 %v666
    %767 = vmatprep.subr.bf16.mxu0 0
    %768 = vmatpush2.bf16.msra.mxu0 %v665
    %769 = vmatprep.subr.bf16.mxu0 0
    %770 = vmatpush2.bf16.msra.mxu0 %v664
    %771 = vmatprep.subr.bf16.mxu0 0
    %772 = vmatpush2.bf16.msra.mxu0 %v663
    %773 = vmatprep.subr.bf16.mxu0 0
    %774 = vmatpush2.bf16.msra.mxu0 %v662
    %775 = vmatprep.mubr.bf16.mxu0 %v502
    %776 = vmatmul.mubr.bf16.gmra.mxu0 %v501
    %v777 = vpop.f32.mrf.mxu0
    %v778 = vadd.f32 %v737, %v777
    %v779 = vpop.f32.mrf.mxu0
    %v780 = vpop.f32.mrf.mxu0
    %v781 = vadd.f32 %v740, %v780
    %v782 = vpop.f32.mrf.mxu0
    %783 = vdwg.mxu0
    %v784 = vunpack.c.l.bf16 %v55
    %v785 = vunpack.c.l.bf16 %v56
    %v786 = vadd.f32 %v778, %v784
    %v787 = vadd.f32 %v781, %v785
    %788 = vadd.xlane.f32.xlu0 %v786
    %v789 = vpop.xlane.xlu0 %788
    %790 = vadd.xlane.f32.xlu0 %v787
    %v791 = vpop.xlane.xlu0 %790
    %v792 = vrcp.pop 128.0
    %v793 = vmul.f32 %v789, %v792
    %v794 = vmul.f32 %v791, %v792
    %v795 = vsub.f32 %v786, %v793
    %v796 = vsub.f32 %v787, %v794
    %v797 = vmul.f32 %v795, %v795
    %v798 = vmul.f32 %v796, %v796
    %799 = vadd.xlane.f32.xlu0 %v797
    %v800 = vpop.xlane.xlu0 %799
    %801 = vadd.xlane.f32.xlu0 %v798
    %v802 = vpop.xlane.xlu0 %801
    %v803 = vmul.f32 %v800, %v792
    %v804 = vmul.f32 %v802, %v792
    %v805 = vadd.f32 %v803, 1e-12
    %v806 = vadd.f32 %v804, 1e-12
    %v807 = vrsqrt.pop %v805
    %v808 = vrsqrt.pop %v806
    %v809 = vmul.f32 %v795, %v807
    %v810 = vmul.f32 %v796, %v808
    %v811 = vld [vmem:[%s5] sm:$0x1]
    %v813 = vlaneseq
    %v814 = vshrl.u32 %v813, 7
    %v815 = vsub.s32 0, %v814
    %v816 = vrot.slane %v811, %v815
    %v818 = vmul.f32 %v809, %v816
    %v819 = vmul.f32 %v810, %v816
    %v820 = vld [vmem:[%s6] sm:$0x1]
    %v822 = vlaneseq
    %v823 = vshrl.u32 %v822, 7
    %v824 = vsub.s32 0, %v823
    %v825 = vrot.slane %v820, %v824
    %v827 = vadd.f32 %v818, %v825
    %v828 = vadd.f32 %v819, %v825
    %v829 = vpack.c.bf16 %v828, %v827
    %v831 = vunpack.c.l.b16 %v829
    %v832 = vunpack.c.h.b16 %v829
    %v833 = vpack.c.b16 %v831, %v831
    %v834 = vpack.c.b16 %v832, %v832
    %837 = vst [vmem:[%s7] sm:$0xf] %v833
    %838 = vst [vmem:[%s7 + $0x4] sm:$0xf] %v834
    // Predicated region
    $region38: #{run.10} parent=1 // pred_check
      _
    $region39: #{run.10} parent=1 // pred_check_branch
      %840 = sbr.rel (0) target = $region41
    $region40: #{run.10} parent=1 // pred_region
      _
    $region41: #{run.10} parent=1 // pred_fallthru
      _
    // Predicated region
    $region42: #{run.10} parent=1 // pred_check
      _
    $region43: #{run.10} parent=1 // pred_check_branch
      %842 = sbr.rel (0) target = $region45
    $region44: #{run.10} parent=1 // pred_region
      _
    $region45: #{run.10} parent=1 // pred_fallthru
      _
    %843 = vsyncpa [#allocation3], 1
    %844 = vsyncpa [#allocation5], 1

// kernel: run.7
$region0: #{run.7}
  #allocation0 [shape = 'u32[]', space=smem, size = 0x4, offset = 0x4, fixed_abs, tag = 'smem constant byte address 0x4 - core index']
  #allocation1 [shape = 'u32[144,128]{1,0:T(1,128)}', space=vmem, size = 0x12000, scoped, tag = 'internal scratch']
  %s0 = inlined_call_operand.vmem [shape: bf16[2,8,128], index: 0, kind: input, shape index: {}]
  %s1 = inlined_call_operand.vmem [shape: f32[2,1,8], index: 1, kind: input, shape index: {}]
  %s2 = inlined_call_operand.hbm [shape: bf16[128,384], index: 2, kind: input, shape index: {}]
  %s3 = inlined_call_operand.vmem [shape: f32[1,384], index: 3, kind: input, shape index: {}]
  %s4 = inlined_call_operand.hbm [shape: bf16[128,128], index: 4, kind: input, shape index: {}]
  %s5 = inlined_call_operand.vmem [shape: f32[1,128], index: 5, kind: input, shape index: {}]
  %s6 = inlined_call_operand.vmem [shape: f32[1,128], index: 6, kind: input, shape index: {}]
  %s7 = inlined_call_operand.vmem [shape: f32[1,128], index: 7, kind: input, shape index: {}]
  %s8 = inlined_call_operand.vmem [shape: bf16[2,8,128], index: 8, kind: output, shape index: {}]
  %s9 = sld [smem:[#allocation0]]
  $region73: #{run.7} parent=0
    _
  %s11 = ssub.s32 1, %s9
  %s12 = scalar_select 0, %s11, %s9
  $region1: #{run.7} parent=0
    #allocation2 [shape = 'u8[98304]{0}', space=vmem, size = 0x18000, scoped, tag = 'input window, operand 2, single buffered']
    #allocation3 [shape = 's32[2]{0}', space=sflag, size = 0x8, scoped, tag = 'scoped memory for run.7']
    #allocation4 [shape = 'u8[32768]{0}', space=vmem, size = 0x8000, scoped, tag = 'input window, operand 4, single buffered']
    #allocation5 [shape = 's32[1]{0}', space=sflag, size = 0x4, scoped, tag = 'scoped memory for run.7']
    %13 = vsyncpa [#allocation3], 0
    %14 = vsyncpa [#allocation5], 0
    loop: start=0, step=1, limit=4
    $region2: #{run.7} parent=1 // loop_pre_header
      _
    $region3: #{run.7} parent=1 // loop_header
      %s16 = sphi 0, %s20
      %p17 = scmp.ge.s32.totalorder %s16, 4
      %s26 = sphi 0, %s28
      %s29 = sphi 0, %s26
      %s30 = sphi 0, %s29
      %s46 = sphi 0, %s30
      %s52 = sphi 0, %s54
      %s55 = sphi 0, %s52
      %s56 = sphi 0, %s55
      %s72 = sphi 0, %s56
      %s76 = sphi 0, %s76
      %s78 = sphi 0, %s76
      %s79 = sphi 0, %s78
      %s93 = sphi 0, %s79
      %s97 = sphi 0, %s97
      %s99 = sphi 0, %s97
      %s100 = sphi 0, %s99
      %s114 = sphi 0, %s100
      %s118 = sphi 0, %s118
      %s120 = sphi 0, %s118
      %s121 = sphi 0, %s120
      %s135 = sphi 0, %s121
      %s139 = sphi 0, %s139
      %s141 = sphi 0, %s139
      %s142 = sphi 0, %s141
      %s156 = sphi 0, %s142
      %s160 = sphi 0, %s160
      %s162 = sphi 0, %s160
      %s163 = sphi 0, %s162
      %s177 = sphi 0, %s163
      %s181 = sphi 0, %s181
      %s183 = sphi 0, %s181
      %s184 = sphi 0, %s183
      %s198 = sphi 0, %s184
      %s204 = sphi 0, %s206
      %s207 = sphi 0, %s204
      %s208 = sphi 0, %s207
      %s224 = sphi 0, %s208
    $region4: #{run.7} parent=1 // loop_header_branch
      %19 = sbr.rel (%p17) target = $region8
    $region5: #{run.7} parent=1 // loop_body
      %s21 = ssub.s32 %s16, 1
      %s22 = ssub.s32 %s16, 2
      %s23 = sadd.s32 %s16, 1
      %s24 = ssub.s32 %s16, %s23
      %p25 = scmp.eq.s32.totalorder %s24, 0
      %s27 = sadd.s32 %s26, 1
      %s28 = scalar_select %p25, %s26, %s27
      %p31 = pneg %p25
      %p32 = scmp.eq.s32.totalorder %s16, 1
      %p33 = por %p31, %p32
      %p34 = scmp.ne.s32.totalorder %s26, %s29
      %p35 = scmp.eq.s32.totalorder %s16, 0
      %p36 = por %p34, %p35
      %p37 = scmp.ne.s32.totalorder %s26, %s29
      %p38 = scmp.eq.s32.totalorder %s21, 1
      %p39 = por %p37, %p38
      %p40 = scmp.ne.s32.totalorder %s29, %s30
      %p41 = scmp.eq.s32.totalorder %s21, 0
      %p42 = por %p40, %p41
      %p43 = scmp.ne.s32.totalorder %s29, %s30
      %p44 = scmp.eq.s32.totalorder %s22, 1
      %p45 = por %p43, %p44
      %p47 = scmp.ne.s32.totalorder %s30, %s46
      %p48 = scmp.eq.s32.totalorder %s22, 0
      %p49 = por %p47, %p48
      %s50 = ssub.s32 %s16, %s23
      %p51 = scmp.eq.s32.totalorder %s50, 0
      %s53 = sadd.s32 %s52, 1
      %s54 = scalar_select %p51, %s52, %s53
      %p57 = pneg %p51
      %p58 = scmp.eq.s32.totalorder %s16, 1
      %p59 = por %p57, %p58
      %p60 = scmp.ne.s32.totalorder %s52, %s55
      %p61 = scmp.eq.s32.totalorder %s16, 0
      %p62 = por %p60, %p61
      %p63 = scmp.ne.s32.totalorder %s52, %s55
      %p64 = scmp.eq.s32.totalorder %s21, 1
      %p65 = por %p63, %p64
      %p66 = scmp.ne.s32.totalorder %s55, %s56
      %p67 = scmp.eq.s32.totalorder %s21, 0
      %p68 = por %p66, %p67
      %p69 = scmp.ne.s32.totalorder %s55, %s56
      %p70 = scmp.eq.s32.totalorder %s22, 1
      %p71 = por %p69, %p70
      %p73 = scmp.ne.s32.totalorder %s56, %s72
      %p74 = scmp.eq.s32.totalorder %s22, 0
      %p75 = por %p73, %p74
      %s77 = sadd.s32 %s76, 1
      %p80 = scmp.eq.s32.totalorder %s16, 1
      %p81 = scmp.ne.s32.totalorder %s76, %s78
      %p82 = scmp.eq.s32.totalorder %s16, 0
      %p83 = por %p81, %p82
      %p84 = scmp.ne.s32.totalorder %s76, %s78
      %p85 = scmp.eq.s32.totalorder %s21, 1
      %p86 = por %p84, %p85
      %p87 = scmp.ne.s32.totalorder %s78, %s79
      %p88 = scmp.eq.s32.totalorder %s21, 0
      %p89 = por %p87, %p88
      %p90 = scmp.ne.s32.totalorder %s78, %s79
      %p91 = scmp.eq.s32.totalorder %s22, 1
      %p92 = por %p90, %p91
      %p94 = scmp.ne.s32.totalorder %s79, %s93
      %p95 = scmp.eq.s32.totalorder %s22, 0
      %p96 = por %p94, %p95
      %s98 = sadd.s32 %s97, 1
      %p101 = scmp.eq.s32.totalorder %s16, 1
      %p102 = scmp.ne.s32.totalorder %s97, %s99
      %p103 = scmp.eq.s32.totalorder %s16, 0
      %p104 = por %p102, %p103
      %p105 = scmp.ne.s32.totalorder %s97, %s99
      %p106 = scmp.eq.s32.totalorder %s21, 1
      %p107 = por %p105, %p106
      %p108 = scmp.ne.s32.totalorder %s99, %s100
      %p109 = scmp.eq.s32.totalorder %s21, 0
      %p110 = por %p108, %p109
      %p111 = scmp.ne.s32.totalorder %s99, %s100
      %p112 = scmp.eq.s32.totalorder %s22, 1
      %p113 = por %p111, %p112
      %p115 = scmp.ne.s32.totalorder %s100, %s114
      %p116 = scmp.eq.s32.totalorder %s22, 0
      %p117 = por %p115, %p116
      %s119 = sadd.s32 %s118, 1
      %p122 = scmp.eq.s32.totalorder %s16, 1
      %p123 = scmp.ne.s32.totalorder %s118, %s120
      %p124 = scmp.eq.s32.totalorder %s16, 0
      %p125 = por %p123, %p124
      %p126 = scmp.ne.s32.totalorder %s118, %s120
      %p127 = scmp.eq.s32.totalorder %s21, 1
      %p128 = por %p126, %p127
      %p129 = scmp.ne.s32.totalorder %s120, %s121
      %p130 = scmp.eq.s32.totalorder %s21, 0
      %p131 = por %p129, %p130
      %p132 = scmp.ne.s32.totalorder %s120, %s121
      %p133 = scmp.eq.s32.totalorder %s22, 1
      %p134 = por %p132, %p133
      %p136 = scmp.ne.s32.totalorder %s121, %s135
      %p137 = scmp.eq.s32.totalorder %s22, 0
      %p138 = por %p136, %p137
      %s140 = sadd.s32 %s139, 1
      %p143 = scmp.eq.s32.totalorder %s16, 1
      %p144 = scmp.ne.s32.totalorder %s139, %s141
      %p145 = scmp.eq.s32.totalorder %s16, 0
      %p146 = por %p144, %p145
      %p147 = scmp.ne.s32.totalorder %s139, %s141
      %p148 = scmp.eq.s32.totalorder %s21, 1
      %p149 = por %p147, %p148
      %p150 = scmp.ne.s32.totalorder %s141, %s142
      %p151 = scmp.eq.s32.totalorder %s21, 0
      %p152 = por %p150, %p151
      %p153 = scmp.ne.s32.totalorder %s141, %s142
      %p154 = scmp.eq.s32.totalorder %s22, 1
      %p155 = por %p153, %p154
      %p157 = scmp.ne.s32.totalorder %s142, %s156
      %p158 = scmp.eq.s32.totalorder %s22, 0
      %p159 = por %p157, %p158
      %s161 = sadd.s32 %s160, 1
      %p164 = scmp.eq.s32.totalorder %s16, 1
      %p165 = scmp.ne.s32.totalorder %s160, %s162
      %p166 = scmp.eq.s32.totalorder %s16, 0
      %p167 = por %p165, %p166
      %p168 = scmp.ne.s32.totalorder %s160, %s162
      %p169 = scmp.eq.s32.totalorder %s21, 1
      %p170 = por %p168, %p169
      %p171 = scmp.ne.s32.totalorder %s162, %s163
      %p172 = scmp.eq.s32.totalorder %s21, 0
      %p173 = por %p171, %p172
      %p174 = scmp.ne.s32.totalorder %s162, %s163
      %p175 = scmp.eq.s32.totalorder %s22, 1
      %p176 = por %p174, %p175
      %p178 = scmp.ne.s32.totalorder %s163, %s177
      %p179 = scmp.eq.s32.totalorder %s22, 0
      %p180 = por %p178, %p179
      %s182 = sadd.s32 %s181, 1
      %p185 = scmp.eq.s32.totalorder %s16, 1
      %p186 = scmp.ne.s32.totalorder %s181, %s183
      %p187 = scmp.eq.s32.totalorder %s16, 0
      %p188 = por %p186, %p187
      %p189 = scmp.ne.s32.totalorder %s181, %s183
      %p190 = scmp.eq.s32.totalorder %s21, 1
      %p191 = por %p189, %p190
      %p192 = scmp.ne.s32.totalorder %s183, %s184
      %p193 = scmp.eq.s32.totalorder %s21, 0
      %p194 = por %p192, %p193
      %p195 = scmp.ne.s32.totalorder %s183, %s184
      %p196 = scmp.eq.s32.totalorder %s22, 1
      %p197 = por %p195, %p196
      %p199 = scmp.ne.s32.totalorder %s184, %s198
      %p200 = scmp.eq.s32.totalorder %s22, 0
      %p201 = por %p199, %p200
      %s202 = ssub.s32 %s16, %s23
      %p203 = scmp.eq.s32.totalorder %s202, 0
      %s205 = sadd.s32 %s204, 1
      %s206 = scalar_select %p203, %s204, %s205
      %p209 = pneg %p203
      %p210 = scmp.eq.s32.totalorder %s16, 1
      %p211 = por %p209, %p210
      %p212 = scmp.ne.s32.totalorder %s204, %s207
      %p213 = scmp.eq.s32.totalorder %s16, 0
      %p214 = por %p212, %p213
      %p215 = scmp.ne.s32.totalorder %s204, %s207
      %p216 = scmp.eq.s32.totalorder %s21, 1
      %p217 = por %p215, %p216
      %p218 = scmp.ne.s32.totalorder %s207, %s208
      %p219 = scmp.eq.s32.totalorder %s21, 0
      %p220 = por %p218, %p219
      %p221 = scmp.ne.s32.totalorder %s207, %s208
      %p222 = scmp.eq.s32.totalorder %s22, 1
      %p223 = por %p221, %p222
      %p225 = scmp.ne.s32.totalorder %s208, %s224
      %p226 = scmp.eq.s32.totalorder %s22, 0
      %p227 = por %p225, %p226
      %p228 = scmp.le.s32.totalorder 1, %s16
      %p229 = scmp.lt.s32.totalorder %s16, 3
      %p230 = pnand %p228, %p229
      %p231 = pneg %p230
      // Predicated region
      $region9: #{run.7} parent=5 // pred_check
        _
      $region10: #{run.7} parent=5 // pred_check_branch
        %233 = sbr.rel (%p230) target = $region12
      $region11: #{run.7} parent=5 // pred_region
        %s234 = ssub.s32 %s16, 1
        // Predicated region
        $region13: #{run.7} parent=11 // pred_check
          %p235 = pneg %p89
        $region14: #{run.7} parent=11 // pred_check_branch
          %237 = sbr.rel (%p235) target = $region16
        $region15: #{run.7} parent=11 // pred_region
          %s239 = ssub.s32 3072, 3072
          %240 = vsyncadd [#allocation3], %s239
          %s241 = sshll.u32 [#allocation2], 4
          %s242 = int_to_ptr.vmem [resolvable:$true] %s241
          %247 = dma.hbm_to_vmem [thread:$0]  %s2, 3072, %s242, [#allocation3], 192, 192, 12
        $region16: #{run.7} parent=11 // pred_fallthru
          _
        // Predicated region
        $region17: #{run.7} parent=11 // pred_check
          %p248 = pneg %p110
        $region18: #{run.7} parent=11 // pred_check_branch
          %250 = sbr.rel (%p248) target = $region20
        $region19: #{run.7} parent=11 // pred_region
          _
        $region20: #{run.7} parent=11 // pred_fallthru
          _
        // Predicated region
        $region21: #{run.7} parent=11 // pred_check
          %p251 = pneg %p131
        $region22: #{run.7} parent=11 // pred_check_branch
          %253 = sbr.rel (%p251) target = $region24
        $region23: #{run.7} parent=11 // pred_region
          %s255 = ssub.s32 1024, 1024
          %256 = vsyncadd [#allocation5], %s255
          %s257 = sshll.u32 [#allocation4], 4
          %s258 = int_to_ptr.vmem [resolvable:$true] %s257
          %263 = dma.hbm_to_vmem [thread:$0]  %s4, 1024, %s258, [#allocation5], 64, 64, 4
        $region24: #{run.7} parent=11 // pred_fallthru
          _
        // Predicated region
        $region25: #{run.7} parent=11 // pred_check
          %p264 = pneg %p152
        $region26: #{run.7} parent=11 // pred_check_branch
          %266 = sbr.rel (%p264) target = $region28
        $region27: #{run.7} parent=11 // pred_region
          _
        $region28: #{run.7} parent=11 // pred_fallthru
          _
        // Predicated region
        $region29: #{run.7} parent=11 // pred_check
          %p267 = pneg %p173
        $region30: #{run.7} parent=11 // pred_check_branch
          %269 = sbr.rel (%p267) target = $region32
        $region31: #{run.7} parent=11 // pred_region
          _
        $region32: #{run.7} parent=11 // pred_fallthru
          _
        // Predicated region
        $region33: #{run.7} parent=11 // pred_check
          %p270 = pneg %p194
        $region34: #{run.7} parent=11 // pred_check_branch
          %272 = sbr.rel (%p270) target = $region36
        $region35: #{run.7} parent=11 // pred_region
          _
        $region36: #{run.7} parent=11 // pred_fallthru
          _
      $region12: #{run.7} parent=5 // pred_fallthru
        _
      %p273 = scmp.lt.s32.totalorder %s16, 2
      // Predicated region
      $region37: #{run.7} parent=5 // pred_check
        %p274 = pneg %p273
      $region38: #{run.7} parent=5 // pred_check_branch
        %276 = sbr.rel (%p274) target = $region40
      $region39: #{run.7} parent=5 // pred_region
        // Predicated region
        $region41: #{run.7} parent=39 // pred_check
          %p277 = pneg %p36
        $region42: #{run.7} parent=39 // pred_check_branch
          %279 = sbr.rel (%p277) target = $region44
        $region43: #{run.7} parent=39 // pred_region
          %p280 = scmp.lt.s32.totalorder %s16, 1
          %s281 = scalar_select %p280, %s16, 1
          %s282 = smul.addr %s281, 4
          %s283 = scalar_lea.vmem %s0, %s282
        $region44: #{run.7} parent=39 // pred_fallthru
          _
        // Predicated region
        $region45: #{run.7} parent=39 // pred_check
          %p284 = pneg %p62
        $region46: #{run.7} parent=39 // pred_check_branch
          %286 = sbr.rel (%p284) target = $region48
        $region47: #{run.7} parent=39 // pred_region
          %p287 = scmp.lt.s32.totalorder %s16, 1
          %s288 = scalar_select %p287, %s16, 1
          %s289 = scalar_lea.vmem %s1, %s288
        $region48: #{run.7} parent=39 // pred_fallthru
          _
      $region40: #{run.7} parent=5 // pred_fallthru
        _
      %p290 = scmp.le.s32.totalorder 1, %s16
      %p291 = scmp.lt.s32.totalorder %s16, 3
      %p292 = pnand %p290, %p291
      %p293 = pneg %p292
      // Predicated region
      $region49: #{run.7} parent=5 // pred_check
        _
      $region50: #{run.7} parent=5 // pred_check_branch
        %295 = sbr.rel (%p292) target = $region52
      $region51: #{run.7} parent=5 // pred_region
        %s296 = ssub.s32 %s16, 1
        // Predicated region
        $region53: #{run.7} parent=51 // pred_check
          %p297 = pneg %p89
        $region54: #{run.7} parent=51 // pred_check_branch
          %299 = sbr.rel (%p297) target = $region56
        $region55: #{run.7} parent=51 // pred_region
          %300 = dma.done [#allocation3], 3072
        $region56: #{run.7} parent=51 // pred_fallthru
          _
        // Predicated region
        $region57: #{run.7} parent=51 // pred_check
          %p301 = pneg %p131
        $region58: #{run.7} parent=51 // pred_check_branch
          %303 = sbr.rel (%p301) target = $region60
        $region59: #{run.7} parent=51 // pred_region
          %304 = dma.done [#allocation5], 1024
        $region60: #{run.7} parent=51 // pred_fallthru
          _
        %p305 = scmp.lt.s32.totalorder %s21, 1
        %s306 = scalar_select %p305, %s21, 1
        %s307 = smul.addr %s306, 4
        %s308 = scalar_lea.vmem %s0, %s307
        %p309 = pneg %p42
        %p310 = pneg %p39
        %p311 = scmp.lt.s32.totalorder %s21, 1
        %s312 = scalar_select %p311, %s21, 1
        %s313 = scalar_lea.vmem %s1, %s312
        %p314 = pneg %p68
        %p315 = pneg %p65
        %p316 = pneg %p89
        %p317 = pneg %p86
        %p318 = pneg %p110
        %p319 = pneg %p107
        %p320 = pneg %p131
        %p321 = pneg %p128
        %p322 = pneg %p152
        %p323 = pneg %p149
        %p324 = pneg %p173
        %p325 = pneg %p170
        %p326 = pneg %p194
        %p327 = pneg %p191
        %p328 = pneg %p220
        %p329 = pneg %p217
        %p330 = scmp.lt.s32.totalorder %s21, 1
        %s331 = scalar_select %p330, %s21, 1
        %s332 = smul.addr %s331, 4
        %s333 = scalar_lea.vmem %s8, %s332
        %p334 = scmp.lt.s32.totalorder %s21, 1
        %s335 = scalar_select %p334, %s21, 1
        %s336 = smul.addr %s335, 4
        %s337 = scalar_lea.vmem %s0, %s336
        %p338 = scmp.lt.s32.totalorder %s21, 1
        %s339 = scalar_select %p338, %s21, 1
        %s340 = scalar_lea.vmem %s1, %s339
        %p341 = scmp.lt.s32.totalorder %s21, 1
        %s342 = scalar_select %p341, %s21, 1
        %s343 = smul.addr %s342, 4
        %s344 = scalar_lea.vmem %s8, %s343
        %v346 = vld [vmem:[%s337] sm:$0xf]
        %v347 = vld [vmem:[%s340] sm:$0x1]
        %v348 = vld [vmem:[#allocation2] sm:$0xff]
        %v349 = vld [vmem:[#allocation2 + $0x8] sm:$0xf]
        %v350 = vld [vmem:[#allocation2 + $0xc] sm:$0xff]
        %v351 = vld [vmem:[#allocation2 + $0x14] sm:$0xf]
        %v352 = vld [vmem:[#allocation2 + $0x18] sm:$0xff]
        %v353 = vld [vmem:[#allocation2 + $0x20] sm:$0xf]
        %v354 = vld [vmem:[#allocation2 + $0x24] sm:$0xff]
        %v355 = vld [vmem:[#allocation2 + $0x2c] sm:$0xf]
        %v356 = vld [vmem:[#allocation2 + $0x30] sm:$0xff]
        %v357 = vld [vmem:[#allocation2 + $0x38] sm:$0xf]
        %v358 = vld [vmem:[#allocation2 + $0x3c] sm:$0xff]
        %v359 = vld [vmem:[#allocation2 + $0x44] sm:$0xf]
        %v360 = vld [vmem:[#allocation2 + $0x48] sm:$0xff]
        %v361 = vld [vmem:[#allocation2 + $0x50] sm:$0xf]
        %v362 = vld [vmem:[#allocation2 + $0x54] sm:$0xff]
        %v363 = vld [vmem:[#allocation2 + $0x5c] sm:$0xf]
        %v364 = vld [vmem:[#allocation2 + $0x60] sm:$0xff]
        %v365 = vld [vmem:[#allocation2 + $0x68] sm:$0xf]
        %v366 = vld [vmem:[#allocation2 + $0x6c] sm:$0xff]
        %v367 = vld [vmem:[#allocation2 + $0x74] sm:$0xf]
        %v368 = vld [vmem:[#allocation2 + $0x78] sm:$0xff]
        %v369 = vld [vmem:[#allocation2 + $0x80] sm:$0xf]
        %v370 = vld [vmem:[#allocation2 + $0x84] sm:$0xff]
        %v371 = vld [vmem:[#allocation2 + $0x8c] sm:$0xf]
        %v372 = vld [vmem:[#allocation2 + $0x90] sm:$0xff]
        %v373 = vld [vmem:[#allocation2 + $0x98] sm:$0xf]
        %v374 = vld [vmem:[#allocation2 + $0x9c] sm:$0xff]
        %v375 = vld [vmem:[#allocation2 + $0xa4] sm:$0xf]
        %v376 = vld [vmem:[#allocation2 + $0xa8] sm:$0xff]
        %v377 = vld [vmem:[#allocation2 + $0xb0] sm:$0xf]
        %v378 = vld [vmem:[#allocation2 + $0xb4] sm:$0xff]
        %v379 = vld [vmem:[#allocation2 + $0xbc] sm:$0xf]
        %v380 = vld [vmem:[%s3] sm:$0x7]
        %v382 = vlaneseq
        %v383 = vshrl.u32 %v382, 7
        %v384 = vsub.s32 0, %v383
        %v385 = vrot.slane %v380, %v384
        %v386 = vlaneseq
        %v387 = vshrl.u32 %v386, 7
        %v388 = vsub.s32 1, %v387
        %v389 = vrot.slane %v380, %v388
        %v390 = vlaneseq
        %v391 = vshrl.u32 %v390, 7
        %v392 = vsub.s32 2, %v391
        %v393 = vrot.slane %v380, %v392
        %v429 = vunpack.c.l.b16 %v348
        %v430 = vunpack.c.h.b16 %v348
        %v431 = vunpack.c.l.b16 %v349
        %v432 = vunpack.c.l.b16 %v350
        %v433 = vunpack.c.h.b16 %v350
        %v434 = vunpack.c.l.b16 %v351
        %v435 = vunpack.c.l.b16 %v352
        %v436 = vunpack.c.h.b16 %v352
        %v437 = vunpack.c.l.b16 %v353
        %v438 = vunpack.c.l.b16 %v354
        %v439 = vunpack.c.h.b16 %v354
        %v440 = vunpack.c.l.b16 %v355
        %v441 = vunpack.c.l.b16 %v356
        %v442 = vunpack.c.h.b16 %v356
        %v443 = vunpack.c.l.b16 %v357
        %v444 = vunpack.c.l.b16 %v358
        %v445 = vunpack.c.h.b16 %v358
        %v446 = vunpack.c.l.b16 %v359
        %v447 = vunpack.c.l.b16 %v360
        %v448 = vunpack.c.h.b16 %v360
        %v449 = vunpack.c.l.b16 %v361
        %v450 = vunpack.c.l.b16 %v362
        %v451 = vunpack.c.h.b16 %v362
        %v452 = vunpack.c.l.b16 %v363
        %v453 = vunpack.c.l.b16 %v364
        %v454 = vunpack.c.h.b16 %v364
        %v455 = vunpack.c.l.b16 %v365
        %v456 = vunpack.c.l.b16 %v366
        %v457 = vunpack.c.h.b16 %v366
        %v458 = vunpack.c.l.b16 %v367
        %v459 = vunpack.c.l.b16 %v368
        %v460 = vunpack.c.h.b16 %v368
        %v461 = vunpack.c.l.b16 %v369
        %v462 = vunpack.c.l.b16 %v370
        %v463 = vunpack.c.h.b16 %v370
        %v464 = vunpack.c.l.b16 %v371
        %v465 = vunpack.c.l.b16 %v372
        %v466 = vunpack.c.h.b16 %v372
        %v467 = vunpack.c.l.b16 %v373
        %v468 = vunpack.c.l.b16 %v374
        %v469 = vunpack.c.h.b16 %v374
        %v470 = vunpack.c.l.b16 %v375
        %v471 = vunpack.c.l.b16 %v376
        %v472 = vunpack.c.h.b16 %v376
        %v473 = vunpack.c.l.b16 %v377
        %v474 = vunpack.c.l.b16 %v378
        %v475 = vunpack.c.h.b16 %v378
        %v476 = vunpack.c.l.b16 %v379
        %v477 = vpack.c.b16 %v432, %v429
        %v478 = vpack.c.b16 %v433, %v430
        %v479 = vpack.c.b16 %v434, %v431
        %v480 = vpack.c.b16 %v438, %v435
        %v481 = vpack.c.b16 %v439, %v436
        %v482 = vpack.c.b16 %v440, %v437
        %v483 = vpack.c.b16 %v444, %v441
        %v484 = vpack.c.b16 %v445, %v442
        %v485 = vpack.c.b16 %v446, %v443
        %v486 = vpack.c.b16 %v450, %v447
        %v487 = vpack.c.b16 %v451, %v448
        %v488 = vpack.c.b16 %v452, %v449
        %v489 = vpack.c.b16 %v456, %v453
        %v490 = vpack.c.b16 %v457, %v454
        %v491 = vpack.c.b16 %v458, %v455
        %v492 = vpack.c.b16 %v462, %v459
        %v493 = vpack.c.b16 %v463, %v460
        %v494 = vpack.c.b16 %v464, %v461
        %v495 = vpack.c.b16 %v468, %v465
        %v496 = vpack.c.b16 %v469, %v466
        %v497 = vpack.c.b16 %v470, %v467
        %v498 = vpack.c.b16 %v474, %v471
        %v499 = vpack.c.b16 %v475, %v472
        %v500 = vpack.c.b16 %v476, %v473
        %525 = vmatprep.subr.bf16.mxu0 %v499
        %526 = vmatpush1.bf16.msra.mxu0 %v498
        %527 = vmatprep.subr.bf16.mxu0 %v496
        %528 = vmatpush1.bf16.msra.mxu0 %v495
        %529 = vmatprep.subr.bf16.mxu0 %v493
        %530 = vmatpush1.bf16.msra.mxu0 %v492
        %531 = vmatprep.subr.bf16.mxu0 %v490
        %532 = vmatpush1.bf16.msra.mxu0 %v489
        %533 = vmatprep.subr.bf16.mxu0 %v487
        %534 = vmatpush1.bf16.msra.mxu0 %v486
        %535 = vmatprep.subr.bf16.mxu0 %v484
        %536 = vmatpush1.bf16.msra.mxu0 %v483
        %537 = vmatprep.subr.bf16.mxu0 %v481
        %538 = vmatpush1.bf16.msra.mxu0 %v480
        %539 = vmatprep.subr.bf16.mxu0 %v478
        %540 = vmatpush1.bf16.msra.mxu0 %v477
        %541 = vmatprep.subr.bf16.mxu0 0
        %542 = vmatpush2.bf16.msra.mxu0 0
        %543 = vmatprep.subr.bf16.mxu0 0
        %544 = vmatpush2.bf16.msra.mxu0 0
        %545 = vmatprep.subr.bf16.mxu0 0
        %546 = vmatpush2.bf16.msra.mxu0 0
        %547 = vmatprep.subr.bf16.mxu0 0
        %548 = vmatpush2.bf16.msra.mxu0 0
        %549 = vmatprep.subr.bf16.mxu0 0
        %550 = vmatpush2.bf16.msra.mxu0 0
        %551 = vmatprep.subr.bf16.mxu0 0
        %552 = vmatpush2.bf16.msra.mxu0 0
        %553 = vmatprep.subr.bf16.mxu0 0
        %554 = vmatpush2.bf16.msra.mxu0 0
        %555 = vmatprep.subr.bf16.mxu0 0
        %556 = vmatpush2.bf16.msra.mxu0 0
        %557 = vmatprep.mubr.bf16.mxu0 0
        %558 = vmatmul.mubr.bf16.gmra.mxu0 %v346
        %v559 = vpop.f32.mrf.mxu0
        %v560 = vadd.f32 %v385, %v559
        %v561 = vpop.f32.mrf.mxu0
        %v562 = vadd.f32 %v389, %v561
        %v563 = vpop.f32.mrf.mxu0
        %v564 = vpop.f32.mrf.mxu0
        %565 = vdwg.mxu0
        %566 = vmatprep.subr.bf16.mxu0 0
        %567 = vmatpush1.bf16.msra.mxu0 %v500
        %568 = vmatprep.subr.bf16.mxu0 0
        %569 = vmatpush1.bf16.msra.mxu0 %v497
        %570 = vmatprep.subr.bf16.mxu0 0
        %571 = vmatpush1.bf16.msra.mxu0 %v494
        %572 = vmatprep.subr.bf16.mxu0 0
        %573 = vmatpush1.bf16.msra.mxu0 %v491
        %574 = vmatprep.subr.bf16.mxu0 0
        %575 = vmatpush1.bf16.msra.mxu0 %v488
        %576 = vmatprep.subr.bf16.mxu0 0
        %577 = vmatpush1.bf16.msra.mxu0 %v485
        %578 = vmatprep.subr.bf16.mxu0 0
        %579 = vmatpush1.bf16.msra.mxu0 %v482
        %580 = vmatprep.subr.bf16.mxu0 0
        %581 = vmatpush1.bf16.msra.mxu0 %v479
        %582 = vmatprep.subr.bf16.mxu0 0
        %583 = vmatpush2.bf16.msra.mxu0 0
        %584 = vmatprep.subr.bf16.mxu0 0
        %585 = vmatpush2.bf16.msra.mxu0 0
        %586 = vmatprep.subr.bf16.mxu0 0
        %587 = vmatpush2.bf16.msra.mxu0 0
        %588 = vmatprep.subr.bf16.mxu0 0
        %589 = vmatpush2.bf16.msra.mxu0 0
        %590 = vmatprep.subr.bf16.mxu0 0
        %591 = vmatpush2.bf16.msra.mxu0 0
        %592 = vmatprep.subr.bf16.mxu0 0
        %593 = vmatpush2.bf16.msra.mxu0 0
        %594 = vmatprep.subr.bf16.mxu0 0
        %595 = vmatpush2.bf16.msra.mxu0 0
        %596 = vmatprep.subr.bf16.mxu0 0
        %597 = vmatpush2.bf16.msra.mxu0 0
        %598 = vmatprep.mubr.bf16.mxu0 0
        %599 = vmatmul.mubr.bf16.gmra.mxu0 %v346
        %v600 = vpop.f32.mrf.mxu0
        %v601 = vadd.f32 %v393, %v600
        %v602 = vpop.f32.mrf.mxu0
        %v603 = vpop.f32.mrf.mxu0
        %v604 = vpop.f32.mrf.mxu0
        %605 = vdwg.mxu0
        %v606 = vpack.c.bf16 %v560, %v560
        %v607 = vpack.c.bf16 %v562, %v562
        %v609 = vlaneseq
        %v610 = vshrl.u32 %v609, 7
        %v611 = vsub.s32 0, %v610
        %v612 = vrot.slane %v347, %v611
        %vm614 = vcmask 261120
        %v616 = vsel %vm614, %v606, 0
        %v619 = vsel %vm614, %v607, 0
        %621 = vmatprep.subr.bf16.mxu0 0
        %622 = vmatpush1.bf16.xpose.msra.mxu0 0
        %623 = vmatprep.subr.bf16.mxu0 0
        %624 = vmatpush1.bf16.xpose.msra.mxu0 0
        %625 = vmatprep.subr.bf16.mxu0 0
        %626 = vmatpush1.bf16.xpose.msra.mxu0 0
        %627 = vmatprep.subr.bf16.mxu0 0
        %628 = vmatpush1.bf16.xpose.msra.mxu0 0
        %629 = vmatprep.subr.bf16.mxu0 0
        %630 = vmatpush1.bf16.xpose.msra.mxu0 0
        %631 = vmatprep.subr.bf16.mxu0 0
        %632 = vmatpush1.bf16.xpose.msra.mxu0 0
        %633 = vmatprep.subr.bf16.mxu0 0
        %634 = vmatpush1.bf16.xpose.msra.mxu0 0
        %635 = vmatprep.subr.bf16.mxu0 0
        %636 = vmatpush1.bf16.xpose.msra.mxu0 %v619
        %637 = vmatprep.subr.bf16.mxu0 0
        %638 = vmatpush2.bf16.xpose.msra.mxu0 0
        %639 = vmatprep.subr.bf16.mxu0 0
        %640 = vmatpush2.bf16.xpose.msra.mxu0 0
        %641 = vmatprep.subr.bf16.mxu0 0
        %642 = vmatpush2.bf16.xpose.msra.mxu0 0
        %643 = vmatprep.subr.bf16.mxu0 0
        %644 = vmatpush2.bf16.xpose.msra.mxu0 0
        %645 = vmatprep.subr.bf16.mxu0 0
        %646 = vmatpush2.bf16.xpose.msra.mxu0 0
        %647 = vmatprep.subr.bf16.mxu0 0
        %648 = vmatpush2.bf16.xpose.msra.mxu0 0
        %649 = vmatprep.subr.bf16.mxu0 0
        %650 = vmatpush2.bf16.xpose.msra.mxu0 0
        %651 = vmatprep.subr.bf16.mxu0 0
        %652 = vmatpush2.bf16.xpose.msra.mxu0 0
        %653 = vmatprep.mubr.bf16.mxu0 0
        %654 = vmatmul.mubr.bf16.gmra.mxu0 %v616
        %v655 = vpop.f32.mrf.mxu0
        %v656 = vadd.f32 %v612, %v655
        %v657 = vpop.f32.mrf.mxu0
        %v658 = vpop.f32.mrf.mxu0
        %v659 = vpop.f32.mrf.mxu0
        %660 = vdwg.mxu0
        %vm661 = vcmask 64512
        %v662 = vsel %vm661, %v656, -inf
        %663 = vmax.xlane.f32.xlu0 %v662
        %v664 = vpop.xlane.xlu0 %663
        %v665 = vsub.f32 %v656, %v664
        %v666 = vmul.f32 %v665, 1.442695
        %v667 = vpow.pop %v666
        %v668 = vsel %vm661, %v667, 0.0
        %669 = vadd.xlane.f32.xlu0 %v668
        %v670 = vpop.xlane.xlu0 %669
        %v671 = vrcp.pop %v670
        %v672 = vmul.f32 %v667, %v671
        %v673 = vpack.c.bf16 %v672, %v672
        %v674 = vpack.c.bf16 %v601, %v601
        %v676 = vsel %vm661, %v673, 0
        %vm678 = vcmask 1043456
        %v680 = vsel %vm678, %v674, 0
        %682 = vmatprep.subr.bf16.mxu0 0
        %683 = vmatpush1.bf16.msra.mxu0 0
        %684 = vmatprep.subr.bf16.mxu0 0
        %685 = vmatpush1.bf16.msra.mxu0 0
        %686 = vmatprep.subr.bf16.mxu0 0
        %687 = vmatpush1.bf16.msra.mxu0 0
        %688 = vmatprep.subr.bf16.mxu0 0
        %689 = vmatpush1.bf16.msra.mxu0 0
        %690 = vmatprep.subr.bf16.mxu0 0
        %691 = vmatpush1.bf16.msra.mxu0 0
        %692 = vmatprep.subr.bf16.mxu0 0
        %693 = vmatpush1.bf16.msra.mxu0 0
        %694 = vmatprep.subr.bf16.mxu0 0
        %695 = vmatpush1.bf16.msra.mxu0 0
        %696 = vmatprep.subr.bf16.mxu0 0
        %697 = vmatpush1.bf16.msra.mxu0 %v680
        %698 = vmatprep.subr.bf16.mxu0 0
        %699 = vmatpush2.bf16.msra.mxu0 0
        %700 = vmatprep.subr.bf16.mxu0 0
        %701 = vmatpush2.bf16.msra.mxu0 0
        %702 = vmatprep.subr.bf16.mxu0 0
        %703 = vmatpush2.bf16.msra.mxu0 0
        %704 = vmatprep.subr.bf16.mxu0 0
        %705 = vmatpush2.bf16.msra.mxu0 0
        %706 = vmatprep.subr.bf16.mxu0 0
        %707 = vmatpush2.bf16.msra.mxu0 0
        %708 = vmatprep.subr.bf16.mxu0 0
        %709 = vmatpush2.bf16.msra.mxu0 0
        %710 = vmatprep.subr.bf16.mxu0 0
        %711 = vmatpush2.bf16.msra.mxu0 0
        %712 = vmatprep.subr.bf16.mxu0 0
        %713 = vmatpush2.bf16.msra.mxu0 0
        %714 = vmatprep.mubr.bf16.mxu0 0
        %715 = vmatmul.mubr.bf16.gmra.mxu0 %v676
        %v716 = vpop.f32.mrf.mxu0
        %v717 = vadd.f32 0.0, %v716
        %v718 = vpop.f32.mrf.mxu0
        %v719 = vpop.f32.mrf.mxu0
        %v720 = vpop.f32.mrf.mxu0
        %721 = vdwg.mxu0
        %723 = vrot.lane.b32.xlu0 %v606, 96
        %v724 = vpop.permute.xlu0 %723
        %726 = vrot.lane.b32.xlu0 %v607, 96
        %v727 = vpop.permute.xlu0 %726
        %v729 = vsel %vm614, %v724, 0
        %v732 = vsel %vm614, %v727, 0
        %734 = vmatprep.subr.bf16.mxu0 0
        %735 = vmatpush1.bf16.xpose.msra.mxu0 0
        %736 = vmatprep.subr.bf16.mxu0 0
        %737 = vmatpush1.bf16.xpose.msra.mxu0 0
        %738 = vmatprep.subr.bf16.mxu0 0
        %739 = vmatpush1.bf16.xpose.msra.mxu0 0
        %740 = vmatprep.subr.bf16.mxu0 0
        %741 = vmatpush1.bf16.xpose.msra.mxu0 0
        %742 = vmatprep.subr.bf16.mxu0 0
        %743 = vmatpush1.bf16.xpose.msra.mxu0 0
        %744 = vmatprep.subr.bf16.mxu0 0
        %745 = vmatpush1.bf16.xpose.msra.mxu0 0
        %746 = vmatprep.subr.bf16.mxu0 0
        %747 = vmatpush1.bf16.xpose.msra.mxu0 0
        %748 = vmatprep.subr.bf16.mxu0 0
        %749 = vmatpush1.bf16.xpose.msra.mxu0 %v732
        %750 = vmatprep.subr.bf16.mxu0 0
        %751 = vmatpush2.bf16.xpose.msra.mxu0 0
        %752 = vmatprep.subr.bf16.mxu0 0
        %753 = vmatpush2.bf16.xpose.msra.mxu0 0
        %754 = vmatprep.subr.bf16.mxu0 0
        %755 = vmatpush2.bf16.xpose.msra.mxu0 0
        %756 = vmatprep.subr.bf16.mxu0 0
        %757 = vmatpush2.bf16.xpose.msra.mxu0 0
        %758 = vmatprep.subr.bf16.mxu0 0
        %759 = vmatpush2.bf16.xpose.msra.mxu0 0
        %760 = vmatprep.subr.bf16.mxu0 0
        %761 = vmatpush2.bf16.xpose.msra.mxu0 0
        %762 = vmatprep.subr.bf16.mxu0 0
        %763 = vmatpush2.bf16.xpose.msra.mxu0 0
        %764 = vmatprep.subr.bf16.mxu0 0
        %765 = vmatpush2.bf16.xpose.msra.mxu0 0
        %766 = vmatprep.mubr.bf16.mxu0 0
        %767 = vmatmul.mubr.bf16.gmra.mxu0 %v729
        %v768 = vpop.f32.mrf.mxu0
        %v769 = vadd.f32 %v612, %v768
        %v770 = vpop.f32.mrf.mxu0
        %v771 = vpop.f32.mrf.mxu0
        %v772 = vpop.f32.mrf.mxu0
        %773 = vdwg.mxu0
        %v774 = vsel %vm661, %v769, -inf
        %775 = vmax.xlane.f32.xlu0 %v774
        %v776 = vpop.xlane.xlu0 %775
        %v777 = vsub.f32 %v769, %v776
        %v778 = vmul.f32 %v777, 1.442695
        %v779 = vpow.pop %v778
        %v780 = vsel %vm661, %v779, 0.0
        %781 = vadd.xlane.f32.xlu0 %v780
        %v782 = vpop.xlane.xlu0 %781
        %v783 = vrcp.pop %v782
        %v784 = vmul.f32 %v779, %v783
        %v785 = vpack.c.bf16 %v784, %v784
        %787 = vrot.lane.b32.xlu0 %v674, 96
        %v788 = vpop.permute.xlu0 %787
        %v790 = vsel %vm661, %v785, 0
        %v793 = vsel %vm678, %v788, 0
        %795 = vmatprep.subr.bf16.mxu0 0
        %796 = vmatpush1.bf16.msra.mxu0 0
        %797 = vmatprep.subr.bf16.mxu0 0
        %798 = vmatpush1.bf16.msra.mxu0 0
        %799 = vmatprep.subr.bf16.mxu0 0
        %800 = vmatpush1.bf16.msra.mxu0 0
        %801 = vmatprep.subr.bf16.mxu0 0
        %802 = vmatpush1.bf16.msra.mxu0 0
        %803 = vmatprep.subr.bf16.mxu0 0
        %804 = vmatpush1.bf16.msra.mxu0 0
        %805 = vmatprep.subr.bf16.mxu0 0
        %806 = vmatpush1.bf16.msra.mxu0 0
        %807 = vmatprep.subr.bf16.mxu0 0
        %808 = vmatpush1.bf16.msra.mxu0 0
        %809 = vmatprep.subr.bf16.mxu0 0
        %810 = vmatpush1.bf16.msra.mxu0 %v793
        %811 = vmatprep.subr.bf16.mxu0 0
        %812 = vmatpush2.bf16.msra.mxu0 0
        %813 = vmatprep.subr.bf16.mxu0 0
        %814 = vmatpush2.bf16.msra.mxu0 0
        %815 = vmatprep.subr.bf16.mxu0 0
        %816 = vmatpush2.bf16.msra.mxu0 0
        %817 = vmatprep.subr.bf16.mxu0 0
        %818 = vmatpush2.bf16.msra.mxu0 0
        %819 = vmatprep.subr.bf16.mxu0 0
        %820 = vmatpush2.bf16.msra.mxu0 0
        %821 = vmatprep.subr.bf16.mxu0 0
        %822 = vmatpush2.bf16.msra.mxu0 0
        %823 = vmatprep.subr.bf16.mxu0 0
        %824 = vmatpush2.bf16.msra.mxu0 0
        %825 = vmatprep.subr.bf16.mxu0 0
        %826 = vmatpush2.bf16.msra.mxu0 0
        %827 = vmatprep.mubr.bf16.mxu0 0
        %828 = vmatmul.mubr.bf16.gmra.mxu0 %v790
        %v829 = vpop.f32.mrf.mxu0
        %v830 = vadd.f32 0.0, %v829
        %v831 = vpop.f32.mrf.mxu0
        %v832 = vpop.f32.mrf.mxu0
        %v833 = vpop.f32.mrf.mxu0
        %834 = vdwg.mxu0
        %835 = vrot.lane.b32.xlu0 %v606, 64
        %v836 = vpop.permute.xlu0 %835
        %837 = vrot.lane.b32.xlu0 %v607, 64
        %v838 = vpop.permute.xlu0 %837
        %v840 = vsel %vm614, %v836, 0
        %v843 = vsel %vm614, %v838, 0
        %845 = vmatprep.subr.bf16.mxu0 0
        %846 = vmatpush1.bf16.xpose.msra.mxu0 0
        %847 = vmatprep.subr.bf16.mxu0 0
        %848 = vmatpush1.bf16.xpose.msra.mxu0 0
        %849 = vmatprep.subr.bf16.mxu0 0
        %850 = vmatpush1.bf16.xpose.msra.mxu0 0
        %851 = vmatprep.subr.bf16.mxu0 0
        %852 = vmatpush1.bf16.xpose.msra.mxu0 0
        %853 = vmatprep.subr.bf16.mxu0 0
        %854 = vmatpush1.bf16.xpose.msra.mxu0 0
        %855 = vmatprep.subr.bf16.mxu0 0
        %856 = vmatpush1.bf16.xpose.msra.mxu0 0
        %857 = vmatprep.subr.bf16.mxu0 0
        %858 = vmatpush1.bf16.xpose.msra.mxu0 0
        %859 = vmatprep.subr.bf16.mxu0 0
        %860 = vmatpush1.bf16.xpose.msra.mxu0 %v843
        %861 = vmatprep.subr.bf16.mxu0 0
        %862 = vmatpush2.bf16.xpose.msra.mxu0 0
        %863 = vmatprep.subr.bf16.mxu0 0
        %864 = vmatpush2.bf16.xpose.msra.mxu0 0
        %865 = vmatprep.subr.bf16.mxu0 0
        %866 = vmatpush2.bf16.xpose.msra.mxu0 0
        %867 = vmatprep.subr.bf16.mxu0 0
        %868 = vmatpush2.bf16.xpose.msra.mxu0 0
        %869 = vmatprep.subr.bf16.mxu0 0
        %870 = vmatpush2.bf16.xpose.msra.mxu0 0
        %871 = vmatprep.subr.bf16.mxu0 0
        %872 = vmatpush2.bf16.xpose.msra.mxu0 0
        %873 = vmatprep.subr.bf16.mxu0 0
        %874 = vmatpush2.bf16.xpose.msra.mxu0 0
        %875 = vmatprep.subr.bf16.mxu0 0
        %876 = vmatpush2.bf16.xpose.msra.mxu0 0
        %877 = vmatprep.mubr.bf16.mxu0 0
        %878 = vmatmul.mubr.bf16.gmra.mxu0 %v840
        %v879 = vpop.f32.mrf.mxu0
        %v880 = vadd.f32 %v612, %v879
        %v881 = vpop.f32.mrf.mxu0
        %v882 = vpop.f32.mrf.mxu0
        %v883 = vpop.f32.mrf.mxu0
        %884 = vdwg.mxu0
        %v885 = vsel %vm661, %v880, -inf
        %886 = vmax.xlane.f32.xlu0 %v885
        %v887 = vpop.xlane.xlu0 %886
        %v888 = vsub.f32 %v880, %v887
        %v889 = vmul.f32 %v888, 1.442695
        %v890 = vpow.pop %v889
        %v891 = vsel %vm661, %v890, 0.0
        %892 = vadd.xlane.f32.xlu0 %v891
        %v893 = vpop.xlane.xlu0 %892
        %v894 = vrcp.pop %v893
        %v895 = vmul.f32 %v890, %v894
        %v896 = vpack.c.bf16 %v895, %v895
        %897 = vrot.lane.b32.xlu0 %v674, 64
        %v898 = vpop.permute.xlu0 %897
        %v900 = vsel %vm661, %v896, 0
        %v903 = vsel %vm678, %v898, 0
        %905 = vmatprep.subr.bf16.mxu0 0
        %906 = vmatpush1.bf16.msra.mxu0 0
        %907 = vmatprep.subr.bf16.mxu0 0
        %908 = vmatpush1.bf16.msra.mxu0 0
        %909 = vmatprep.subr.bf16.mxu0 0
        %910 = vmatpush1.bf16.msra.mxu0 0
        %911 = vmatprep.subr.bf16.mxu0 0
        %912 = vmatpush1.bf16.msra.mxu0 0
        %913 = vmatprep.subr.bf16.mxu0 0
        %914 = vmatpush1.bf16.msra.mxu0 0
        %915 = vmatprep.subr.bf16.mxu0 0
        %916 = vmatpush1.bf16.msra.mxu0 0
        %917 = vmatprep.subr.bf16.mxu0 0
        %918 = vmatpush1.bf16.msra.mxu0 0
        %919 = vmatprep.subr.bf16.mxu0 0
        %920 = vmatpush1.bf16.msra.mxu0 %v903
        %921 = vmatprep.subr.bf16.mxu0 0
        %922 = vmatpush2.bf16.msra.mxu0 0
        %923 = vmatprep.subr.bf16.mxu0 0
        %924 = vmatpush2.bf16.msra.mxu0 0
        %925 = vmatprep.subr.bf16.mxu0 0
        %926 = vmatpush2.bf16.msra.mxu0 0
        %927 = vmatprep.subr.bf16.mxu0 0
        %928 = vmatpush2.bf16.msra.mxu0 0
        %929 = vmatprep.subr.bf16.mxu0 0
        %930 = vmatpush2.bf16.msra.mxu0 0
        %931 = vmatprep.subr.bf16.mxu0 0
        %932 = vmatpush2.bf16.msra.mxu0 0
        %933 = vmatprep.subr.bf16.mxu0 0
        %934 = vmatpush2.bf16.msra.mxu0 0
        %935 = vmatprep.subr.bf16.mxu0 0
        %936 = vmatpush2.bf16.msra.mxu0 0
        %937 = vmatprep.mubr.bf16.mxu0 0
        %938 = vmatmul.mubr.bf16.gmra.mxu0 %v900
        %v939 = vpop.f32.mrf.mxu0
        %v940 = vadd.f32 0.0, %v939
        %v941 = vpop.f32.mrf.mxu0
        %v942 = vpop.f32.mrf.mxu0
        %v943 = vpop.f32.mrf.mxu0
        %944 = vdwg.mxu0
        %945 = vrot.lane.b32.xlu0 %v606, 32
        %v946 = vpop.permute.xlu0 %945
        %947 = vrot.lane.b32.xlu0 %v607, 32
        %v948 = vpop.permute.xlu0 %947
        %v950 = vsel %vm614, %v946, 0
        %v953 = vsel %vm614, %v948, 0
        %955 = vmatprep.subr.bf16.mxu0 0
        %956 = vmatpush1.bf16.xpose.msra.mxu0 0
        %957 = vmatprep.subr.bf16.mxu0 0
        %958 = vmatpush1.bf16.xpose.msra.mxu0 0
        %959 = vmatprep.subr.bf16.mxu0 0
        %960 = vmatpush1.bf16.xpose.msra.mxu0 0
        %961 = vmatprep.subr.bf16.mxu0 0
        %962 = vmatpush1.bf16.xpose.msra.mxu0 0
        %963 = vmatprep.subr.bf16.mxu0 0
        %964 = vmatpush1.bf16.xpose.msra.mxu0 0
        %965 = vmatprep.subr.bf16.mxu0 0
        %966 = vmatpush1.bf16.xpose.msra.mxu0 0
        %967 = vmatprep.subr.bf16.mxu0 0
        %968 = vmatpush1.bf16.xpose.msra.mxu0 0
        %969 = vmatprep.subr.bf16.mxu0 0
        %970 = vmatpush1.bf16.xpose.msra.mxu0 %v953
        %971 = vmatprep.subr.bf16.mxu0 0
        %972 = vmatpush2.bf16.xpose.msra.mxu0 0
        %973 = vmatprep.subr.bf16.mxu0 0
        %974 = vmatpush2.bf16.xpose.msra.mxu0 0
        %975 = vmatprep.subr.bf16.mxu0 0
        %976 = vmatpush2.bf16.xpose.msra.mxu0 0
        %977 = vmatprep.subr.bf16.mxu0 0
        %978 = vmatpush2.bf16.xpose.msra.mxu0 0
        %979 = vmatprep.subr.bf16.mxu0 0
        %980 = vmatpush2.bf16.xpose.msra.mxu0 0
        %981 = vmatprep.subr.bf16.mxu0 0
        %982 = vmatpush2.bf16.xpose.msra.mxu0 0
        %983 = vmatprep.subr.bf16.mxu0 0
        %984 = vmatpush2.bf16.xpose.msra.mxu0 0
        %985 = vmatprep.subr.bf16.mxu0 0
        %986 = vmatpush2.bf16.xpose.msra.mxu0 0
        %987 = vmatprep.mubr.bf16.mxu0 0
        %988 = vmatmul.mubr.bf16.gmra.mxu0 %v950
        %v989 = vpop.f32.mrf.mxu0
        %v990 = vadd.f32 %v612, %v989
        %v991 = vpop.f32.mrf.mxu0
        %v992 = vpop.f32.mrf.mxu0
        %v993 = vpop.f32.mrf.mxu0
        %994 = vdwg.mxu0
        %v995 = vsel %vm661, %v990, -inf
        %996 = vmax.xlane.f32.xlu0 %v995
        %v997 = vpop.xlane.xlu0 %996
        %v998 = vsub.f32 %v990, %v997
        %v999 = vmul.f32 %v998, 1.442695
        %v1000 = vpow.pop %v999
        %v1001 = vsel %vm661, %v1000, 0.0
        %1002 = vadd.xlane.f32.xlu0 %v1001
        %v1003 = vpop.xlane.xlu0 %1002
        %v1004 = vrcp.pop %v1003
        %v1005 = vmul.f32 %v1000, %v1004
        %v1006 = vpack.c.bf16 %v1005, %v1005
        %1007 = vrot.lane.b32.xlu0 %v674, 32
        %v1008 = vpop.permute.xlu0 %1007
        %v1010 = vsel %vm661, %v1006, 0
        %v1013 = vsel %vm678, %v1008, 0
        %1015 = vmatprep.subr.bf16.mxu0 0
        %1016 = vmatpush1.bf16.msra.mxu0 0
        %1017 = vmatprep.subr.bf16.mxu0 0
        %1018 = vmatpush1.bf16.msra.mxu0 0
        %1019 = vmatprep.subr.bf16.mxu0 0
        %1020 = vmatpush1.bf16.msra.mxu0 0
        %1021 = vmatprep.subr.bf16.mxu0 0
        %1022 = vmatpush1.bf16.msra.mxu0 0
        %1023 = vmatprep.subr.bf16.mxu0 0
        %1024 = vmatpush1.bf16.msra.mxu0 0
        %1025 = vmatprep.subr.bf16.mxu0 0
        %1026 = vmatpush1.bf16.msra.mxu0 0
        %1027 = vmatprep.subr.bf16.mxu0 0
        %1028 = vmatpush1.bf16.msra.mxu0 0
        %1029 = vmatprep.subr.bf16.mxu0 0
        %1030 = vmatpush1.bf16.msra.mxu0 %v1013
        %1031 = vmatprep.subr.bf16.mxu0 0
        %1032 = vmatpush2.bf16.msra.mxu0 0
        %1033 = vmatprep.subr.bf16.mxu0 0
        %1034 = vmatpush2.bf16.msra.mxu0 0
        %1035 = vmatprep.subr.bf16.mxu0 0
        %1036 = vmatpush2.bf16.msra.mxu0 0
        %1037 = vmatprep.subr.bf16.mxu0 0
        %1038 = vmatpush2.bf16.msra.mxu0 0
        %1039 = vmatprep.subr.bf16.mxu0 0
        %1040 = vmatpush2.bf16.msra.mxu0 0
        %1041 = vmatprep.subr.bf16.mxu0 0
        %1042 = vmatpush2.bf16.msra.mxu0 0
        %1043 = vmatprep.subr.bf16.mxu0 0
        %1044 = vmatpush2.bf16.msra.mxu0 0
        %1045 = vmatprep.subr.bf16.mxu0 0
        %1046 = vmatpush2.bf16.msra.mxu0 0
        %1047 = vmatprep.mubr.bf16.mxu0 0
        %1048 = vmatmul.mubr.bf16.gmra.mxu0 %v1010
        %v1049 = vpop.f32.mrf.mxu0
        %v1050 = vadd.f32 0.0, %v1049
        %v1051 = vpop.f32.mrf.mxu0
        %v1052 = vpop.f32.mrf.mxu0
        %v1053 = vpop.f32.mrf.mxu0
        %1054 = vdwg.mxu0
        %1056 = vrot.lane.b32.xlu0 %v830, 32
        %v1057 = vpop.permute.xlu0 %1056
        %1060 = vrot.lane.b32.xlu0 %v940, 64
        %v1061 = vpop.permute.xlu0 %1060
        %1064 = vrot.lane.b32.xlu0 %v1050, 96
        %v1065 = vpop.permute.xlu0 %1064
        %v1067 = vsel %vm614, %v717, %v1057
        %vm1068 = vcmask 523264
        %v1069 = vsel %vm1068, %v1067, %v1061
        %vm1070 = vcmask 785408
        %v1071 = vsel %vm1070, %v1069, %v1065
        %v1072 = vld [vmem:[#allocation4] sm:$0xf]
        %v1073 = vld [vmem:[#allocation4 + $0x4] sm:$0xf]
        %v1074 = vld [vmem:[#allocation4 + $0x8] sm:$0xf]
        %v1075 = vld [vmem:[#allocation4 + $0xc] sm:$0xf]
        %v1076 = vld [vmem:[#allocation4 + $0x10] sm:$0xf]
        %v1077 = vld [vmem:[#allocation4 + $0x14] sm:$0xf]
        %v1078 = vld [vmem:[#allocation4 + $0x18] sm:$0xf]
        %v1079 = vld [vmem:[#allocation4 + $0x1c] sm:$0xf]
        %v1080 = vld [vmem:[#allocation4 + $0x20] sm:$0xf]
        %v1081 = vld [vmem:[#allocation4 + $0x24] sm:$0xf]
        %v1082 = vld [vmem:[#allocation4 + $0x28] sm:$0xf]
        %v1083 = vld [vmem:[#allocation4 + $0x2c] sm:$0xf]
        %v1084 = vld [vmem:[#allocation4 + $0x30] sm:$0xf]
        %v1085 = vld [vmem:[#allocation4 + $0x34] sm:$0xf]
        %v1086 = vld [vmem:[#allocation4 + $0x38] sm:$0xf]
        %v1087 = vld [vmem:[#allocation4 + $0x3c] sm:$0xf]
        %v1088 = vpack.c.bf16 %v1071, %v1071
        %v1089 = vld [vmem:[%s5] sm:$0x1]
        %v1091 = vlaneseq
        %v1092 = vshrl.u32 %v1091, 7
        %v1093 = vsub.s32 0, %v1092
        %v1094 = vrot.slane %v1089, %v1093
        %v1112 = vunpack.c.l.b16 %v1072
        %v1113 = vunpack.c.l.b16 %v1073
        %v1114 = vunpack.c.l.b16 %v1074
        %v1115 = vunpack.c.l.b16 %v1075
        %v1116 = vunpack.c.l.b16 %v1076
        %v1117 = vunpack.c.l.b16 %v1077
        %v1118 = vunpack.c.l.b16 %v1078
        %v1119 = vunpack.c.l.b16 %v1079
        %v1120 = vunpack.c.l.b16 %v1080
        %v1121 = vunpack.c.l.b16 %v1081
        %v1122 = vunpack.c.l.b16 %v1082
        %v1123 = vunpack.c.l.b16 %v1083
        %v1124 = vunpack.c.l.b16 %v1084
        %v1125 = vunpack.c.l.b16 %v1085
        %v1126 = vunpack.c.l.b16 %v1086
        %v1127 = vunpack.c.l.b16 %v1087
        %v1128 = vpack.c.b16 %v1113, %v1112
        %v1129 = vpack.c.b16 %v1115, %v1114
        %v1130 = vpack.c.b16 %v1117, %v1116
        %v1131 = vpack.c.b16 %v1119, %v1118
        %v1132 = vpack.c.b16 %v1121, %v1120
        %v1133 = vpack.c.b16 %v1123, %v1122
        %v1134 = vpack.c.b16 %v1125, %v1124
        %v1135 = vpack.c.b16 %v1127, %v1126
        %1144 = vmatprep.subr.bf16.mxu0 0
        %1145 = vmatpush1.bf16.msra.mxu0 %v1135
        %1146 = vmatprep.subr.bf16.mxu0 0
        %1147 = vmatpush1.bf16.msra.mxu0 %v1134
        %1148 = vmatprep.subr.bf16.mxu0 0
        %1149 = vmatpush1.bf16.msra.mxu0 %v1133
        %1150 = vmatprep.subr.bf16.mxu0 0
        %1151 = vmatpush1.bf16.msra.mxu0 %v1132
        %1152 = vmatprep.subr.bf16.mxu0 0
        %1153 = vmatpush1.bf16.msra.mxu0 %v1131
        %1154 = vmatprep.subr.bf16.mxu0 0
        %1155 = vmatpush1.bf16.msra.mxu0 %v1130
        %1156 = vmatprep.subr.bf16.mxu0 0
        %1157 = vmatpush1.bf16.msra.mxu0 %v1129
        %1158 = vmatprep.subr.bf16.mxu0 0
        %1159 = vmatpush1.bf16.msra.mxu0 %v1128
        %1160 = vmatprep.subr.bf16.mxu0 0
        %1161 = vmatpush2.bf16.msra.mxu0 0
        %1162 = vmatprep.subr.bf16.mxu0 0
        %1163 = vmatpush2.bf16.msra.mxu0 0
        %1164 = vmatprep.subr.bf16.mxu0 0
        %1165 = vmatpush2.bf16.msra.mxu0 0
        %1166 = vmatprep.subr.bf16.mxu0 0
        %1167 = vmatpush2.bf16.msra.mxu0 0
        %1168 = vmatprep.subr.bf16.mxu0 0
        %1169 = vmatpush2.bf16.msra.mxu0 0
        %1170 = vmatprep.subr.bf16.mxu0 0
        %1171 = vmatpush2.bf16.msra.mxu0 0
        %1172 = vmatprep.subr.bf16.mxu0 0
        %1173 = vmatpush2.bf16.msra.mxu0 0
        %1174 = vmatprep.subr.bf16.mxu0 0
        %1175 = vmatpush2.bf16.msra.mxu0 0
        %1176 = vmatprep.mubr.bf16.mxu0 0
        %1177 = vmatmul.mubr.bf16.gmra.mxu0 %v1088
        %v1178 = vpop.f32.mrf.mxu0
        %v1179 = vadd.f32 %v1094, %v1178
        %v1180 = vpop.f32.mrf.mxu0
        %v1181 = vpop.f32.mrf.mxu0
        %v1182 = vpop.f32.mrf.mxu0
        %1183 = vdwg.mxu0
        %v1184 = vunpack.c.l.bf16 %v346
        %v1185 = vadd.f32 %v1179, %v1184
        %1186 = vadd.xlane.f32.xlu0 %v1185
        %v1187 = vpop.xlane.xlu0 %1186
        %v1188 = vrcp.pop 128.0
        %v1189 = vmul.f32 %v1187, %v1188
        %v1190 = vsub.f32 %v1185, %v1189
        %v1191 = vmul.f32 %v1190, %v1190
        %1192 = vadd.xlane.f32.xlu0 %v1191
        %v1193 = vpop.xlane.xlu0 %1192
        %v1194 = vmul.f32 %v1193, %v1188
        %v1195 = vadd.f32 %v1194, 1e-12
        %v1196 = vrsqrt.pop %v1195
        %v1197 = vmul.f32 %v1190, %v1196
        %v1198 = vld [vmem:[%s6] sm:$0x1]
        %v1200 = vlaneseq
        %v1201 = vshrl.u32 %v1200, 7
        %v1202 = vsub.s32 0, %v1201
        %v1203 = vrot.slane %v1198, %v1202
        %v1205 = vmul.f32 %v1197, %v1203
        %v1206 = vld [vmem:[%s7] sm:$0x1]
        %v1208 = vlaneseq
        %v1209 = vshrl.u32 %v1208, 7
        %v1210 = vsub.s32 0, %v1209
        %v1211 = vrot.slane %v1206, %v1210
        %v1213 = vadd.f32 %v1205, %v1211
        %v1214 = vpack.c.bf16 %v1213, %v1213
        %1215 = vst [vmem:[%s344] sm:$0xf] %v1214
        %p1216 = scmp.lt.s32.totalorder %s21, 1
        %s1217 = scalar_select %p1216, %s21, 1
        %s1218 = smul.addr %s1217, 4
        %s1219 = scalar_lea.vmem %s8, %s1218
        // Predicated region
        $region61: #{run.7} parent=51 // pred_check
          %p1220 = pneg %p217
        $region62: #{run.7} parent=51 // pred_check_branch
          %1222 = sbr.rel (%p1220) target = $region64
        $region63: #{run.7} parent=51 // pred_region
          _
        $region64: #{run.7} parent=51 // pred_fallthru
          _
      $region52: #{run.7} parent=5 // pred_fallthru
        _
      %p1223 = scmp.le.s32.totalorder 2, %s16
      // Predicated region
      $region65: #{run.7} parent=5 // pred_check
        %p1224 = pneg %p1223
      $region66: #{run.7} parent=5 // pred_check_branch
        %1226 = sbr.rel (%p1224) target = $region68
      $region67: #{run.7} parent=5 // pred_region
        %s1227 = ssub.s32 %s16, 2
        // Predicated region
        $region69: #{run.7} parent=67 // pred_check
          %p1228 = pneg %p223
        $region70: #{run.7} parent=67 // pred_check_branch
          %1230 = sbr.rel (%p1228) target = $region72
        $region71: #{run.7} parent=67 // pred_region
          %p1231 = scmp.lt.s32.totalorder %s22, 1
          %s1232 = scalar_select %p1231, %s22, 1
          %s1233 = smul.addr %s1232, 4
          %s1234 = scalar_lea.vmem %s8, %s1233
        $region72: #{run.7} parent=67 // pred_fallthru
          _
      $region68: #{run.7} parent=5 // pred_fallthru
        _
    $region6: #{run.7} parent=1 // loop_footer
      %s20 = sadd.s32 1, %s16
    $region7: #{run.7} parent=1 // loop_footer_branch
      %15 = sbr.rel target = $region3
    $region8: #{run.7} parent=1 // loop_exit
      _
    %1235 = vsyncpa [#allocation3], 1
    %s1236 = scalar_lea.sflag [#allocation3], 1
    %1237 = vsyncpa %s1236, 1
    %1238 = vsyncpa [#allocation5], 1

// kernel: run.8
$region0: #{run.8}
  #allocation0 [shape = 'u32[]', space=smem, size = 0x4, offset = 0x4, fixed_abs, tag = 'smem constant byte address 0x4 - core index']
  #allocation1 [shape = 'u32[144,128]{1,0:T(1,128)}', space=vmem, size = 0x12000, scoped, tag = 'internal scratch']
  %s0 = inlined_call_operand.vmem [shape: bf16[16,128], index: 0, kind: input, shape index: {}]
  %s1 = inlined_call_operand.vmem [shape: bf16[128,512], index: 1, kind: input, shape index: {}]
  %s2 = inlined_call_operand.vmem [shape: f32[1,512], index: 2, kind: input, shape index: {}]
  %s3 = inlined_call_operand.hbm [shape: bf16[512,128], index: 3, kind: input, shape index: {}]
  %s4 = inlined_call_operand.vmem [shape: f32[1,128], index: 4, kind: input, shape index: {}]
  %s5 = inlined_call_operand.vmem [shape: f32[1,128], index: 5, kind: input, shape index: {}]
  %s6 = inlined_call_operand.vmem [shape: f32[1,128], index: 6, kind: input, shape index: {}]
  %s7 = inlined_call_operand.vmem [shape: bf16[16,128], index: 7, kind: output, shape index: {}]
  %s8 = sld [smem:[#allocation0]]
  $region42: #{run.8} parent=0
    _
  %s10 = ssub.s32 1, %s8
  %s11 = scalar_select 0, %s10, %s8
  $region1: #{run.8} parent=0
    #allocation2 [shape = 'u8[131072]{0}', space=vmem, size = 0x20000, scoped, tag = 'input window, operand 3, single buffered']
    #allocation3 [shape = 's32[1]{0}', space=sflag, size = 0x4, scoped, tag = 'scoped memory for run.8']
    %12 = vsyncpa [#allocation3], 0
    // Predicated region
    $region2: #{run.8} parent=1 // pred_check
      _
    $region3: #{run.8} parent=1 // pred_check_branch
      %14 = sbr.rel (0) target = $region5
    $region4: #{run.8} parent=1 // pred_region
      _
    $region5: #{run.8} parent=1 // pred_fallthru
      _
    // Predicated region
    $region6: #{run.8} parent=1 // pred_check
      _
    $region7: #{run.8} parent=1 // pred_check_branch
      %16 = sbr.rel (0) target = $region9
    $region8: #{run.8} parent=1 // pred_region
      _
    $region9: #{run.8} parent=1 // pred_fallthru
      _
    // Predicated region
    $region10: #{run.8} parent=1 // pred_check
      _
    $region11: #{run.8} parent=1 // pred_check_branch
      %18 = sbr.rel (0) target = $region13
    $region12: #{run.8} parent=1 // pred_region
      _
    $region13: #{run.8} parent=1 // pred_fallthru
      _
    // Predicated region
    $region14: #{run.8} parent=1 // pred_check
      _
    $region15: #{run.8} parent=1 // pred_check_branch
      %20 = sbr.rel (0) target = $region17
    $region16: #{run.8} parent=1 // pred_region
      %s22 = ssub.s32 4096, 4096
      %23 = vsyncadd [#allocation3], %s22
      %s24 = sshll.u32 [#allocation2], 4
      %s25 = int_to_ptr.vmem [resolvable:$true] %s24
      %30 = dma.hbm_to_vmem [thread:$0]  %s3, 4096, %s25, [#allocation3], 64, 64, 4
    $region17: #{run.8} parent=1 // pred_fallthru
      _
    // Predicated region
    $region18: #{run.8} parent=1 // pred_check
      _
    $region19: #{run.8} parent=1 // pred_check_branch
      %32 = sbr.rel (0) target = $region21
    $region20: #{run.8} parent=1 // pred_region
      _
    $region21: #{run.8} parent=1 // pred_fallthru
      _
    // Predicated region
    $region22: #{run.8} parent=1 // pred_check
      _
    $region23: #{run.8} parent=1 // pred_check_branch
      %34 = sbr.rel (0) target = $region25
    $region24: #{run.8} parent=1 // pred_region
      _
    $region25: #{run.8} parent=1 // pred_fallthru
      _
    // Predicated region
    $region26: #{run.8} parent=1 // pred_check
      _
    $region27: #{run.8} parent=1 // pred_check_branch
      %36 = sbr.rel (0) target = $region29
    $region28: #{run.8} parent=1 // pred_region
      _
    $region29: #{run.8} parent=1 // pred_fallthru
      _
    // Predicated region
    $region30: #{run.8} parent=1 // pred_check
      _
    $region31: #{run.8} parent=1 // pred_check_branch
      %38 = sbr.rel (0) target = $region33
    $region32: #{run.8} parent=1 // pred_region
      %39 = dma.done [#allocation3], 4096
    $region33: #{run.8} parent=1 // pred_fallthru
      _
    %v41 = vld [vmem:[%s0] sm:$0xf]
    %v42 = vld [vmem:[%s0 + $0x4] sm:$0xf]
    %v43 = vld [vmem:[%s1] sm:$0xff]
    %v44 = vld [vmem:[%s1 + $0x8] sm:$0xff]
    %v45 = vld [vmem:[%s1 + $0x10] sm:$0xff]
    %v46 = vld [vmem:[%s1 + $0x18] sm:$0xff]
    %v47 = vld [vmem:[%s1 + $0x20] sm:$0xff]
    %v48 = vld [vmem:[%s1 + $0x28] sm:$0xff]
    %v49 = vld [vmem:[%s1 + $0x30] sm:$0xff]
    %v50 = vld [vmem:[%s1 + $0x38] sm:$0xff]
    %v51 = vld [vmem:[%s1 + $0x40] sm:$0xff]
    %v52 = vld [vmem:[%s1 + $0x48] sm:$0xff]
    %v53 = vld [vmem:[%s1 + $0x50] sm:$0xff]
    %v54 = vld [vmem:[%s1 + $0x58] sm:$0xff]
    %v55 = vld [vmem:[%s1 + $0x60] sm:$0xff]
    %v56 = vld [vmem:[%s1 + $0x68] sm:$0xff]
    %v57 = vld [vmem:[%s1 + $0x70] sm:$0xff]
    %v58 = vld [vmem:[%s1 + $0x78] sm:$0xff]
    %v59 = vld [vmem:[%s1 + $0x80] sm:$0xff]
    %v60 = vld [vmem:[%s1 + $0x88] sm:$0xff]
    %v61 = vld [vmem:[%s1 + $0x90] sm:$0xff]
    %v62 = vld [vmem:[%s1 + $0x98] sm:$0xff]
    %v63 = vld [vmem:[%s1 + $0xa0] sm:$0xff]
    %v64 = vld [vmem:[%s1 + $0xa8] sm:$0xff]
    %v65 = vld [vmem:[%s1 + $0xb0] sm:$0xff]
    %v66 = vld [vmem:[%s1 + $0xb8] sm:$0xff]
    %v67 = vld [vmem:[%s1 + $0xc0] sm:$0xff]
    %v68 = vld [vmem:[%s1 + $0xc8] sm:$0xff]
    %v69 = vld [vmem:[%s1 + $0xd0] sm:$0xff]
    %v70 = vld [vmem:[%s1 + $0xd8] sm:$0xff]
    %v71 = vld [vmem:[%s1 + $0xe0] sm:$0xff]
    %v72 = vld [vmem:[%s1 + $0xe8] sm:$0xff]
    %v73 = vld [vmem:[%s1 + $0xf0] sm:$0xff]
    %v74 = vld [vmem:[%s1 + $0xf8] sm:$0xff]
    %v75 = vld [vmem:[%s2] sm:$0xf]
    %v77 = vlaneseq
    %v78 = vshrl.u32 %v77, 7
    %v79 = vsub.s32 0, %v78
    %v80 = vrot.slane %v75, %v79
    %v81 = vlaneseq
    %v82 = vshrl.u32 %v81, 7
    %v83 = vsub.s32 1, %v82
    %v84 = vrot.slane %v75, %v83
    %v85 = vlaneseq
    %v86 = vshrl.u32 %v85, 7
    %v87 = vsub.s32 2, %v86
    %v88 = vrot.slane %v75, %v87
    %v89 = vlaneseq
    %v90 = vshrl.u32 %v89, 7
    %v91 = vsub.s32 3, %v90
    %v92 = vrot.slane %v75, %v91
    %v99 = vunpack.c.l.b16 %v41
    %v100 = vunpack.c.l.b16 %v42
    %v101 = vpack.c.b16 %v100, %v99
    %v135 = vunpack.c.l.b16 %v43
    %v136 = vunpack.c.h.b16 %v43
    %v137 = vunpack.c.l.b16 %v44
    %v138 = vunpack.c.h.b16 %v44
    %v139 = vunpack.c.l.b16 %v45
    %v140 = vunpack.c.h.b16 %v45
    %v141 = vunpack.c.l.b16 %v46
    %v142 = vunpack.c.h.b16 %v46
    %v143 = vunpack.c.l.b16 %v47
    %v144 = vunpack.c.h.b16 %v47
    %v145 = vunpack.c.l.b16 %v48
    %v146 = vunpack.c.h.b16 %v48
    %v147 = vunpack.c.l.b16 %v49
    %v148 = vunpack.c.h.b16 %v49
    %v149 = vunpack.c.l.b16 %v50
    %v150 = vunpack.c.h.b16 %v50
    %v151 = vunpack.c.l.b16 %v51
    %v152 = vunpack.c.h.b16 %v51
    %v153 = vunpack.c.l.b16 %v52
    %v154 = vunpack.c.h.b16 %v52
    %v155 = vunpack.c.l.b16 %v53
    %v156 = vunpack.c.h.b16 %v53
    %v157 = vunpack.c.l.b16 %v54
    %v158 = vunpack.c.h.b16 %v54
    %v159 = vunpack.c.l.b16 %v55
    %v160 = vunpack.c.h.b16 %v55
    %v161 = vunpack.c.l.b16 %v56
    %v162 = vunpack.c.h.b16 %v56
    %v163 = vunpack.c.l.b16 %v57
    %v164 = vunpack.c.h.b16 %v57
    %v165 = vunpack.c.l.b16 %v58
    %v166 = vunpack.c.h.b16 %v58
    %v167 = vunpack.c.l.b16 %v59
    %v168 = vunpack.c.h.b16 %v59
    %v169 = vunpack.c.l.b16 %v60
    %v170 = vunpack.c.h.b16 %v60
    %v171 = vunpack.c.l.b16 %v61
    %v172 = vunpack.c.h.b16 %v61
    %v173 = vunpack.c.l.b16 %v62
    %v174 = vunpack.c.h.b16 %v62
    %v175 = vunpack.c.l.b16 %v63
    %v176 = vunpack.c.h.b16 %v63
    %v177 = vunpack.c.l.b16 %v64
    %v178 = vunpack.c.h.b16 %v64
    %v179 = vunpack.c.l.b16 %v65
    %v180 = vunpack.c.h.b16 %v65
    %v181 = vunpack.c.l.b16 %v66
    %v182 = vunpack.c.h.b16 %v66
    %v183 = vunpack.c.l.b16 %v67
    %v184 = vunpack.c.h.b16 %v67
    %v185 = vunpack.c.l.b16 %v68
    %v186 = vunpack.c.h.b16 %v68
    %v187 = vunpack.c.l.b16 %v69
    %v188 = vunpack.c.h.b16 %v69
    %v189 = vunpack.c.l.b16 %v70
    %v190 = vunpack.c.h.b16 %v70
    %v191 = vunpack.c.l.b16 %v71
    %v192 = vunpack.c.h.b16 %v71
    %v193 = vunpack.c.l.b16 %v72
    %v194 = vunpack.c.h.b16 %v72
    %v195 = vunpack.c.l.b16 %v73
    %v196 = vunpack.c.h.b16 %v73
    %v197 = vunpack.c.l.b16 %v74
    %v198 = vunpack.c.h.b16 %v74
    %v199 = vpack.c.b16 %v139, %v135
    %v200 = vpack.c.b16 %v140, %v136
    %v201 = vpack.c.b16 %v141, %v137
    %v202 = vpack.c.b16 %v142, %v138
    %v203 = vpack.c.b16 %v147, %v143
    %v204 = vpack.c.b16 %v148, %v144
    %v205 = vpack.c.b16 %v149, %v145
    %v206 = vpack.c.b16 %v150, %v146
    %v207 = vpack.c.b16 %v155, %v151
    %v208 = vpack.c.b16 %v156, %v152
    %v209 = vpack.c.b16 %v157, %v153
    %v210 = vpack.c.b16 %v158, %v154
    %v211 = vpack.c.b16 %v163, %v159
    %v212 = vpack.c.b16 %v164, %v160
    %v213 = vpack.c.b16 %v165, %v161
    %v214 = vpack.c.b16 %v166, %v162
    %v215 = vpack.c.b16 %v171, %v167
    %v216 = vpack.c.b16 %v172, %v168
    %v217 = vpack.c.b16 %v173, %v169
    %v218 = vpack.c.b16 %v174, %v170
    %v219 = vpack.c.b16 %v179, %v175
    %v220 = vpack.c.b16 %v180, %v176
    %v221 = vpack.c.b16 %v181, %v177
    %v222 = vpack.c.b16 %v182, %v178
    %v223 = vpack.c.b16 %v187, %v183
    %v224 = vpack.c.b16 %v188, %v184
    %v225 = vpack.c.b16 %v189, %v185
    %v226 = vpack.c.b16 %v190, %v186
    %v227 = vpack.c.b16 %v195, %v191
    %v228 = vpack.c.b16 %v196, %v192
    %v229 = vpack.c.b16 %v197, %v193
    %v230 = vpack.c.b16 %v198, %v194
    %263 = vmatprep.subr.bf16.mxu0 %v228
    %264 = vmatpush1.bf16.msra.mxu0 %v227
    %265 = vmatprep.subr.bf16.mxu0 %v224
    %266 = vmatpush1.bf16.msra.mxu0 %v223
    %267 = vmatprep.subr.bf16.mxu0 %v220
    %268 = vmatpush1.bf16.msra.mxu0 %v219
    %269 = vmatprep.subr.bf16.mxu0 %v216
    %270 = vmatpush1.bf16.msra.mxu0 %v215
    %271 = vmatprep.subr.bf16.mxu0 %v212
    %272 = vmatpush1.bf16.msra.mxu0 %v211
    %273 = vmatprep.subr.bf16.mxu0 %v208
    %274 = vmatpush1.bf16.msra.mxu0 %v207
    %275 = vmatprep.subr.bf16.mxu0 %v204
    %276 = vmatpush1.bf16.msra.mxu0 %v203
    %277 = vmatprep.subr.bf16.mxu0 %v200
    %278 = vmatpush1.bf16.msra.mxu0 %v199
    %279 = vmatprep.subr.bf16.mxu0 0
    %280 = vmatpush2.bf16.msra.mxu0 0
    %281 = vmatprep.subr.bf16.mxu0 0
    %282 = vmatpush2.bf16.msra.mxu0 0
    %283 = vmatprep.subr.bf16.mxu0 0
    %284 = vmatpush2.bf16.msra.mxu0 0
    %285 = vmatprep.subr.bf16.mxu0 0
    %286 = vmatpush2.bf16.msra.mxu0 0
    %287 = vmatprep.subr.bf16.mxu0 0
    %288 = vmatpush2.bf16.msra.mxu0 0
    %289 = vmatprep.subr.bf16.mxu0 0
    %290 = vmatpush2.bf16.msra.mxu0 0
    %291 = vmatprep.subr.bf16.mxu0 0
    %292 = vmatpush2.bf16.msra.mxu0 0
    %293 = vmatprep.subr.bf16.mxu0 0
    %294 = vmatpush2.bf16.msra.mxu0 0
    %295 = vmatprep.mubr.bf16.mxu0 0
    %296 = vmatmul.mubr.bf16.gmra.mxu0 %v101
    %v297 = vpop.f32.mrf.mxu0
    %v298 = vadd.f32 %v80, %v297
    %v299 = vpop.f32.mrf.mxu0
    %v300 = vadd.f32 %v84, %v299
    %v301 = vpop.f32.mrf.mxu0
    %v302 = vadd.f32 %v80, %v301
    %v303 = vpop.f32.mrf.mxu0
    %v304 = vadd.f32 %v84, %v303
    %305 = vdwg.mxu0
    %306 = vmatprep.subr.bf16.mxu0 %v230
    %307 = vmatpush1.bf16.msra.mxu0 %v229
    %308 = vmatprep.subr.bf16.mxu0 %v226
    %309 = vmatpush1.bf16.msra.mxu0 %v225
    %310 = vmatprep.subr.bf16.mxu0 %v222
    %311 = vmatpush1.bf16.msra.mxu0 %v221
    %312 = vmatprep.subr.bf16.mxu0 %v218
    %313 = vmatpush1.bf16.msra.mxu0 %v217
    %314 = vmatprep.subr.bf16.mxu0 %v214
    %315 = vmatpush1.bf16.msra.mxu0 %v213
    %316 = vmatprep.subr.bf16.mxu0 %v210
    %317 = vmatpush1.bf16.msra.mxu0 %v209
    %318 = vmatprep.subr.bf16.mxu0 %v206
    %319 = vmatpush1.bf16.msra.mxu0 %v205
    %320 = vmatprep.subr.bf16.mxu0 %v202
    %321 = vmatpush1.bf16.msra.mxu0 %v201
    %322 = vmatprep.subr.bf16.mxu0 0
    %323 = vmatpush2.bf16.msra.mxu0 0
    %324 = vmatprep.subr.bf16.mxu0 0
    %325 = vmatpush2.bf16.msra.mxu0 0
    %326 = vmatprep.subr.bf16.mxu0 0
    %327 = vmatpush2.bf16.msra.mxu0 0
    %328 = vmatprep.subr.bf16.mxu0 0
    %329 = vmatpush2.bf16.msra.mxu0 0
    %330 = vmatprep.subr.bf16.mxu0 0
    %331 = vmatpush2.bf16.msra.mxu0 0
    %332 = vmatprep.subr.bf16.mxu0 0
    %333 = vmatpush2.bf16.msra.mxu0 0
    %334 = vmatprep.subr.bf16.mxu0 0
    %335 = vmatpush2.bf16.msra.mxu0 0
    %336 = vmatprep.subr.bf16.mxu0 0
    %337 = vmatpush2.bf16.msra.mxu0 0
    %338 = vmatprep.mubr.bf16.mxu0 0
    %339 = vmatmul.mubr.bf16.gmra.mxu0 %v101
    %v340 = vpop.f32.mrf.mxu0
    %v341 = vadd.f32 %v88, %v340
    %v342 = vpop.f32.mrf.mxu0
    %v343 = vadd.f32 %v92, %v342
    %v344 = vpop.f32.mrf.mxu0
    %v345 = vadd.f32 %v88, %v344
    %v346 = vpop.f32.mrf.mxu0
    %v347 = vadd.f32 %v92, %v346
    %348 = vdwg.mxu0
    %v349 = vmul.f32 %v298, %v298
    %v350 = vmul.f32 %v300, %v300
    %v351 = vmul.f32 %v341, %v341
    %v352 = vmul.f32 %v343, %v343
    %v353 = vmul.f32 %v302, %v302
    %v354 = vmul.f32 %v304, %v304
    %v355 = vmul.f32 %v345, %v345
    %v356 = vmul.f32 %v347, %v347
    %v357 = vmul.f32 %v298, %v349
    %v358 = vmul.f32 %v300, %v350
    %v359 = vmul.f32 %v341, %v351
    %v360 = vmul.f32 %v343, %v352
    %v361 = vmul.f32 %v302, %v353
    %v362 = vmul.f32 %v304, %v354
    %v363 = vmul.f32 %v345, %v355
    %v364 = vmul.f32 %v347, %v356
    %v365 = vmul.f32 %v357, 0.044715
    %v366 = vmul.f32 %v358, 0.044715
    %v367 = vmul.f32 %v359, 0.044715
    %v368 = vmul.f32 %v360, 0.044715
    %v369 = vmul.f32 %v361, 0.044715
    %v370 = vmul.f32 %v362, 0.044715
    %v371 = vmul.f32 %v363, 0.044715
    %v372 = vmul.f32 %v364, 0.044715
    %v373 = vadd.f32 %v298, %v365
    %v374 = vadd.f32 %v300, %v366
    %v375 = vadd.f32 %v341, %v367
    %v376 = vadd.f32 %v343, %v368
    %v377 = vadd.f32 %v302, %v369
    %v378 = vadd.f32 %v304, %v370
    %v379 = vadd.f32 %v345, %v371
    %v380 = vadd.f32 %v347, %v372
    %v381 = vmul.f32 %v373, 0.7978846
    %v382 = vmul.f32 %v374, 0.7978846
    %v383 = vmul.f32 %v375, 0.7978846
    %v384 = vmul.f32 %v376, 0.7978846
    %v385 = vmul.f32 %v377, 0.7978846
    %v386 = vmul.f32 %v378, 0.7978846
    %v387 = vmul.f32 %v379, 0.7978846
    %v388 = vmul.f32 %v380, 0.7978846
    %v389 = vtanh.pop %v381
    %v390 = vtanh.pop %v382
    %v391 = vtanh.pop %v383
    %v392 = vtanh.pop %v384
    %v393 = vtanh.pop %v385
    %v394 = vtanh.pop %v386
    %v395 = vtanh.pop %v387
    %v396 = vtanh.pop %v388
    %v397 = vadd.f32 %v389, 1.0
    %v398 = vadd.f32 %v390, 1.0
    %v399 = vadd.f32 %v391, 1.0
    %v400 = vadd.f32 %v392, 1.0
    %v401 = vadd.f32 %v393, 1.0
    %v402 = vadd.f32 %v394, 1.0
    %v403 = vadd.f32 %v395, 1.0
    %v404 = vadd.f32 %v396, 1.0
    %v405 = vmul.f32 %v397, 0.5
    %v406 = vmul.f32 %v398, 0.5
    %v407 = vmul.f32 %v399, 0.5
    %v408 = vmul.f32 %v400, 0.5
    %v409 = vmul.f32 %v401, 0.5
    %v410 = vmul.f32 %v402, 0.5
    %v411 = vmul.f32 %v403, 0.5
    %v412 = vmul.f32 %v404, 0.5
    %v413 = vmul.f32 %v298, %v405
    %v414 = vmul.f32 %v300, %v406
    %v415 = vmul.f32 %v341, %v407
    %v416 = vmul.f32 %v343, %v408
    %v417 = vmul.f32 %v302, %v409
    %v418 = vmul.f32 %v304, %v410
    %v419 = vmul.f32 %v345, %v411
    %v420 = vmul.f32 %v347, %v412
    %v421 = vld [vmem:[#allocation2] sm:$0xf]
    %v422 = vld [vmem:[#allocation2 + $0x4] sm:$0xf]
    %v423 = vld [vmem:[#allocation2 + $0x8] sm:$0xf]
    %v424 = vld [vmem:[#allocation2 + $0xc] sm:$0xf]
    %v425 = vld [vmem:[#allocation2 + $0x10] sm:$0xf]
    %v426 = vld [vmem:[#allocation2 + $0x14] sm:$0xf]
    %v427 = vld [vmem:[#allocation2 + $0x18] sm:$0xf]
    %v428 = vld [vmem:[#allocation2 + $0x1c] sm:$0xf]
    %v429 = vld [vmem:[#allocation2 + $0x20] sm:$0xf]
    %v430 = vld [vmem:[#allocation2 + $0x24] sm:$0xf]
    %v431 = vld [vmem:[#allocation2 + $0x28] sm:$0xf]
    %v432 = vld [vmem:[#allocation2 + $0x2c] sm:$0xf]
    %v433 = vld [vmem:[#allocation2 + $0x30] sm:$0xf]
    %v434 = vld [vmem:[#allocation2 + $0x34] sm:$0xf]
    %v435 = vld [vmem:[#allocation2 + $0x38] sm:$0xf]
    %v436 = vld [vmem:[#allocation2 + $0x3c] sm:$0xf]
    %v437 = vld [vmem:[#allocation2 + $0x40] sm:$0xf]
    %v438 = vld [vmem:[#allocation2 + $0x44] sm:$0xf]
    %v439 = vld [vmem:[#allocation2 + $0x48] sm:$0xf]
    %v440 = vld [vmem:[#allocation2 + $0x4c] sm:$0xf]
    %v441 = vld [vmem:[#allocation2 + $0x50] sm:$0xf]
    %v442 = vld [vmem:[#allocation2 + $0x54] sm:$0xf]
    %v443 = vld [vmem:[#allocation2 + $0x58] sm:$0xf]
    %v444 = vld [vmem:[#allocation2 + $0x5c] sm:$0xf]
    %v445 = vld [vmem:[#allocation2 + $0x60] sm:$0xf]
    %v446 = vld [vmem:[#allocation2 + $0x64] sm:$0xf]
    %v447 = vld [vmem:[#allocation2 + $0x68] sm:$0xf]
    %v448 = vld [vmem:[#allocation2 + $0x6c] sm:$0xf]
    %v449 = vld [vmem:[#allocation2 + $0x70] sm:$0xf]
    %v450 = vld [vmem:[#allocation2 + $0x74] sm:$0xf]
    %v451 = vld [vmem:[#allocation2 + $0x78] sm:$0xf]
    %v452 = vld [vmem:[#allocation2 + $0x7c] sm:$0xf]
    %v453 = vld [vmem:[#allocation2 + $0x80] sm:$0xf]
    %v454 = vld [vmem:[#allocation2 + $0x84] sm:$0xf]
    %v455 = vld [vmem:[#allocation2 + $0x88] sm:$0xf]
    %v456 = vld [vmem:[#allocation2 + $0x8c] sm:$0xf]
    %v457 = vld [vmem:[#allocation2 + $0x90] sm:$0xf]
    %v458 = vld [vmem:[#allocation2 + $0x94] sm:$0xf]
    %v459 = vld [vmem:[#allocation2 + $0x98] sm:$0xf]
    %v460 = vld [vmem:[#allocation2 + $0x9c] sm:$0xf]
    %v461 = vld [vmem:[#allocation2 + $0xa0] sm:$0xf]
    %v462 = vld [vmem:[#allocation2 + $0xa4] sm:$0xf]
    %v463 = vld [vmem:[#allocation2 + $0xa8] sm:$0xf]
    %v464 = vld [vmem:[#allocation2 + $0xac] sm:$0xf]
    %v465 = vld [vmem:[#allocation2 + $0xb0] sm:$0xf]
    %v466 = vld [vmem:[#allocation2 + $0xb4] sm:$0xf]
    %v467 = vld [vmem:[#allocation2 + $0xb8] sm:$0xf]
    %v468 = vld [vmem:[#allocation2 + $0xbc] sm:$0xf]
    %v469 = vld [vmem:[#allocation2 + $0xc0] sm:$0xf]
    %v470 = vld [vmem:[#allocation2 + $0xc4] sm:$0xf]
    %v471 = vld [vmem:[#allocation2 + $0xc8] sm:$0xf]
    %v472 = vld [vmem:[#allocation2 + $0xcc] sm:$0xf]
    %v473 = vld [vmem:[#allocation2 + $0xd0] sm:$0xf]
    %v474 = vld [vmem:[#allocation2 + $0xd4] sm:$0xf]
    %v475 = vld [vmem:[#allocation2 + $0xd8] sm:$0xf]
    %v476 = vld [vmem:[#allocation2 + $0xdc] sm:$0xf]
    %v477 = vld [vmem:[#allocation2 + $0xe0] sm:$0xf]
    %v478 = vld [vmem:[#allocation2 + $0xe4] sm:$0xf]
    %v479 = vld [vmem:[#allocation2 + $0xe8] sm:$0xf]
    %v480 = vld [vmem:[#allocation2 + $0xec] sm:$0xf]
    %v481 = vld [vmem:[#allocation2 + $0xf0] sm:$0xf]
    %v482 = vld [vmem:[#allocation2 + $0xf4] sm:$0xf]
    %v483 = vld [vmem:[#allocation2 + $0xf8] sm:$0xf]
    %v484 = vld [vmem:[#allocation2 + $0xfc] sm:$0xf]
    %v485 = vpack.c.bf16 %v417, %v413
    %v486 = vpack.c.bf16 %v418, %v414
    %v487 = vpack.c.bf16 %v419, %v415
    %v488 = vpack.c.bf16 %v420, %v416
    %v489 = vld [vmem:[%s4] sm:$0x1]
    %v491 = vlaneseq
    %v492 = vshrl.u32 %v491, 7
    %v493 = vsub.s32 0, %v492
    %v494 = vrot.slane %v489, %v493
    %v560 = vunpack.c.l.b16 %v421
    %v561 = vunpack.c.l.b16 %v422
    %v562 = vunpack.c.l.b16 %v423
    %v563 = vunpack.c.l.b16 %v424
    %v564 = vunpack.c.l.b16 %v425
    %v565 = vunpack.c.l.b16 %v426
    %v566 = vunpack.c.l.b16 %v427
    %v567 = vunpack.c.l.b16 %v428
    %v568 = vunpack.c.l.b16 %v429
    %v569 = vunpack.c.l.b16 %v430
    %v570 = vunpack.c.l.b16 %v431
    %v571 = vunpack.c.l.b16 %v432
    %v572 = vunpack.c.l.b16 %v433
    %v573 = vunpack.c.l.b16 %v434
    %v574 = vunpack.c.l.b16 %v435
    %v575 = vunpack.c.l.b16 %v436
    %v576 = vunpack.c.l.b16 %v437
    %v577 = vunpack.c.l.b16 %v438
    %v578 = vunpack.c.l.b16 %v439
    %v579 = vunpack.c.l.b16 %v440
    %v580 = vunpack.c.l.b16 %v441
    %v581 = vunpack.c.l.b16 %v442
    %v582 = vunpack.c.l.b16 %v443
    %v583 = vunpack.c.l.b16 %v444
    %v584 = vunpack.c.l.b16 %v445
    %v585 = vunpack.c.l.b16 %v446
    %v586 = vunpack.c.l.b16 %v447
    %v587 = vunpack.c.l.b16 %v448
    %v588 = vunpack.c.l.b16 %v449
    %v589 = vunpack.c.l.b16 %v450
    %v590 = vunpack.c.l.b16 %v451
    %v591 = vunpack.c.l.b16 %v452
    %v592 = vunpack.c.l.b16 %v453
    %v593 = vunpack.c.l.b16 %v454
    %v594 = vunpack.c.l.b16 %v455
    %v595 = vunpack.c.l.b16 %v456
    %v596 = vunpack.c.l.b16 %v457
    %v597 = vunpack.c.l.b16 %v458
    %v598 = vunpack.c.l.b16 %v459
    %v599 = vunpack.c.l.b16 %v460
    %v600 = vunpack.c.l.b16 %v461
    %v601 = vunpack.c.l.b16 %v462
    %v602 = vunpack.c.l.b16 %v463
    %v603 = vunpack.c.l.b16 %v464
    %v604 = vunpack.c.l.b16 %v465
    %v605 = vunpack.c.l.b16 %v466
    %v606 = vunpack.c.l.b16 %v467
    %v607 = vunpack.c.l.b16 %v468
    %v608 = vunpack.c.l.b16 %v469
    %v609 = vunpack.c.l.b16 %v470
    %v610 = vunpack.c.l.b16 %v471
    %v611 = vunpack.c.l.b16 %v472
    %v612 = vunpack.c.l.b16 %v473
    %v613 = vunpack.c.l.b16 %v474
    %v614 = vunpack.c.l.b16 %v475
    %v615 = vunpack.c.l.b16 %v476
    %v616 = vunpack.c.l.b16 %v477
    %v617 = vunpack.c.l.b16 %v478
    %v618 = vunpack.c.l.b16 %v479
    %v619 = vunpack.c.l.b16 %v480
    %v620 = vunpack.c.l.b16 %v481
    %v621 = vunpack.c.l.b16 %v482
    %v622 = vunpack.c.l.b16 %v483
    %v623 = vunpack.c.l.b16 %v484
    %v624 = vpack.c.b16 %v561, %v560
    %v625 = vpack.c.b16 %v563, %v562
    %v626 = vpack.c.b16 %v565, %v564
    %v627 = vpack.c.b16 %v567, %v566
    %v628 = vpack.c.b16 %v569, %v568
    %v629 = vpack.c.b16 %v571, %v570
    %v630 = vpack.c.b16 %v573, %v572
    %v631 = vpack.c.b16 %v575, %v574
    %v632 = vpack.c.b16 %v577, %v576
    %v633 = vpack.c.b16 %v579, %v578
    %v634 = vpack.c.b16 %v581, %v580
    %v635 = vpack.c.b16 %v583, %v582
    %v636 = vpack.c.b16 %v585, %v584
    %v637 = vpack.c.b16 %v587, %v586
    %v638 = vpack.c.b16 %v589, %v588
    %v639 = vpack.c.b16 %v591, %v590
    %v640 = vpack.c.b16 %v593, %v592
    %v641 = vpack.c.b16 %v595, %v594
    %v642 = vpack.c.b16 %v597, %v596
    %v643 = vpack.c.b16 %v599, %v598
    %v644 = vpack.c.b16 %v601, %v600
    %v645 = vpack.c.b16 %v603, %v602
    %v646 = vpack.c.b16 %v605, %v604
    %v647 = vpack.c.b16 %v607, %v606
    %v648 = vpack.c.b16 %v609, %v608
    %v649 = vpack.c.b16 %v611, %v610
    %v650 = vpack.c.b16 %v613, %v612
    %v651 = vpack.c.b16 %v615, %v614
    %v652 = vpack.c.b16 %v617, %v616
    %v653 = vpack.c.b16 %v619, %v618
    %v654 = vpack.c.b16 %v621, %v620
    %v655 = vpack.c.b16 %v623, %v622
    %688 = vmatprep.subr.bf16.mxu0 0
    %689 = vmatpush1.bf16.msra.mxu0 %v631
    %690 = vmatprep.subr.bf16.mxu0 0
    %691 = vmatpush1.bf16.msra.mxu0 %v630
    %692 = vmatprep.subr.bf16.mxu0 0
    %693 = vmatpush1.bf16.msra.mxu0 %v629
    %694 = vmatprep.subr.bf16.mxu0 0
    %695 = vmatpush1.bf16.msra.mxu0 %v628
    %696 = vmatprep.subr.bf16.mxu0 0
    %697 = vmatpush1.bf16.msra.mxu0 %v627
    %698 = vmatprep.subr.bf16.mxu0 0
    %699 = vmatpush1.bf16.msra.mxu0 %v626
    %700 = vmatprep.subr.bf16.mxu0 0
    %701 = vmatpush1.bf16.msra.mxu0 %v625
    %702 = vmatprep.subr.bf16.mxu0 0
    %703 = vmatpush1.bf16.msra.mxu0 %v624
    %704 = vmatprep.subr.bf16.mxu0 0
    %705 = vmatpush2.bf16.msra.mxu0 %v639
    %706 = vmatprep.subr.bf16.mxu0 0
    %707 = vmatpush2.bf16.msra.mxu0 %v638
    %708 = vmatprep.subr.bf16.mxu0 0
    %709 = vmatpush2.bf16.msra.mxu0 %v637
    %710 = vmatprep.subr.bf16.mxu0 0
    %711 = vmatpush2.bf16.msra.mxu0 %v636
    %712 = vmatprep.subr.bf16.mxu0 0
    %713 = vmatpush2.bf16.msra.mxu0 %v635
    %714 = vmatprep.subr.bf16.mxu0 0
    %715 = vmatpush2.bf16.msra.mxu0 %v634
    %716 = vmatprep.subr.bf16.mxu0 0
    %717 = vmatpush2.bf16.msra.mxu0 %v633
    %718 = vmatprep.subr.bf16.mxu0 0
    %719 = vmatpush2.bf16.msra.mxu0 %v632
    %720 = vmatprep.mubr.bf16.mxu0 %v486
    %721 = vmatmul.mubr.bf16.gmra.mxu0 %v485
    %v722 = vpop.f32.mrf.mxu0
    %v723 = vadd.f32 %v494, %v722
    %v724 = vpop.f32.mrf.mxu0
    %v725 = vpop.f32.mrf.mxu0
    %v726 = vadd.f32 %v494, %v725
    %v727 = vpop.f32.mrf.mxu0
    %728 = vdwg.mxu0
    %729 = vmatprep.subr.bf16.mxu0 0
    %730 = vmatpush1.bf16.msra.mxu0 %v647
    %731 = vmatprep.subr.bf16.mxu0 0
    %732 = vmatpush1.bf16.msra.mxu0 %v646
    %733 = vmatprep.subr.bf16.mxu0 0
    %734 = vmatpush1.bf16.msra.mxu0 %v645
    %735 = vmatprep.subr.bf16.mxu0 0
    %736 = vmatpush1.bf16.msra.mxu0 %v644
    %737 = vmatprep.subr.bf16.mxu0 0
    %738 = vmatpush1.bf16.msra.mxu0 %v643
    %739 = vmatprep.subr.bf16.mxu0 0
    %740 = vmatpush1.bf16.msra.mxu0 %v642
    %741 = vmatprep.subr.bf16.mxu0 0
    %742 = vmatpush1.bf16.msra.mxu0 %v641
    %743 = vmatprep.subr.bf16.mxu0 0
    %744 = vmatpush1.bf16.msra.mxu0 %v640
    %745 = vmatprep.subr.bf16.mxu0 0
    %746 = vmatpush2.bf16.msra.mxu0 %v655
    %747 = vmatprep.subr.bf16.mxu0 0
    %748 = vmatpush2.bf16.msra.mxu0 %v654
    %749 = vmatprep.subr.bf16.mxu0 0
    %750 = vmatpush2.bf16.msra.mxu0 %v653
    %751 = vmatprep.subr.bf16.mxu0 0
    %752 = vmatpush2.bf16.msra.mxu0 %v652
    %753 = vmatprep.subr.bf16.mxu0 0
    %754 = vmatpush2.bf16.msra.mxu0 %v651
    %755 = vmatprep.subr.bf16.mxu0 0
    %756 = vmatpush2.bf16.msra.mxu0 %v650
    %757 = vmatprep.subr.bf16.mxu0 0
    %758 = vmatpush2.bf16.msra.mxu0 %v649
    %759 = vmatprep.subr.bf16.mxu0 0
    %760 = vmatpush2.bf16.msra.mxu0 %v648
    %761 = vmatprep.mubr.bf16.mxu0 %v488
    %762 = vmatmul.mubr.bf16.gmra.mxu0 %v487
    %v763 = vpop.f32.mrf.mxu0
    %v764 = vadd.f32 %v723, %v763
    %v765 = vpop.f32.mrf.mxu0
    %v766 = vpop.f32.mrf.mxu0
    %v767 = vadd.f32 %v726, %v766
    %v768 = vpop.f32.mrf.mxu0
    %769 = vdwg.mxu0
    %v770 = vunpack.c.l.bf16 %v41
    %v771 = vunpack.c.l.bf16 %v42
    %v772 = vadd.f32 %v764, %v770
    %v773 = vadd.f32 %v767, %v771
    %774 = vadd.xlane.f32.xlu0 %v772
    %v775 = vpop.xlane.xlu0 %774
    %776 = vadd.xlane.f32.xlu0 %v773
    %v777 = vpop.xlane.xlu0 %776
    %v778 = vrcp.pop 128.0
    %v779 = vmul.f32 %v775, %v778
    %v780 = vmul.f32 %v777, %v778
    %v781 = vsub.f32 %v772, %v779
    %v782 = vsub.f32 %v773, %v780
    %v783 = vmul.f32 %v781, %v781
    %v784 = vmul.f32 %v782, %v782
    %785 = vadd.xlane.f32.xlu0 %v783
    %v786 = vpop.xlane.xlu0 %785
    %787 = vadd.xlane.f32.xlu0 %v784
    %v788 = vpop.xlane.xlu0 %787
    %v789 = vmul.f32 %v786, %v778
    %v790 = vmul.f32 %v788, %v778
    %v791 = vadd.f32 %v789, 1e-12
    %v792 = vadd.f32 %v790, 1e-12
    %v793 = vrsqrt.pop %v791
    %v794 = vrsqrt.pop %v792
    %v795 = vmul.f32 %v781, %v793
    %v796 = vmul.f32 %v782, %v794
    %v797 = vld [vmem:[%s5] sm:$0x1]
    %v799 = vlaneseq
    %v800 = vshrl.u32 %v799, 7
    %v801 = vsub.s32 0, %v800
    %v802 = vrot.slane %v797, %v801
    %v804 = vmul.f32 %v795, %v802
    %v805 = vmul.f32 %v796, %v802
    %v806 = vld [vmem:[%s6] sm:$0x1]
    %v808 = vlaneseq
    %v809 = vshrl.u32 %v808, 7
    %v810 = vsub.s32 0, %v809
    %v811 = vrot.slane %v806, %v810
    %v813 = vadd.f32 %v804, %v811
    %v814 = vadd.f32 %v805, %v811
    %v815 = vpack.c.bf16 %v814, %v813
    %v817 = vunpack.c.l.b16 %v815
    %v818 = vunpack.c.h.b16 %v815
    %v819 = vpack.c.b16 %v817, %v817
    %v820 = vpack.c.b16 %v818, %v818
    %823 = vst [vmem:[%s7] sm:$0xf] %v819
    %824 = vst [vmem:[%s7 + $0x4] sm:$0xf] %v820
    // Predicated region
    $region34: #{run.8} parent=1 // pred_check
      _
    $region35: #{run.8} parent=1 // pred_check_branch
      %826 = sbr.rel (0) target = $region37
    $region36: #{run.8} parent=1 // pred_region
      _
    $region37: #{run.8} parent=1 // pred_fallthru
      _
    // Predicated region
    $region38: #{run.8} parent=1 // pred_check
      _
    $region39: #{run.8} parent=1 // pred_check_branch
      %828 = sbr.rel (0) target = $region41
    $region40: #{run.8} parent=1 // pred_region
      _
    $region41: #{run.8} parent=1 // pred_fallthru
      _
    %829 = vsyncpa [#allocation3], 1

// kernel: run.11
$region0: #{run.11}
  #allocation0 [shape = 'u32[]', space=smem, size = 0x4, offset = 0x4, fixed_abs, tag = 'smem constant byte address 0x4 - core index']
  #allocation1 [shape = 'u32[144,128]{1,0:T(1,128)}', space=vmem, size = 0x12000, scoped, tag = 'internal scratch']
  %s0 = inlined_call_operand.vmem [shape: bf16[2,8,128], index: 0, kind: input, shape index: {}]
  %s1 = inlined_call_operand.vmem [shape: f32[2,8,1], index: 1, kind: input, shape index: {}]
  %s2 = inlined_call_operand.vmem [shape: f32[2,8,1], index: 2, kind: input, shape index: {}]
  %s3 = inlined_call_operand.vmem [shape: f32[2,8,1], index: 3, kind: input, shape index: {}]
  %s4 = inlined_call_operand.vmem [shape: f32[128,128], index: 4, kind: input, shape index: {}]
  %s5 = inlined_call_operand.vmem [shape: f32[1,128], index: 5, kind: input, shape index: {}]
  %s6 = inlined_call_operand.vmem [shape: f32[128,128], index: 6, kind: input, shape index: {}]
  %s7 = inlined_call_operand.vmem [shape: f32[1,128], index: 7, kind: input, shape index: {}]
  %s8 = inlined_call_operand.vmem [shape: f32[1,384], index: 8, kind: input, shape index: {}]
  %s9 = inlined_call_operand.vmem [shape: f32[1,384], index: 9, kind: input, shape index: {}]
  %s10 = inlined_call_operand.vmem [shape: f32[384,384], index: 10, kind: input, shape index: {}]
  %s11 = inlined_call_operand.vmem [shape: f32[1,384], index: 11, kind: input, shape index: {}]
  %s12 = inlined_call_operand.vmem [shape: f32[2,1,384], index: 12, kind: output, shape index: {}]
  %s13 = sld [smem:[#allocation0]]
  $region81: #{run.11} parent=0
    _
  %s15 = ssub.s32 1, %s13
  %s16 = scalar_select 0, %s15, %s13
  loop: start=0, step=1, limit=4
  $region2: #{run.11} parent=0 // loop_pre_header
    _
  $region3: #{run.11} parent=0 // loop_header
    %s18 = sphi 0, %s22
    %p19 = scmp.ge.s32.totalorder %s18, 4
    %s28 = sphi 0, %s30
    %s31 = sphi 0, %s28
    %s32 = sphi 0, %s31
    %s48 = sphi 0, %s32
    %s54 = sphi 0, %s56
    %s57 = sphi 0, %s54
    %s58 = sphi 0, %s57
    %s74 = sphi 0, %s58
    %s80 = sphi 0, %s82
    %s83 = sphi 0, %s80
    %s84 = sphi 0, %s83
    %s100 = sphi 0, %s84
    %s106 = sphi 0, %s108
    %s109 = sphi 0, %s106
    %s110 = sphi 0, %s109
    %s126 = sphi 0, %s110
    %s130 = sphi 0, %s130
    %s132 = sphi 0, %s130
    %s133 = sphi 0, %s132
    %s147 = sphi 0, %s133
    %s151 = sphi 0, %s151
    %s153 = sphi 0, %s151
    %s154 = sphi 0, %s153
    %s168 = sphi 0, %s154
    %s172 = sphi 0, %s172
    %s174 = sphi 0, %s172
    %s175 = sphi 0, %s174
    %s189 = sphi 0, %s175
    %s193 = sphi 0, %s193
    %s195 = sphi 0, %s193
    %s196 = sphi 0, %s195
    %s210 = sphi 0, %s196
    %s214 = sphi 0, %s214
    %s216 = sphi 0, %s214
    %s217 = sphi 0, %s216
    %s231 = sphi 0, %s217
    %s235 = sphi 0, %s235
    %s237 = sphi 0, %s235
    %s238 = sphi 0, %s237
    %s252 = sphi 0, %s238
    %s256 = sphi 0, %s256
    %s258 = sphi 0, %s256
    %s259 = sphi 0, %s258
    %s273 = sphi 0, %s259
    %s277 = sphi 0, %s277
    %s279 = sphi 0, %s277
    %s280 = sphi 0, %s279
    %s294 = sphi 0, %s280
    %s300 = sphi 0, %s302
    %s303 = sphi 0, %s300
    %s304 = sphi 0, %s303
    %s320 = sphi 0, %s304
  $region4: #{run.11} parent=0 // loop_header_branch
    %21 = sbr.rel (%p19) target = $region8
  $region5: #{run.11} parent=0 // loop_body
    %s23 = ssub.s32 %s18, 1
    %s24 = ssub.s32 %s18, 2
    %s25 = sadd.s32 %s18, 1
    %s26 = ssub.s32 %s18, %s25
    %p27 = scmp.eq.s32.totalorder %s26, 0
    %s29 = sadd.s32 %s28, 1
    %s30 = scalar_select %p27, %s28, %s29
    %p33 = pneg %p27
    %p34 = scmp.eq.s32.totalorder %s18, 1
    %p35 = por %p33, %p34
    %p36 = scmp.ne.s32.totalorder %s28, %s31
    %p37 = scmp.eq.s32.totalorder %s18, 0
    %p38 = por %p36, %p37
    %p39 = scmp.ne.s32.totalorder %s28, %s31
    %p40 = scmp.eq.s32.totalorder %s23, 1
    %p41 = por %p39, %p40
    %p42 = scmp.ne.s32.totalorder %s31, %s32
    %p43 = scmp.eq.s32.totalorder %s23, 0
    %p44 = por %p42, %p43
    %p45 = scmp.ne.s32.totalorder %s31, %s32
    %p46 = scmp.eq.s32.totalorder %s24, 1
    %p47 = por %p45, %p46
    %p49 = scmp.ne.s32.totalorder %s32, %s48
    %p50 = scmp.eq.s32.totalorder %s24, 0
    %p51 = por %p49, %p50
    %s52 = ssub.s32 %s18, %s25
    %p53 = scmp.eq.s32.totalorder %s52, 0
    %s55 = sadd.s32 %s54, 1
    %s56 = scalar_select %p53, %s54, %s55
    %p59 = pneg %p53
    %p60 = scmp.eq.s32.totalorder %s18, 1
    %p61 = por %p59, %p60
    %p62 = scmp.ne.s32.totalorder %s54, %s57
    %p63 = scmp.eq.s32.totalorder %s18, 0
    %p64 = por %p62, %p63
    %p65 = scmp.ne.s32.totalorder %s54, %s57
    %p66 = scmp.eq.s32.totalorder %s23, 1
    %p67 = por %p65, %p66
    %p68 = scmp.ne.s32.totalorder %s57, %s58
    %p69 = scmp.eq.s32.totalorder %s23, 0
    %p70 = por %p68, %p69
    %p71 = scmp.ne.s32.totalorder %s57, %s58
    %p72 = scmp.eq.s32.totalorder %s24, 1
    %p73 = por %p71, %p72
    %p75 = scmp.ne.s32.totalorder %s58, %s74
    %p76 = scmp.eq.s32.totalorder %s24, 0
    %p77 = por %p75, %p76
    %s78 = ssub.s32 %s18, %s25
    %p79 = scmp.eq.s32.totalorder %s78, 0
    %s81 = sadd.s32 %s80, 1
    %s82 = scalar_select %p79, %s80, %s81
    %p85 = pneg %p79
    %p86 = scmp.eq.s32.totalorder %s18, 1
    %p87 = por %p85, %p86
    %p88 = scmp.ne.s32.totalorder %s80, %s83
    %p89 = scmp.eq.s32.totalorder %s18, 0
    %p90 = por %p88, %p89
    %p91 = scmp.ne.s32.totalorder %s80, %s83
    %p92 = scmp.eq.s32.totalorder %s23, 1
    %p93 = por %p91, %p92
    %p94 = scmp.ne.s32.totalorder %s83, %s84
    %p95 = scmp.eq.s32.totalorder %s23, 0
    %p96 = por %p94, %p95
    %p97 = scmp.ne.s32.totalorder %s83, %s84
    %p98 = scmp.eq.s32.totalorder %s24, 1
    %p99 = por %p97, %p98
    %p101 = scmp.ne.s32.totalorder %s84, %s100
    %p102 = scmp.eq.s32.totalorder %s24, 0
    %p103 = por %p101, %p102
    %s104 = ssub.s32 %s18, %s25
    %p105 = scmp.eq.s32.totalorder %s104, 0
    %s107 = sadd.s32 %s106, 1
    %s108 = scalar_select %p105, %s106, %s107
    %p111 = pneg %p105
    %p112 = scmp.eq.s32.totalorder %s18, 1
    %p113 = por %p111, %p112
    %p114 = scmp.ne.s32.totalorder %s106, %s109
    %p115 = scmp.eq.s32.totalorder %s18, 0
    %p116 = por %p114, %p115
    %p117 = scmp.ne.s32.totalorder %s106, %s109
    %p118 = scmp.eq.s32.totalorder %s23, 1
    %p119 = por %p117, %p118
    %p120 = scmp.ne.s32.totalorder %s109, %s110
    %p121 = scmp.eq.s32.totalorder %s23, 0
    %p122 = por %p120, %p121
    %p123 = scmp.ne.s32.totalorder %s109, %s110
    %p124 = scmp.eq.s32.totalorder %s24, 1
    %p125 = por %p123, %p124
    %p127 = scmp.ne.s32.totalorder %s110, %s126
    %p128 = scmp.eq.s32.totalorder %s24, 0
    %p129 = por %p127, %p128
    %s131 = sadd.s32 %s130, 1
    %p134 = scmp.eq.s32.totalorder %s18, 1
    %p135 = scmp.ne.s32.totalorder %s130, %s132
    %p136 = scmp.eq.s32.totalorder %s18, 0
    %p137 = por %p135, %p136
    %p138 = scmp.ne.s32.totalorder %s130, %s132
    %p139 = scmp.eq.s32.totalorder %s23, 1
    %p140 = por %p138, %p139
    %p141 = scmp.ne.s32.totalorder %s132, %s133
    %p142 = scmp.eq.s32.totalorder %s23, 0
    %p143 = por %p141, %p142
    %p144 = scmp.ne.s32.totalorder %s132, %s133
    %p145 = scmp.eq.s32.totalorder %s24, 1
    %p146 = por %p144, %p145
    %p148 = scmp.ne.s32.totalorder %s133, %s147
    %p149 = scmp.eq.s32.totalorder %s24, 0
    %p150 = por %p148, %p149
    %s152 = sadd.s32 %s151, 1
    %p155 = scmp.eq.s32.totalorder %s18, 1
    %p156 = scmp.ne.s32.totalorder %s151, %s153
    %p157 = scmp.eq.s32.totalorder %s18, 0
    %p158 = por %p156, %p157
    %p159 = scmp.ne.s32.totalorder %s151, %s153
    %p160 = scmp.eq.s32.totalorder %s23, 1
    %p161 = por %p159, %p160
    %p162 = scmp.ne.s32.totalorder %s153, %s154
    %p163 = scmp.eq.s32.totalorder %s23, 0
    %p164 = por %p162, %p163
    %p165 = scmp.ne.s32.totalorder %s153, %s154
    %p166 = scmp.eq.s32.totalorder %s24, 1
    %p167 = por %p165, %p166
    %p169 = scmp.ne.s32.totalorder %s154, %s168
    %p170 = scmp.eq.s32.totalorder %s24, 0
    %p171 = por %p169, %p170
    %s173 = sadd.s32 %s172, 1
    %p176 = scmp.eq.s32.totalorder %s18, 1
    %p177 = scmp.ne.s32.totalorder %s172, %s174
    %p178 = scmp.eq.s32.totalorder %s18, 0
    %p179 = por %p177, %p178
    %p180 = scmp.ne.s32.totalorder %s172, %s174
    %p181 = scmp.eq.s32.totalorder %s23, 1
    %p182 = por %p180, %p181
    %p183 = scmp.ne.s32.totalorder %s174, %s175
    %p184 = scmp.eq.s32.totalorder %s23, 0
    %p185 = por %p183, %p184
    %p186 = scmp.ne.s32.totalorder %s174, %s175
    %p187 = scmp.eq.s32.totalorder %s24, 1
    %p188 = por %p186, %p187
    %p190 = scmp.ne.s32.totalorder %s175, %s189
    %p191 = scmp.eq.s32.totalorder %s24, 0
    %p192 = por %p190, %p191
    %s194 = sadd.s32 %s193, 1
    %p197 = scmp.eq.s32.totalorder %s18, 1
    %p198 = scmp.ne.s32.totalorder %s193, %s195
    %p199 = scmp.eq.s32.totalorder %s18, 0
    %p200 = por %p198, %p199
    %p201 = scmp.ne.s32.totalorder %s193, %s195
    %p202 = scmp.eq.s32.totalorder %s23, 1
    %p203 = por %p201, %p202
    %p204 = scmp.ne.s32.totalorder %s195, %s196
    %p205 = scmp.eq.s32.totalorder %s23, 0
    %p206 = por %p204, %p205
    %p207 = scmp.ne.s32.totalorder %s195, %s196
    %p208 = scmp.eq.s32.totalorder %s24, 1
    %p209 = por %p207, %p208
    %p211 = scmp.ne.s32.totalorder %s196, %s210
    %p212 = scmp.eq.s32.totalorder %s24, 0
    %p213 = por %p211, %p212
    %s215 = sadd.s32 %s214, 1
    %p218 = scmp.eq.s32.totalorder %s18, 1
    %p219 = scmp.ne.s32.totalorder %s214, %s216
    %p220 = scmp.eq.s32.totalorder %s18, 0
    %p221 = por %p219, %p220
    %p222 = scmp.ne.s32.totalorder %s214, %s216
    %p223 = scmp.eq.s32.totalorder %s23, 1
    %p224 = por %p222, %p223
    %p225 = scmp.ne.s32.totalorder %s216, %s217
    %p226 = scmp.eq.s32.totalorder %s23, 0
    %p227 = por %p225, %p226
    %p228 = scmp.ne.s32.totalorder %s216, %s217
    %p229 = scmp.eq.s32.totalorder %s24, 1
    %p230 = por %p228, %p229
    %p232 = scmp.ne.s32.totalorder %s217, %s231
    %p233 = scmp.eq.s32.totalorder %s24, 0
    %p234 = por %p232, %p233
    %s236 = sadd.s32 %s235, 1
    %p239 = scmp.eq.s32.totalorder %s18, 1
    %p240 = scmp.ne.s32.totalorder %s235, %s237
    %p241 = scmp.eq.s32.totalorder %s18, 0
    %p242 = por %p240, %p241
    %p243 = scmp.ne.s32.totalorder %s235, %s237
    %p244 = scmp.eq.s32.totalorder %s23, 1
    %p245 = por %p243, %p244
    %p246 = scmp.ne.s32.totalorder %s237, %s238
    %p247 = scmp.eq.s32.totalorder %s23, 0
    %p248 = por %p246, %p247
    %p249 = scmp.ne.s32.totalorder %s237, %s238
    %p250 = scmp.eq.s32.totalorder %s24, 1
    %p251 = por %p249, %p250
    %p253 = scmp.ne.s32.totalorder %s238, %s252
    %p254 = scmp.eq.s32.totalorder %s24, 0
    %p255 = por %p253, %p254
    %s257 = sadd.s32 %s256, 1
    %p260 = scmp.eq.s32.totalorder %s18, 1
    %p261 = scmp.ne.s32.totalorder %s256, %s258
    %p262 = scmp.eq.s32.totalorder %s18, 0
    %p263 = por %p261, %p262
    %p264 = scmp.ne.s32.totalorder %s256, %s258
    %p265 = scmp.eq.s32.totalorder %s23, 1
    %p266 = por %p264, %p265
    %p267 = scmp.ne.s32.totalorder %s258, %s259
    %p268 = scmp.eq.s32.totalorder %s23, 0
    %p269 = por %p267, %p268
    %p270 = scmp.ne.s32.totalorder %s258, %s259
    %p271 = scmp.eq.s32.totalorder %s24, 1
    %p272 = por %p270, %p271
    %p274 = scmp.ne.s32.totalorder %s259, %s273
    %p275 = scmp.eq.s32.totalorder %s24, 0
    %p276 = por %p274, %p275
    %s278 = sadd.s32 %s277, 1
    %p281 = scmp.eq.s32.totalorder %s18, 1
    %p282 = scmp.ne.s32.totalorder %s277, %s279
    %p283 = scmp.eq.s32.totalorder %s18, 0
    %p284 = por %p282, %p283
    %p285 = scmp.ne.s32.totalorder %s277, %s279
    %p286 = scmp.eq.s32.totalorder %s23, 1
    %p287 = por %p285, %p286
    %p288 = scmp.ne.s32.totalorder %s279, %s280
    %p289 = scmp.eq.s32.totalorder %s23, 0
    %p290 = por %p288, %p289
    %p291 = scmp.ne.s32.totalorder %s279, %s280
    %p292 = scmp.eq.s32.totalorder %s24, 1
    %p293 = por %p291, %p292
    %p295 = scmp.ne.s32.totalorder %s280, %s294
    %p296 = scmp.eq.s32.totalorder %s24, 0
    %p297 = por %p295, %p296
    %s298 = ssub.s32 %s18, %s25
    %p299 = scmp.eq.s32.totalorder %s298, 0
    %s301 = sadd.s32 %s300, 1
    %s302 = scalar_select %p299, %s300, %s301
    %p305 = pneg %p299
    %p306 = scmp.eq.s32.totalorder %s18, 1
    %p307 = por %p305, %p306
    %p308 = scmp.ne.s32.totalorder %s300, %s303
    %p309 = scmp.eq.s32.totalorder %s18, 0
    %p310 = por %p308, %p309
    %p311 = scmp.ne.s32.totalorder %s300, %s303
    %p312 = scmp.eq.s32.totalorder %s23, 1
    %p313 = por %p311, %p312
    %p314 = scmp.ne.s32.totalorder %s303, %s304
    %p315 = scmp.eq.s32.totalorder %s23, 0
    %p316 = por %p314, %p315
    %p317 = scmp.ne.s32.totalorder %s303, %s304
    %p318 = scmp.eq.s32.totalorder %s24, 1
    %p319 = por %p317, %p318
    %p321 = scmp.ne.s32.totalorder %s304, %s320
    %p322 = scmp.eq.s32.totalorder %s24, 0
    %p323 = por %p321, %p322
    %p324 = scmp.le.s32.totalorder 1, %s18
    %p325 = scmp.lt.s32.totalorder %s18, 3
    %p326 = pnand %p324, %p325
    %p327 = pneg %p326
    // Predicated region
    $region9: #{run.11} parent=5 // pred_check
      _
    $region10: #{run.11} parent=5 // pred_check_branch
      %329 = sbr.rel (%p326) target = $region12
    $region11: #{run.11} parent=5 // pred_region
      %s330 = ssub.s32 %s18, 1
      // Predicated region
      $region13: #{run.11} parent=11 // pred_check
        %p331 = pneg %p143
      $region14: #{run.11} parent=11 // pred_check_branch
        %333 = sbr.rel (%p331) target = $region16
      $region15: #{run.11} parent=11 // pred_region
        _
      $region16: #{run.11} parent=11 // pred_fallthru
        _
      // Predicated region
      $region17: #{run.11} parent=11 // pred_check
        %p334 = pneg %p164
      $region18: #{run.11} parent=11 // pred_check_branch
        %336 = sbr.rel (%p334) target = $region20
      $region19: #{run.11} parent=11 // pred_region
        _
      $region20: #{run.11} parent=11 // pred_fallthru
        _
      // Predicated region
      $region21: #{run.11} parent=11 // pred_check
        %p337 = pneg %p185
      $region22: #{run.11} parent=11 // pred_check_branch
        %339 = sbr.rel (%p337) target = $region24
      $region23: #{run.11} parent=11 // pred_region
        _
      $region24: #{run.11} parent=11 // pred_fallthru
        _
      // Predicated region
      $region25: #{run.11} parent=11 // pred_check
        %p340 = pneg %p206
      $region26: #{run.11} parent=11 // pred_check_branch
        %342 = sbr.rel (%p340) target = $region28
      $region27: #{run.11} parent=11 // pred_region
        _
      $region28: #{run.11} parent=11 // pred_fallthru
        _
      // Predicated region
      $region29: #{run.11} parent=11 // pred_check
        %p343 = pneg %p227
      $region30: #{run.11} parent=11 // pred_check_branch
        %345 = sbr.rel (%p343) target = $region32
      $region31: #{run.11} parent=11 // pred_region
        _
      $region32: #{run.11} parent=11 // pred_fallthru
        _
      // Predicated region
      $region33: #{run.11} parent=11 // pred_check
        %p346 = pneg %p248
      $region34: #{run.11} parent=11 // pred_check_branch
        %348 = sbr.rel (%p346) target = $region36
      $region35: #{run.11} parent=11 // pred_region
        _
      $region36: #{run.11} parent=11 // pred_fallthru
        _
      // Predicated region
      $region37: #{run.11} parent=11 // pred_check
        %p349 = pneg %p269
      $region38: #{run.11} parent=11 // pred_check_branch
        %351 = sbr.rel (%p349) target = $region40
      $region39: #{run.11} parent=11 // pred_region
        _
      $region40: #{run.11} parent=11 // pred_fallthru
        _
      // Predicated region
      $region41: #{run.11} parent=11 // pred_check
        %p352 = pneg %p290
      $region42: #{run.11} parent=11 // pred_check_branch
        %354 = sbr.rel (%p352) target = $region44
      $region43: #{run.11} parent=11 // pred_region
        _
      $region44: #{run.11} parent=11 // pred_fallthru
        _
    $region12: #{run.11} parent=5 // pred_fallthru
      _
    %p355 = scmp.lt.s32.totalorder %s18, 2
    // Predicated region
    $region45: #{run.11} parent=5 // pred_check
      %p356 = pneg %p355
    $region46: #{run.11} parent=5 // pred_check_branch
      %358 = sbr.rel (%p356) target = $region48
    $region47: #{run.11} parent=5 // pred_region
      // Predicated region
      $region49: #{run.11} parent=47 // pred_check
        %p359 = pneg %p38
      $region50: #{run.11} parent=47 // pred_check_branch
        %361 = sbr.rel (%p359) target = $region52
      $region51: #{run.11} parent=47 // pred_region
        %p362 = scmp.lt.s32.totalorder %s18, 1
        %s363 = scalar_select %p362, %s18, 1
        %s364 = smul.addr %s363, 4
        %s365 = scalar_lea.vmem %s0, %s364
      $region52: #{run.11} parent=47 // pred_fallthru
        _
      // Predicated region
      $region53: #{run.11} parent=47 // pred_check
        %p366 = pneg %p64
      $region54: #{run.11} parent=47 // pred_check_branch
        %368 = sbr.rel (%p366) target = $region56
      $region55: #{run.11} parent=47 // pred_region
        %p369 = scmp.lt.s32.totalorder %s18, 1
        %s370 = scalar_select %p369, %s18, 1
        %s371 = smul.addr %s370, 8
        %s372 = scalar_lea.vmem %s1, %s371
      $region56: #{run.11} parent=47 // pred_fallthru
        _
      // Predicated region
      $region57: #{run.11} parent=47 // pred_check
        %p373 = pneg %p90
      $region58: #{run.11} parent=47 // pred_check_branch
        %375 = sbr.rel (%p373) target = $region60
      $region59: #{run.11} parent=47 // pred_region
        %p376 = scmp.lt.s32.totalorder %s18, 1
        %s377 = scalar_select %p376, %s18, 1
        %s378 = smul.addr %s377, 8
        %s379 = scalar_lea.vmem %s2, %s378
      $region60: #{run.11} parent=47 // pred_fallthru
        _
      // Predicated region
      $region61: #{run.11} parent=47 // pred_check
        %p380 = pneg %p116
      $region62: #{run.11} parent=47 // pred_check_branch
        %382 = sbr.rel (%p380) target = $region64
      $region63: #{run.11} parent=47 // pred_region
        %p383 = scmp.lt.s32.totalorder %s18, 1
        %s384 = scalar_select %p383, %s18, 1
        %s385 = smul.addr %s384, 8
        %s386 = scalar_lea.vmem %s3, %s385
      $region64: #{run.11} parent=47 // pred_fallthru
        _
    $region48: #{run.11} parent=5 // pred_fallthru
      _
    %p387 = scmp.le.s32.totalorder 1, %s18
    %p388 = scmp.lt.s32.totalorder %s18, 3
    %p389 = pnand %p387, %p388
    %p390 = pneg %p389
    // Predicated region
    $region65: #{run.11} parent=5 // pred_check
      _
    $region66: #{run.11} parent=5 // pred_check_branch
      %392 = sbr.rel (%p389) target = $region68
    $region67: #{run.11} parent=5 // pred_region
      %s393 = ssub.s32 %s18, 1
      %p394 = scmp.lt.s32.totalorder %s23, 1
      %s395 = scalar_select %p394, %s23, 1
      %s396 = smul.addr %s395, 4
      %s397 = scalar_lea.vmem %s0, %s396
      %p398 = pneg %p44
      %p399 = pneg %p41
      %p400 = scmp.lt.s32.totalorder %s23, 1
      %s401 = scalar_select %p400, %s23, 1
      %s402 = smul.addr %s401, 8
      %s403 = scalar_lea.vmem %s1, %s402
      %p404 = pneg %p70
      %p405 = pneg %p67
      %p406 = scmp.lt.s32.totalorder %s23, 1
      %s407 = scalar_select %p406, %s23, 1
      %s408 = smul.addr %s407, 8
      %s409 = scalar_lea.vmem %s2, %s408
      %p410 = pneg %p96
      %p411 = pneg %p93
      %p412 = scmp.lt.s32.totalorder %s23, 1
      %s413 = scalar_select %p412, %s23, 1
      %s414 = smul.addr %s413, 8
      %s415 = scalar_lea.vmem %s3, %s414
      %p416 = pneg %p122
      %p417 = pneg %p119
      %p418 = pneg %p143
      %p419 = pneg %p140
      %p420 = pneg %p164
      %p421 = pneg %p161
      %p422 = pneg %p185
      %p423 = pneg %p182
      %p424 = pneg %p206
      %p425 = pneg %p203
      %p426 = pneg %p227
      %p427 = pneg %p224
      %p428 = pneg %p248
      %p429 = pneg %p245
      %p430 = pneg %p269
      %p431 = pneg %p266
      %p432 = pneg %p290
      %p433 = pneg %p287
      %p434 = pneg %p316
      %p435 = pneg %p313
      %p436 = scmp.lt.s32.totalorder %s23, 1
      %s437 = scalar_select %p436, %s23, 1
      %s438 = smul.addr %s437, 3
      %s439 = scalar_lea.vmem %s12, %s438
      %p440 = scmp.lt.s32.totalorder %s23, 1
      %s441 = scalar_select %p440, %s23, 1
      %s442 = smul.addr %s441, 4
      %s443 = scalar_lea.vmem %s0, %s442
      %p444 = scmp.lt.s32.totalorder %s23, 1
      %s445 = scalar_select %p444, %s23, 1
      %s446 = smul.addr %s445, 8
      %s447 = scalar_lea.vmem %s1, %s446
      %p448 = scmp.lt.s32.totalorder %s23, 1
      %s449 = scalar_select %p448, %s23, 1
      %s450 = smul.addr %s449, 8
      %s451 = scalar_lea.vmem %s2, %s450
      %p452 = scmp.lt.s32.totalorder %s23, 1
      %s453 = scalar_select %p452, %s23, 1
      %s454 = smul.addr %s453, 8
      %s455 = scalar_lea.vmem %s3, %s454
      %p456 = scmp.lt.s32.totalorder %s23, 1
      %s457 = scalar_select %p456, %s23, 1
      %s458 = smul.addr %s457, 3
      %s459 = scalar_lea.vmem %s12, %s458
      %v460 = vld [vmem:[%s443] sm:$0xf]
      %v461 = vunpack.c.l.bf16 %v460
      %v462 = vld [vmem:[%s447] sm:$0xff]
      %vm463 = vcmp.eq.f32.partialorder %v462, 0.0
      %v464 = vsel %vm463, -1e+09, %v462
      %vm465 = vcmask 7168
      %v466 = vsel %vm465, %v464, -inf
      %v467 = vrot.slane %v466, 4
      %v468 = vmax.f32 %v466, %v467
      %v469 = vrot.slane %v468, 2
      %v470 = vmax.f32 %v468, %v469
      %v471 = vrot.slane %v470, 1
      %v472 = vmax.f32 %v470, %v471
      %v473 = vsub.f32 %v464, %v472
      %v474 = vmul.f32 %v473, 1.442695
      %v475 = vpow.pop %v474
      %v476 = vsel %vm465, %v475, 0.0
      %v477 = vrot.slane %v476, 4
      %v478 = vadd.f32 %v476, %v477
      %v479 = vrot.slane %v478, 2
      %v480 = vadd.f32 %v478, %v479
      %v481 = vrot.slane %v480, 1
      %v482 = vadd.f32 %v480, %v481
      %v483 = vrcp.pop %v482
      %v484 = vmul.f32 %v475, %v483
      %486 = vset.pattern.permute.xlu0 0
      %487 = vperm.xlu0 %486, %v484
      %v488 = vpop.permute.xlu0 %487
      %v490 = vmul.f32 %v488, %v461
      %v491 = vrot.slane %v490, 4
      %v492 = vadd.f32 %v490, %v491
      %v493 = vrot.slane %v492, 2
      %v494 = vadd.f32 %v492, %v493
      %v495 = vrot.slane %v494, 1
      %v496 = vadd.f32 %v494, %v495
      %v497 = vld [vmem:[%s451] sm:$0xff]
      %vm498 = vcmp.ne.f32.partialorder %v497, 0.0
      %v499 = vsel %vm498, 1, 0
      %v500 = vcvt.s32.f32 %v499
      %v501 = vsel %vm465, %v500, 0.0
      %v502 = vrot.slane %v501, 4
      %v503 = vadd.f32 %v501, %v502
      %v504 = vrot.slane %v503, 2
      %v505 = vadd.f32 %v503, %v504
      %v506 = vrot.slane %v505, 1
      %v507 = vadd.f32 %v505, %v506
      %v508 = vmax.f32 %v507, 1.0
      %510 = vset.pattern.permute.xlu0 0
      %511 = vperm.xlu0 %510, %v497
      %v512 = vpop.permute.xlu0 %511
      %v514 = vmul.f32 %v512, %v461
      %v515 = vrot.slane %v514, 4
      %v516 = vadd.f32 %v514, %v515
      %v517 = vrot.slane %v516, 2
      %v518 = vadd.f32 %v516, %v517
      %v519 = vrot.slane %v518, 1
      %v520 = vadd.f32 %v518, %v519
      %v521 = vrcp.pop %v508
      %523 = vset.pattern.permute.xlu0 0
      %524 = vperm.xlu0 %523, %v521
      %v525 = vpop.permute.xlu0 %524
      %v527 = vmul.f32 %v520, %v525
      %v528 = vld [vmem:[%s455] sm:$0xff]
      %vm529 = vcmp.ne.f32.partialorder %v528, 0.0
      %v530 = vsel %vm529, 1, 0
      %v531 = vcvt.s32.f32 %v530
      %v532 = vsel %vm465, %v531, 0.0
      %v533 = vrot.slane %v532, 4
      %v534 = vadd.f32 %v532, %v533
      %v535 = vrot.slane %v534, 2
      %v536 = vadd.f32 %v534, %v535
      %v537 = vrot.slane %v536, 1
      %v538 = vadd.f32 %v536, %v537
      %v539 = vmax.f32 %v538, 1.0
      %541 = vset.pattern.permute.xlu0 0
      %542 = vperm.xlu0 %541, %v528
      %v543 = vpop.permute.xlu0 %542
      %v545 = vmul.f32 %v543, %v461
      %v546 = vrot.slane %v545, 4
      %v547 = vadd.f32 %v545, %v546
      %v548 = vrot.slane %v547, 2
      %v549 = vadd.f32 %v547, %v548
      %v550 = vrot.slane %v549, 1
      %v551 = vadd.f32 %v549, %v550
      %v552 = vrcp.pop %v539
      %554 = vset.pattern.permute.xlu0 0
      %555 = vperm.xlu0 %554, %v552
      %v556 = vpop.permute.xlu0 %555
      %v558 = vmul.f32 %v551, %v556
      %v559 = vtanh.pop %v496
      %v560 = vld [vmem:[%s4] sm:$0xff]
      %v561 = vld [vmem:[%s4 + $0x8] sm:$0xff]
      %v562 = vld [vmem:[%s4 + $0x10] sm:$0xff]
      %v563 = vld [vmem:[%s4 + $0x18] sm:$0xff]
      %v564 = vld [vmem:[%s4 + $0x20] sm:$0xff]
      %v565 = vld [vmem:[%s4 + $0x28] sm:$0xff]
      %v566 = vld [vmem:[%s4 + $0x30] sm:$0xff]
      %v567 = vld [vmem:[%s4 + $0x38] sm:$0xff]
      %v568 = vld [vmem:[%s4 + $0x40] sm:$0xff]
      %v569 = vld [vmem:[%s4 + $0x48] sm:$0xff]
      %v570 = vld [vmem:[%s4 + $0x50] sm:$0xff]
      %v571 = vld [vmem:[%s4 + $0x58] sm:$0xff]
      %v572 = vld [vmem:[%s4 + $0x60] sm:$0xff]
      %v573 = vld [vmem:[%s4 + $0x68] sm:$0xff]
      %v574 = vld [vmem:[%s4 + $0x70] sm:$0xff]
      %v575 = vld [vmem:[%s4 + $0x78] sm:$0xff]
      %v576 = vld [vmem:[%s5] sm:$0x1]
      %577 = vmatprep.subr.mxu0 0.0
      %578 = vmatpush1.msra.mxu0 %v575
      %579 = vmatprep.subr.mxu0 0.0
      %580 = vmatpush1.msra.mxu0 %v574
      %581 = vmatprep.subr.mxu0 0.0
      %582 = vmatpush1.msra.mxu0 %v573
      %583 = vmatprep.subr.mxu0 0.0
      %584 = vmatpush1.msra.mxu0 %v572
      %585 = vmatprep.subr.mxu0 0.0
      %586 = vmatpush1.msra.mxu0 %v571
      %587 = vmatprep.subr.mxu0 0.0
      %588 = vmatpush1.msra.mxu0 %v570
      %589 = vmatprep.subr.mxu0 0.0
      %590 = vmatpush1.msra.mxu0 %v569
      %591 = vmatprep.subr.mxu0 0.0
      %592 = vmatpush1.msra.mxu0 %v568
      %593 = vmatprep.subr.mxu0 0.0
      %594 = vmatpush1.msra.mxu0 %v567
      %595 = vmatprep.subr.mxu0 0.0
      %596 = vmatpush1.msra.mxu0 %v566
      %597 = vmatprep.subr.mxu0 0.0
      %598 = vmatpush1.msra.mxu0 %v565
      %599 = vmatprep.subr.mxu0 0.0
      %600 = vmatpush1.msra.mxu0 %v564
      %601 = vmatprep.subr.mxu0 0.0
      %602 = vmatpush1.msra.mxu0 %v563
      %603 = vmatprep.subr.mxu0 0.0
      %604 = vmatpush1.msra.mxu0 %v562
      %605 = vmatprep.subr.mxu0 0.0
      %606 = vmatpush1.msra.mxu0 %v561
      %607 = vmatprep.subr.mxu0 0.0
      %608 = vmatpush1.msra.mxu0 %v560
      %609 = vmatprep.subr.mxu0 0.0
      %610 = vmatpush2.msra.mxu0 0.0
      %611 = vmatprep.subr.mxu0 0.0
      %612 = vmatpush2.msra.mxu0 0.0
      %613 = vmatprep.subr.mxu0 0.0
      %614 = vmatpush2.msra.mxu0 0.0
      %615 = vmatprep.subr.mxu0 0.0
      %616 = vmatpush2.msra.mxu0 0.0
      %617 = vmatprep.subr.mxu0 0.0
      %618 = vmatpush2.msra.mxu0 0.0
      %619 = vmatprep.subr.mxu0 0.0
      %620 = vmatpush2.msra.mxu0 0.0
      %621 = vmatprep.subr.mxu0 0.0
      %622 = vmatpush2.msra.mxu0 0.0
      %623 = vmatprep.subr.mxu0 0.0
      %624 = vmatpush2.msra.mxu0 0.0
      %625 = vmatprep.subr.mxu0 0.0
      %626 = vmatpush2.msra.mxu0 0.0
      %627 = vmatprep.subr.mxu0 0.0
      %628 = vmatpush2.msra.mxu0 0.0
      %629 = vmatprep.subr.mxu0 0.0
      %630 = vmatpush2.msra.mxu0 0.0
      %631 = vmatprep.subr.mxu0 0.0
      %632 = vmatpush2.msra.mxu0 0.0
      %633 = vmatprep.subr.mxu0 0.0
      %634 = vmatpush2.msra.mxu0 0.0
      %635 = vmatprep.subr.mxu0 0.0
      %636 = vmatpush2.msra.mxu0 0.0
      %637 = vmatprep.subr.mxu0 0.0
      %638 = vmatpush2.msra.mxu0 0.0
      %639 = vmatprep.subr.mxu0 0.0
      %640 = vmatpush2.msra.mxu0 0.0
      %641 = vmatprep.mubr.f32.mxu0 0.0
      %642 = vmatmul.mubr.f32.gmra.mxu0 %v559
      %v643 = vpop.f32.mrf.mxu0
      %v644 = vadd.f32 %v576, %v643
      %v645 = vpop.f32.mrf.mxu0
      %646 = vdwg.mxu0
      %vm647 = vcmask 1040384
      %v648 = vsel %vm647, %v527, %v558
      %v649 = vtanh.pop %v648
      %v650 = vld [vmem:[%s6] sm:$0xff]
      %v651 = vld [vmem:[%s6 + $0x8] sm:$0xff]
      %v652 = vld [vmem:[%s6 + $0x10] sm:$0xff]
      %v653 = vld [vmem:[%s6 + $0x18] sm:$0xff]
      %v654 = vld [vmem:[%s6 + $0x20] sm:$0xff]
      %v655 = vld [vmem:[%s6 + $0x28] sm:$0xff]
      %v656 = vld [vmem:[%s6 + $0x30] sm:$0xff]
      %v657 = vld [vmem:[%s6 + $0x38] sm:$0xff]
      %v658 = vld [vmem:[%s6 + $0x40] sm:$0xff]
      %v659 = vld [vmem:[%s6 + $0x48] sm:$0xff]
      %v660 = vld [vmem:[%s6 + $0x50] sm:$0xff]
      %v661 = vld [vmem:[%s6 + $0x58] sm:$0xff]
      %v662 = vld [vmem:[%s6 + $0x60] sm:$0xff]
      %v663 = vld [vmem:[%s6 + $0x68] sm:$0xff]
      %v664 = vld [vmem:[%s6 + $0x70] sm:$0xff]
      %v665 = vld [vmem:[%s6 + $0x78] sm:$0xff]
      %v666 = vld [vmem:[%s7] sm:$0x1]
      %v668 = vlaneseq
      %v669 = vshrl.u32 %v668, 7
      %v670 = vsub.s32 0, %v669
      %v671 = vrot.slane %v666, %v670
      %673 = vmatprep.subr.mxu0 0.0
      %674 = vmatpush1.msra.mxu0 %v665
      %675 = vmatprep.subr.mxu0 0.0
      %676 = vmatpush1.msra.mxu0 %v664
      %677 = vmatprep.subr.mxu0 0.0
      %678 = vmatpush1.msra.mxu0 %v663
      %679 = vmatprep.subr.mxu0 0.0
      %680 = vmatpush1.msra.mxu0 %v662
      %681 = vmatprep.subr.mxu0 0.0
      %682 = vmatpush1.msra.mxu0 %v661
      %683 = vmatprep.subr.mxu0 0.0
      %684 = vmatpush1.msra.mxu0 %v660
      %685 = vmatprep.subr.mxu0 0.0
      %686 = vmatpush1.msra.mxu0 %v659
      %687 = vmatprep.subr.mxu0 0.0
      %688 = vmatpush1.msra.mxu0 %v658
      %689 = vmatprep.subr.mxu0 0.0
      %690 = vmatpush1.msra.mxu0 %v657
      %691 = vmatprep.subr.mxu0 0.0
      %692 = vmatpush1.msra.mxu0 %v656
      %693 = vmatprep.subr.mxu0 0.0
      %694 = vmatpush1.msra.mxu0 %v655
      %695 = vmatprep.subr.mxu0 0.0
      %696 = vmatpush1.msra.mxu0 %v654
      %697 = vmatprep.subr.mxu0 0.0
      %698 = vmatpush1.msra.mxu0 %v653
      %699 = vmatprep.subr.mxu0 0.0
      %700 = vmatpush1.msra.mxu0 %v652
      %701 = vmatprep.subr.mxu0 0.0
      %702 = vmatpush1.msra.mxu0 %v651
      %703 = vmatprep.subr.mxu0 0.0
      %704 = vmatpush1.msra.mxu0 %v650
      %705 = vmatprep.subr.mxu0 0.0
      %706 = vmatpush2.msra.mxu0 0.0
      %707 = vmatprep.subr.mxu0 0.0
      %708 = vmatpush2.msra.mxu0 0.0
      %709 = vmatprep.subr.mxu0 0.0
      %710 = vmatpush2.msra.mxu0 0.0
      %711 = vmatprep.subr.mxu0 0.0
      %712 = vmatpush2.msra.mxu0 0.0
      %713 = vmatprep.subr.mxu0 0.0
      %714 = vmatpush2.msra.mxu0 0.0
      %715 = vmatprep.subr.mxu0 0.0
      %716 = vmatpush2.msra.mxu0 0.0
      %717 = vmatprep.subr.mxu0 0.0
      %718 = vmatpush2.msra.mxu0 0.0
      %719 = vmatprep.subr.mxu0 0.0
      %720 = vmatpush2.msra.mxu0 0.0
      %721 = vmatprep.subr.mxu0 0.0
      %722 = vmatpush2.msra.mxu0 0.0
      %723 = vmatprep.subr.mxu0 0.0
      %724 = vmatpush2.msra.mxu0 0.0
      %725 = vmatprep.subr.mxu0 0.0
      %726 = vmatpush2.msra.mxu0 0.0
      %727 = vmatprep.subr.mxu0 0.0
      %728 = vmatpush2.msra.mxu0 0.0
      %729 = vmatprep.subr.mxu0 0.0
      %730 = vmatpush2.msra.mxu0 0.0
      %731 = vmatprep.subr.mxu0 0.0
      %732 = vmatpush2.msra.mxu0 0.0
      %733 = vmatprep.subr.mxu0 0.0
      %734 = vmatpush2.msra.mxu0 0.0
      %735 = vmatprep.subr.mxu0 0.0
      %736 = vmatpush2.msra.mxu0 0.0
      %737 = vmatprep.mubr.f32.mxu0 0.0
      %738 = vmatmul.mubr.f32.gmra.mxu0 %v649
      %v739 = vpop.f32.mrf.mxu0
      %v740 = vadd.f32 %v671, %v739
      %v741 = vpop.f32.mrf.mxu0
      %742 = vdwg.mxu0
      %v744 = vrot.slane %v740, 1
      %v746 = vsel %vm647, %v644, 0.0
      %v747 = vsel %vm647, %v740, 0.0
      %v748 = vadd.f32 %v746, %v747
      %v749 = vsel %vm647, %v744, 0.0
      %v750 = vadd.f32 %v748, %v749
      %751 = vadd.xlane.f32.xlu0 %v750
      %v752 = vpop.xlane.xlu0 %751
      %v753 = vrcp.pop 384.0
      %v754 = vmul.f32 %v752, %v753
      %v755 = vsub.f32 %v644, %v754
      %v756 = vsub.f32 %v740, %v754
      %v757 = vsub.f32 %v744, %v754
      %v758 = vmul.f32 %v755, %v755
      %v759 = vmul.f32 %v756, %v756
      %v760 = vmul.f32 %v757, %v757
      %v761 = vsel %vm647, %v758, 0.0
      %v762 = vsel %vm647, %v759, 0.0
      %v763 = vadd.f32 %v761, %v762
      %v764 = vsel %vm647, %v760, 0.0
      %v765 = vadd.f32 %v763, %v764
      %766 = vadd.xlane.f32.xlu0 %v765
      %v767 = vpop.xlane.xlu0 %766
      %v768 = vrcp.pop 383.0
      %v769 = vmul.f32 %v767, %v768
      %v770 = vrsqrt.pop %v769
      %v771 = vmul.f32 %v769, %v770
      %vm772 = vcmp.eq.f32.partialorder %v769, inf
      %v773 = vsel %vm772, %v769, %v771
      %vm774 = vcmp.eq.f32.partialorder %v769, 0.0
      %v775 = vand.u32 %v769, 2147483648
      %v776 = vsel %vm774, %v775, %v773
      %v777 = vld [vmem:[%s8] sm:$0x7]
      %v781 = vcombine.low %v755, %v756
      %v783 = vunpack.c.l.s4 1966171168
      %v784 = vunpack.c.0.s8 %v783
      %v785 = vlaneseq
      %v786 = vshrl.u32 %v785, 7
      %v787 = vsub.s32 %v784, %v786
      %v788 = vrot.slane %v781, %v787
      %v790 = vunpack.c.l.s4 1966171168
      %v791 = vunpack.c.0.s8 %v790
      %v792 = vlaneseq
      %v793 = vshrl.u32 %v792, 7
      %v794 = vsub.s32 %v791, %v793
      %v795 = vrot.slane %v757, %v794
      %v796 = vcombine.low %v788, %v795
      %v798 = vunpack.c.l.s4 1966171168
      %v799 = vunpack.c.0.s8 %v798
      %v800 = vlaneseq
      %v801 = vshrl.u32 %v800, 7
      %v802 = vsub.s32 %v799, %v801
      %v803 = vrot.slane %v796, %v802
      %v805 = vmul.f32 %v777, %v803
      %v806 = vadd.f32 %v776, 1e-06
      %v807 = vrcp.pop %v806
      %v809 = vlaneseq
      %v810 = vshrl.u32 %v809, 7
      %v811 = vsub.s32 0, %v810
      %v812 = vrot.slane %v807, %v811
      %v814 = vmul.f32 %v805, %v812
      %v815 = vld [vmem:[%s9] sm:$0x7]
      %v816 = vadd.f32 %v814, %v815
      %v818 = vlaneseq
      %v819 = vshrl.u32 %v818, 7
      %v820 = vsub.s32 0, %v819
      %v821 = vrot.slane %v816, %v820
      %v822 = vlaneseq
      %v823 = vshrl.u32 %v822, 7
      %v824 = vsub.s32 1, %v823
      %v825 = vrot.slane %v816, %v824
      %v826 = vlaneseq
      %v827 = vshrl.u32 %v826, 7
      %v828 = vsub.s32 2, %v827
      %v829 = vrot.slane %v816, %v828
      %v833 = vadd.f32 %v644, %v821
      %v834 = vadd.f32 %v740, %v825
      %v835 = vadd.f32 %v744, %v829
      %v836 = vld [vmem:[%s10] sm:$0xff]
      %v837 = vld [vmem:[%s10 + $0x8] sm:$0xff]
      %v838 = vld [vmem:[%s10 + $0x10] sm:$0xff]
      %v839 = vld [vmem:[%s10 + $0x18] sm:$0xff]
      %v840 = vld [vmem:[%s10 + $0x20] sm:$0xff]
      %v841 = vld [vmem:[%s10 + $0x28] sm:$0xff]
      %v842 = vld [vmem:[%s10 + $0x30] sm:$0xff]
      %v843 = vld [vmem:[%s10 + $0x38] sm:$0xff]
      %v844 = vld [vmem:[%s10 + $0x40] sm:$0xff]
      %v845 = vld [vmem:[%s10 + $0x48] sm:$0xff]
      %v846 = vld [vmem:[%s10 + $0x50] sm:$0xff]
      %v847 = vld [vmem:[%s10 + $0x58] sm:$0xff]
      %v848 = vld [vmem:[%s10 + $0x60] sm:$0xff]
      %v849 = vld [vmem:[%s10 + $0x68] sm:$0xff]
      %v850 = vld [vmem:[%s10 + $0x70] sm:$0xff]
      %v851 = vld [vmem:[%s10 + $0x78] sm:$0xff]
      %v852 = vld [vmem:[%s10 + $0x80] sm:$0xff]
      %v853 = vld [vmem:[%s10 + $0x88] sm:$0xff]
      %v854 = vld [vmem:[%s10 + $0x90] sm:$0xff]
      %v855 = vld [vmem:[%s10 + $0x98] sm:$0xff]
      %v856 = vld [vmem:[%s10 + $0xa0] sm:$0xff]
      %v857 = vld [vmem:[%s10 + $0xa8] sm:$0xff]
      %v858 = vld [vmem:[%s10 + $0xb0] sm:$0xff]
      %v859 = vld [vmem:[%s10 + $0xb8] sm:$0xff]
      %v860 = vld [vmem:[%s10 + $0xc0] sm:$0xff]
      %v861 = vld [vmem:[%s10 + $0xc8] sm:$0xff]
      %v862 = vld [vmem:[%s10 + $0xd0] sm:$0xff]
      %v863 = vld [vmem:[%s10 + $0xd8] sm:$0xff]
      %v864 = vld [vmem:[%s10 + $0xe0] sm:$0xff]
      %v865 = vld [vmem:[%s10 + $0xe8] sm:$0xff]
      %v866 = vld [vmem:[%s10 + $0xf0] sm:$0xff]
      %v867 = vld [vmem:[%s10 + $0xf8] sm:$0xff]
      %v868 = vld [vmem:[%s10 + $0x100] sm:$0xff]
      %v869 = vld [vmem:[%s10 + $0x108] sm:$0xff]
      %v870 = vld [vmem:[%s10 + $0x110] sm:$0xff]
      %v871 = vld [vmem:[%s10 + $0x118] sm:$0xff]
      %v872 = vld [vmem:[%s10 + $0x120] sm:$0xff]
      %v873 = vld [vmem:[%s10 + $0x128] sm:$0xff]
      %v874 = vld [vmem:[%s10 + $0x130] sm:$0xff]
      %v875 = vld [vmem:[%s10 + $0x138] sm:$0xff]
      %v876 = vld [vmem:[%s10 + $0x140] sm:$0xff]
      %v877 = vld [vmem:[%s10 + $0x148] sm:$0xff]
      %v878 = vld [vmem:[%s10 + $0x150] sm:$0xff]
      %v879 = vld [vmem:[%s10 + $0x158] sm:$0xff]
      %v880 = vld [vmem:[%s10 + $0x160] sm:$0xff]
      %v881 = vld [vmem:[%s10 + $0x168] sm:$0xff]
      %v882 = vld [vmem:[%s10 + $0x170] sm:$0xff]
      %v883 = vld [vmem:[%s10 + $0x178] sm:$0xff]
      %v884 = vld [vmem:[%s10 + $0x180] sm:$0xff]
      %v885 = vld [vmem:[%s10 + $0x188] sm:$0xff]
      %v886 = vld [vmem:[%s10 + $0x190] sm:$0xff]
      %v887 = vld [vmem:[%s10 + $0x198] sm:$0xff]
      %v888 = vld [vmem:[%s10 + $0x1a0] sm:$0xff]
      %v889 = vld [vmem:[%s10 + $0x1a8] sm:$0xff]
      %v890 = vld [vmem:[%s10 + $0x1b0] sm:$0xff]
      %v891 = vld [vmem:[%s10 + $0x1b8] sm:$0xff]
      %v892 = vld [vmem:[%s10 + $0x1c0] sm:$0xff]
      %v893 = vld [vmem:[%s10 + $0x1c8] sm:$0xff]
      %v894 = vld [vmem:[%s10 + $0x1d0] sm:$0xff]
      %v895 = vld [vmem:[%s10 + $0x1d8] sm:$0xff]
      %v896 = vld [vmem:[%s10 + $0x1e0] sm:$0xff]
      %v897 = vld [vmem:[%s10 + $0x1e8] sm:$0xff]
      %v898 = vld [vmem:[%s10 + $0x1f0] sm:$0xff]
      %v899 = vld [vmem:[%s10 + $0x1f8] sm:$0xff]
      %v900 = vld [vmem:[%s10 + $0x200] sm:$0xff]
      %v901 = vld [vmem:[%s10 + $0x208] sm:$0xff]
      %v902 = vld [vmem:[%s10 + $0x210] sm:$0xff]
      %v903 = vld [vmem:[%s10 + $0x218] sm:$0xff]
      %v904 = vld [vmem:[%s10 + $0x220] sm:$0xff]
      %v905 = vld [vmem:[%s10 + $0x228] sm:$0xff]
      %v906 = vld [vmem:[%s10 + $0x230] sm:$0xff]
      %v907 = vld [vmem:[%s10 + $0x238] sm:$0xff]
      %v908 = vld [vmem:[%s10 + $0x240] sm:$0xff]
      %v909 = vld [vmem:[%s10 + $0x248] sm:$0xff]
      %v910 = vld [vmem:[%s10 + $0x250] sm:$0xff]
      %v911 = vld [vmem:[%s10 + $0x258] sm:$0xff]
      %v912 = vld [vmem:[%s10 + $0x260] sm:$0xff]
      %v913 = vld [vmem:[%s10 + $0x268] sm:$0xff]
      %v914 = vld [vmem:[%s10 + $0x270] sm:$0xff]
      %v915 = vld [vmem:[%s10 + $0x278] sm:$0xff]
      %v916 = vld [vmem:[%s10 + $0x280] sm:$0xff]
      %v917 = vld [vmem:[%s10 + $0x288] sm:$0xff]
      %v918 = vld [vmem:[%s10 + $0x290] sm:$0xff]
      %v919 = vld [vmem:[%s10 + $0x298] sm:$0xff]
      %v920 = vld [vmem:[%s10 + $0x2a0] sm:$0xff]
      %v921 = vld [vmem:[%s10 + $0x2a8] sm:$0xff]
      %v922 = vld [vmem:[%s10 + $0x2b0] sm:$0xff]
      %v923 = vld [vmem:[%s10 + $0x2b8] sm:$0xff]
      %v924 = vld [vmem:[%s10 + $0x2c0] sm:$0xff]
      %v925 = vld [vmem:[%s10 + $0x2c8] sm:$0xff]
      %v926 = vld [vmem:[%s10 + $0x2d0] sm:$0xff]
      %v927 = vld [vmem:[%s10 + $0x2d8] sm:$0xff]
      %v928 = vld [vmem:[%s10 + $0x2e0] sm:$0xff]
      %v929 = vld [vmem:[%s10 + $0x2e8] sm:$0xff]
      %v930 = vld [vmem:[%s10 + $0x2f0] sm:$0xff]
      %v931 = vld [vmem:[%s10 + $0x2f8] sm:$0xff]
      %v932 = vld [vmem:[%s10 + $0x300] sm:$0xff]
      %v933 = vld [vmem:[%s10 + $0x308] sm:$0xff]
      %v934 = vld [vmem:[%s10 + $0x310] sm:$0xff]
      %v935 = vld [vmem:[%s10 + $0x318] sm:$0xff]
      %v936 = vld [vmem:[%s10 + $0x320] sm:$0xff]
      %v937 = vld [vmem:[%s10 + $0x328] sm:$0xff]
      %v938 = vld [vmem:[%s10 + $0x330] sm:$0xff]
      %v939 = vld [vmem:[%s10 + $0x338] sm:$0xff]
      %v940 = vld [vmem:[%s10 + $0x340] sm:$0xff]
      %v941 = vld [vmem:[%s10 + $0x348] sm:$0xff]
      %v942 = vld [vmem:[%s10 + $0x350] sm:$0xff]
      %v943 = vld [vmem:[%s10 + $0x358] sm:$0xff]
      %v944 = vld [vmem:[%s10 + $0x360] sm:$0xff]
      %v945 = vld [vmem:[%s10 + $0x368] sm:$0xff]
      %v946 = vld [vmem:[%s10 + $0x370] sm:$0xff]
      %v947 = vld [vmem:[%s10 + $0x378] sm:$0xff]
      %v948 = vld [vmem:[%s10 + $0x380] sm:$0xff]
      %v949 = vld [vmem:[%s10 + $0x388] sm:$0xff]
      %v950 = vld [vmem:[%s10 + $0x390] sm:$0xff]
      %v951 = vld [vmem:[%s10 + $0x398] sm:$0xff]
      %v952 = vld [vmem:[%s10 + $0x3a0] sm:$0xff]
      %v953 = vld [vmem:[%s10 + $0x3a8] sm:$0xff]
      %v954 = vld [vmem:[%s10 + $0x3b0] sm:$0xff]
      %v955 = vld [vmem:[%s10 + $0x3b8] sm:$0xff]
      %v956 = vld [vmem:[%s10 + $0x3c0] sm:$0xff]
      %v957 = vld [vmem:[%s10 + $0x3c8] sm:$0xff]
      %v958 = vld [vmem:[%s10 + $0x3d0] sm:$0xff]
      %v959 = vld [vmem:[%s10 + $0x3d8] sm:$0xff]
      %v960 = vld [vmem:[%s10 + $0x3e0] sm:$0xff]
      %v961 = vld [vmem:[%s10 + $0x3e8] sm:$0xff]
      %v962 = vld [vmem:[%s10 + $0x3f0] sm:$0xff]
      %v963 = vld [vmem:[%s10 + $0x3f8] sm:$0xff]
      %v964 = vld [vmem:[%s10 + $0x400] sm:$0xff]
      %v965 = vld [vmem:[%s10 + $0x408] sm:$0xff]
      %v966 = vld [vmem:[%s10 + $0x410] sm:$0xff]
      %v967 = vld [vmem:[%s10 + $0x418] sm:$0xff]
      %v968 = vld [vmem:[%s10 + $0x420] sm:$0xff]
      %v969 = vld [vmem:[%s10 + $0x428] sm:$0xff]
      %v970 = vld [vmem:[%s10 + $0x430] sm:$0xff]
      %v971 = vld [vmem:[%s10 + $0x438] sm:$0xff]
      %v972 = vld [vmem:[%s10 + $0x440] sm:$0xff]
      %v973 = vld [vmem:[%s10 + $0x448] sm:$0xff]
      %v974 = vld [vmem:[%s10 + $0x450] sm:$0xff]
      %v975 = vld [vmem:[%s10 + $0x458] sm:$0xff]
      %v976 = vld [vmem:[%s10 + $0x460] sm:$0xff]
      %v977 = vld [vmem:[%s10 + $0x468] sm:$0xff]
      %v978 = vld [vmem:[%s10 + $0x470] sm:$0xff]
      %v979 = vld [vmem:[%s10 + $0x478] sm:$0xff]
      %v980 = vld [vmem:[%s11] sm:$0x7]
      %v982 = vlaneseq
      %v983 = vshrl.u32 %v982, 7
      %v984 = vsub.s32 0, %v983
      %v985 = vrot.slane %v980, %v984
      %v986 = vlaneseq
      %v987 = vshrl.u32 %v986, 7
      %v988 = vsub.s32 1, %v987
      %v989 = vrot.slane %v980, %v988
      %v990 = vlaneseq
      %v991 = vshrl.u32 %v990, 7
      %v992 = vsub.s32 2, %v991
      %v993 = vrot.slane %v980, %v992
      %997 = vmatprep.subr.mxu0 %v882
      %998 = vmatpush1.msra.mxu0 %v881
      %999 = vmatprep.subr.mxu0 %v879
      %1000 = vmatpush1.msra.mxu0 %v878
      %1001 = vmatprep.subr.mxu0 %v876
      %1002 = vmatpush1.msra.mxu0 %v875
      %1003 = vmatprep.subr.mxu0 %v873
      %1004 = vmatpush1.msra.mxu0 %v872
      %1005 = vmatprep.subr.mxu0 %v870
      %1006 = vmatpush1.msra.mxu0 %v869
      %1007 = vmatprep.subr.mxu0 %v867
      %1008 = vmatpush1.msra.mxu0 %v866
      %1009 = vmatprep.subr.mxu0 %v864
      %1010 = vmatpush1.msra.mxu0 %v863
      %1011 = vmatprep.subr.mxu0 %v861
      %1012 = vmatpush1.msra.mxu0 %v860
      %1013 = vmatprep.subr.mxu0 %v858
      %1014 = vmatpush1.msra.mxu0 %v857
      %1015 = vmatprep.subr.mxu0 %v855
      %1016 = vmatpush1.msra.mxu0 %v854
      %1017 = vmatprep.subr.mxu0 %v852
      %1018 = vmatpush1.msra.mxu0 %v851
      %1019 = vmatprep.subr.mxu0 %v849
      %1020 = vmatpush1.msra.mxu0 %v848
      %1021 = vmatprep.subr.mxu0 %v846
      %1022 = vmatpush1.msra.mxu0 %v845
      %1023 = vmatprep.subr.mxu0 %v843
      %1024 = vmatpush1.msra.mxu0 %v842
      %1025 = vmatprep.subr.mxu0 %v840
      %1026 = vmatpush1.msra.mxu0 %v839
      %1027 = vmatprep.subr.mxu0 %v837
      %1028 = vmatpush1.msra.mxu0 %v836
      %1029 = vmatprep.subr.mxu0 %v930
      %1030 = vmatpush2.msra.mxu0 %v929
      %1031 = vmatprep.subr.mxu0 %v927
      %1032 = vmatpush2.msra.mxu0 %v926
      %1033 = vmatprep.subr.mxu0 %v924
      %1034 = vmatpush2.msra.mxu0 %v923
      %1035 = vmatprep.subr.mxu0 %v921
      %1036 = vmatpush2.msra.mxu0 %v920
      %1037 = vmatprep.subr.mxu0 %v918
      %1038 = vmatpush2.msra.mxu0 %v917
      %1039 = vmatprep.subr.mxu0 %v915
      %1040 = vmatpush2.msra.mxu0 %v914
      %1041 = vmatprep.subr.mxu0 %v912
      %1042 = vmatpush2.msra.mxu0 %v911
      %1043 = vmatprep.subr.mxu0 %v909
      %1044 = vmatpush2.msra.mxu0 %v908
      %1045 = vmatprep.subr.mxu0 %v906
      %1046 = vmatpush2.msra.mxu0 %v905
      %1047 = vmatprep.subr.mxu0 %v903
      %1048 = vmatpush2.msra.mxu0 %v902
      %1049 = vmatprep.subr.mxu0 %v900
      %1050 = vmatpush2.msra.mxu0 %v899
      %1051 = vmatprep.subr.mxu0 %v897
      %1052 = vmatpush2.msra.mxu0 %v896
      %1053 = vmatprep.subr.mxu0 %v894
      %1054 = vmatpush2.msra.mxu0 %v893
      %1055 = vmatprep.subr.mxu0 %v891
      %1056 = vmatpush2.msra.mxu0 %v890
      %1057 = vmatprep.subr.mxu0 %v888
      %1058 = vmatpush2.msra.mxu0 %v887
      %1059 = vmatprep.subr.mxu0 %v885
      %1060 = vmatpush2.msra.mxu0 %v884
      %1061 = vmatprep.mubr.f32.mxu0 %v834
      %1062 = vmatmul.mubr.f32.gmra.mxu0 %v833
      %v1063 = vpop.f32.mrf.mxu0
      %v1064 = vadd.f32 %v985, %v1063
      %v1065 = vpop.f32.mrf.mxu0
      %v1066 = vadd.f32 %v989, %v1065
      %1067 = vdwg.mxu0
      %1068 = vmatprep.subr.mxu0 %v978
      %1069 = vmatpush1.msra.mxu0 %v977
      %1070 = vmatprep.subr.mxu0 %v975
      %1071 = vmatpush1.msra.mxu0 %v974
      %1072 = vmatprep.subr.mxu0 %v972
      %1073 = vmatpush1.msra.mxu0 %v971
      %1074 = vmatprep.subr.mxu0 %v969
      %1075 = vmatpush1.msra.mxu0 %v968
      %1076 = vmatprep.subr.mxu0 %v966
      %1077 = vmatpush1.msra.mxu0 %v965
      %1078 = vmatprep.subr.mxu0 %v963
      %1079 = vmatpush1.msra.mxu0 %v962
      %1080 = vmatprep.subr.mxu0 %v960
      %1081 = vmatpush1.msra.mxu0 %v959
      %1082 = vmatprep.subr.mxu0 %v957
      %1083 = vmatpush1.msra.mxu0 %v956
      %1084 = vmatprep.subr.mxu0 %v954
      %1085 = vmatpush1.msra.mxu0 %v953
      %1086 = vmatprep.subr.mxu0 %v951
      %1087 = vmatpush1.msra.mxu0 %v950
      %1088 = vmatprep.subr.mxu0 %v948
      %1089 = vmatpush1.msra.mxu0 %v947
      %1090 = vmatprep.subr.mxu0 %v945
      %1091 = vmatpush1.msra.mxu0 %v944
      %1092 = vmatprep.subr.mxu0 %v942
      %1093 = vmatpush1.msra.mxu0 %v941
      %1094 = vmatprep.subr.mxu0 %v939
      %1095 = vmatpush1.msra.mxu0 %v938
      %1096 = vmatprep.subr.mxu0 %v936
      %1097 = vmatpush1.msra.mxu0 %v935
      %1098 = vmatprep.subr.mxu0 %v933
      %1099 = vmatpush1.msra.mxu0 %v932
      %1100 = vmatprep.subr.mxu0 0.0
      %1101 = vmatpush2.msra.mxu0 0.0
      %1102 = vmatprep.subr.mxu0 0.0
      %1103 = vmatpush2.msra.mxu0 0.0
      %1104 = vmatprep.subr.mxu0 0.0
      %1105 = vmatpush2.msra.mxu0 0.0
      %1106 = vmatprep.subr.mxu0 0.0
      %1107 = vmatpush2.msra.mxu0 0.0
      %1108 = vmatprep.subr.mxu0 0.0
      %1109 = vmatpush2.msra.mxu0 0.0
      %1110 = vmatprep.subr.mxu0 0.0
      %1111 = vmatpush2.msra.mxu0 0.0
      %1112 = vmatprep.subr.mxu0 0.0
      %1113 = vmatpush2.msra.mxu0 0.0
      %1114 = vmatprep.subr.mxu0 0.0
      %1115 = vmatpush2.msra.mxu0 0.0
      %1116 = vmatprep.subr.mxu0 0.0
      %1117 = vmatpush2.msra.mxu0 0.0
      %1118 = vmatprep.subr.mxu0 0.0
      %1119 = vmatpush2.msra.mxu0 0.0
      %1120 = vmatprep.subr.mxu0 0.0
      %1121 = vmatpush2.msra.mxu0 0.0
      %1122 = vmatprep.subr.mxu0 0.0
      %1123 = vmatpush2.msra.mxu0 0.0
      %1124 = vmatprep.subr.mxu0 0.0
      %1125 = vmatpush2.msra.mxu0 0.0
      %1126 = vmatprep.subr.mxu0 0.0
      %1127 = vmatpush2.msra.mxu0 0.0
      %1128 = vmatprep.subr.mxu0 0.0
      %1129 = vmatpush2.msra.mxu0 0.0
      %1130 = vmatprep.subr.mxu0 0.0
      %1131 = vmatpush2.msra.mxu0 0.0
      %1132 = vmatprep.mubr.f32.mxu0 0.0
      %1133 = vmatmul.mubr.f32.gmra.mxu0 %v835
      %v1134 = vpop.f32.mrf.mxu0
      %v1135 = vadd.f32 %v1064, %v1134
      %v1136 = vpop.f32.mrf.mxu0
      %v1137 = vadd.f32 %v1066, %v1136
      %1138 = vdwg.mxu0
      %1139 = vmatprep.subr.mxu0 0.0
      %1140 = vmatpush1.msra.mxu0 %v883
      %1141 = vmatprep.subr.mxu0 0.0
      %1142 = vmatpush1.msra.mxu0 %v880
      %1143 = vmatprep.subr.mxu0 0.0
      %1144 = vmatpush1.msra.mxu0 %v877
      %1145 = vmatprep.subr.mxu0 0.0
      %1146 = vmatpush1.msra.mxu0 %v874
      %1147 = vmatprep.subr.mxu0 0.0
      %1148 = vmatpush1.msra.mxu0 %v871
      %1149 = vmatprep.subr.mxu0 0.0
      %1150 = vmatpush1.msra.mxu0 %v868
      %1151 = vmatprep.subr.mxu0 0.0
      %1152 = vmatpush1.msra.mxu0 %v865
      %1153 = vmatprep.subr.mxu0 0.0
      %1154 = vmatpush1.msra.mxu0 %v862
      %1155 = vmatprep.subr.mxu0 0.0
      %1156 = vmatpush1.msra.mxu0 %v859
      %1157 = vmatprep.subr.mxu0 0.0
      %1158 = vmatpush1.msra.mxu0 %v856
      %1159 = vmatprep.subr.mxu0 0.0
      %1160 = vmatpush1.msra.mxu0 %v853
      %1161 = vmatprep.subr.mxu0 0.0
      %1162 = vmatpush1.msra.mxu0 %v850
      %1163 = vmatprep.subr.mxu0 0.0
      %1164 = vmatpush1.msra.mxu0 %v847
      %1165 = vmatprep.subr.mxu0 0.0
      %1166 = vmatpush1.msra.mxu0 %v844
      %1167 = vmatprep.subr.mxu0 0.0
      %1168 = vmatpush1.msra.mxu0 %v841
      %1169 = vmatprep.subr.mxu0 0.0
      %1170 = vmatpush1.msra.mxu0 %v838
      %1171 = vmatprep.subr.mxu0 0.0
      %1172 = vmatpush2.msra.mxu0 %v931
      %1173 = vmatprep.subr.mxu0 0.0
      %1174 = vmatpush2.msra.mxu0 %v928
      %1175 = vmatprep.subr.mxu0 0.0
      %1176 = vmatpush2.msra.mxu0 %v925
      %1177 = vmatprep.subr.mxu0 0.0
      %1178 = vmatpush2.msra.mxu0 %v922
      %1179 = vmatprep.subr.mxu0 0.0
      %1180 = vmatpush2.msra.mxu0 %v919
      %1181 = vmatprep.subr.mxu0 0.0
      %1182 = vmatpush2.msra.mxu0 %v916
      %1183 = vmatprep.subr.mxu0 0.0
      %1184 = vmatpush2.msra.mxu0 %v913
      %1185 = vmatprep.subr.mxu0 0.0
      %1186 = vmatpush2.msra.mxu0 %v910
      %1187 = vmatprep.subr.mxu0 0.0
      %1188 = vmatpush2.msra.mxu0 %v907
      %1189 = vmatprep.subr.mxu0 0.0
      %1190 = vmatpush2.msra.mxu0 %v904
      %1191 = vmatprep.subr.mxu0 0.0
      %1192 = vmatpush2.msra.mxu0 %v901
      %1193 = vmatprep.subr.mxu0 0.0
      %1194 = vmatpush2.msra.mxu0 %v898
      %1195 = vmatprep.subr.mxu0 0.0
      %1196 = vmatpush2.msra.mxu0 %v895
      %1197 = vmatprep.subr.mxu0 0.0
      %1198 = vmatpush2.msra.mxu0 %v892
      %1199 = vmatprep.subr.mxu0 0.0
      %1200 = vmatpush2.msra.mxu0 %v889
      %1201 = vmatprep.subr.mxu0 0.0
      %1202 = vmatpush2.msra.mxu0 %v886
      %1203 = vmatprep.mubr.f32.mxu0 %v834
      %1204 = vmatmul.mubr.f32.gmra.mxu0 %v833
      %v1205 = vpop.f32.mrf.mxu0
      %v1206 = vadd.f32 %v993, %v1205
      %v1207 = vpop.f32.mrf.mxu0
      %1208 = vdwg.mxu0
      %1209 = vmatprep.subr.mxu0 0.0
      %1210 = vmatpush1.msra.mxu0 %v979
      %1211 = vmatprep.subr.mxu0 0.0
      %1212 = vmatpush1.msra.mxu0 %v976
      %1213 = vmatprep.subr.mxu0 0.0
      %1214 = vmatpush1.msra.mxu0 %v973
      %1215 = vmatprep.subr.mxu0 0.0
      %1216 = vmatpush1.msra.mxu0 %v970
      %1217 = vmatprep.subr.mxu0 0.0
      %1218 = vmatpush1.msra.mxu0 %v967
      %1219 = vmatprep.subr.mxu0 0.0
      %1220 = vmatpush1.msra.mxu0 %v964
      %1221 = vmatprep.subr.mxu0 0.0
      %1222 = vmatpush1.msra.mxu0 %v961
      %1223 = vmatprep.subr.mxu0 0.0
      %1224 = vmatpush1.msra.mxu0 %v958
      %1225 = vmatprep.subr.mxu0 0.0
      %1226 = vmatpush1.msra.mxu0 %v955
      %1227 = vmatprep.subr.mxu0 0.0
      %1228 = vmatpush1.msra.mxu0 %v952
      %1229 = vmatprep.subr.mxu0 0.0
      %1230 = vmatpush1.msra.mxu0 %v949
      %1231 = vmatprep.subr.mxu0 0.0
      %1232 = vmatpush1.msra.mxu0 %v946
      %1233 = vmatprep.subr.mxu0 0.0
      %1234 = vmatpush1.msra.mxu0 %v943
      %1235 = vmatprep.subr.mxu0 0.0
      %1236 = vmatpush1.msra.mxu0 %v940
      %1237 = vmatprep.subr.mxu0 0.0
      %1238 = vmatpush1.msra.mxu0 %v937
      %1239 = vmatprep.subr.mxu0 0.0
      %1240 = vmatpush1.msra.mxu0 %v934
      %1241 = vmatprep.subr.mxu0 0.0
      %1242 = vmatpush2.msra.mxu0 0.0
      %1243 = vmatprep.subr.mxu0 0.0
      %1244 = vmatpush2.msra.mxu0 0.0
      %1245 = vmatprep.subr.mxu0 0.0
      %1246 = vmatpush2.msra.mxu0 0.0
      %1247 = vmatprep.subr.mxu0 0.0
      %1248 = vmatpush2.msra.mxu0 0.0
      %1249 = vmatprep.subr.mxu0 0.0
      %1250 = vmatpush2.msra.mxu0 0.0
      %1251 = vmatprep.subr.mxu0 0.0
      %1252 = vmatpush2.msra.mxu0 0.0
      %1253 = vmatprep.subr.mxu0 0.0
      %1254 = vmatpush2.msra.mxu0 0.0
      %1255 = vmatprep.subr.mxu0 0.0
      %1256 = vmatpush2.msra.mxu0 0.0
      %1257 = vmatprep.subr.mxu0 0.0
      %1258 = vmatpush2.msra.mxu0 0.0
      %1259 = vmatprep.subr.mxu0 0.0
      %1260 = vmatpush2.msra.mxu0 0.0
      %1261 = vmatprep.subr.mxu0 0.0
      %1262 = vmatpush2.msra.mxu0 0.0
      %1263 = vmatprep.subr.mxu0 0.0
      %1264 = vmatpush2.msra.mxu0 0.0
      %1265 = vmatprep.subr.mxu0 0.0
      %1266 = vmatpush2.msra.mxu0 0.0
      %1267 = vmatprep.subr.mxu0 0.0
      %1268 = vmatpush2.msra.mxu0 0.0
      %1269 = vmatprep.subr.mxu0 0.0
      %1270 = vmatpush2.msra.mxu0 0.0
      %1271 = vmatprep.subr.mxu0 0.0
      %1272 = vmatpush2.msra.mxu0 0.0
      %1273 = vmatprep.mubr.f32.mxu0 0.0
      %1274 = vmatmul.mubr.f32.gmra.mxu0 %v835
      %v1275 = vpop.f32.mrf.mxu0
      %v1276 = vadd.f32 %v1206, %v1275
      %v1277 = vpop.f32.mrf.mxu0
      %1278 = vdwg.mxu0
      %v1282 = vcombine.low %v1135, %v1137
      %v1284 = vunpack.c.l.s4 1966171168
      %v1285 = vunpack.c.0.s8 %v1284
      %v1286 = vlaneseq
      %v1287 = vshrl.u32 %v1286, 7
      %v1288 = vsub.s32 %v1285, %v1287
      %v1289 = vrot.slane %v1282, %v1288
      %v1291 = vunpack.c.l.s4 1966171168
      %v1292 = vunpack.c.0.s8 %v1291
      %v1293 = vlaneseq
      %v1294 = vshrl.u32 %v1293, 7
      %v1295 = vsub.s32 %v1292, %v1294
      %v1296 = vrot.slane %v1276, %v1295
      %v1297 = vcombine.low %v1289, %v1296
      %v1299 = vunpack.c.l.s4 1966171168
      %v1300 = vunpack.c.0.s8 %v1299
      %v1301 = vlaneseq
      %v1302 = vshrl.u32 %v1301, 7
      %v1303 = vsub.s32 %v1300, %v1302
      %v1304 = vrot.slane %v1297, %v1303
      %v1306 = vlaneseq
      %vm1307 = vcmp.ge.s32.totalorder %v1306, 0
      %vm1308 = vcmp.lt.s32.totalorder %v1306, 384
      %vm1309 = vmand %vm1307, %vm1308
      %1310 = vst.msk [vmem:[%s459] sm:$0x7] %vm1309, %v1304
      %p1311 = scmp.lt.s32.totalorder %s23, 1
      %s1312 = scalar_select %p1311, %s23, 1
      %s1313 = smul.addr %s1312, 3
      %s1314 = scalar_lea.vmem %s12, %s1313
      // Predicated region
      $region69: #{run.11} parent=67 // pred_check
        %p1315 = pneg %p313
      $region70: #{run.11} parent=67 // pred_check_branch
        %1317 = sbr.rel (%p1315) target = $region72
      $region71: #{run.11} parent=67 // pred_region
        _
      $region72: #{run.11} parent=67 // pred_fallthru
        _
    $region68: #{run.11} parent=5 // pred_fallthru
      _
    %p1318 = scmp.le.s32.totalorder 2, %s18
    // Predicated region
    $region73: #{run.11} parent=5 // pred_check
      %p1319 = pneg %p1318
    $region74: #{run.11} parent=5 // pred_check_branch
      %1321 = sbr.rel (%p1319) target = $region76
    $region75: #{run.11} parent=5 // pred_region
      %s1322 = ssub.s32 %s18, 2
      // Predicated region
      $region77: #{run.11} parent=75 // pred_check
        %p1323 = pneg %p319
      $region78: #{run.11} parent=75 // pred_check_branch
        %1325 = sbr.rel (%p1323) target = $region80
      $region79: #{run.11} parent=75 // pred_region
        %p1326 = scmp.lt.s32.totalorder %s24, 1
        %s1327 = scalar_select %p1326, %s24, 1
        %s1328 = smul.addr %s1327, 3
        %s1329 = scalar_lea.vmem %s12, %s1328
      $region80: #{run.11} parent=75 // pred_fallthru
        _
    $region76: #{run.11} parent=5 // pred_fallthru
      _
  $region6: #{run.11} parent=0 // loop_footer
    %s22 = sadd.s32 1, %s18
  $region7: #{run.11} parent=0 // loop_footer_branch
    %17 = sbr.rel target = $region3
  $region8: #{run.11} parent=0 // loop_exit
    _

</llo_original>
